<compile_context>
chip_gen: v7x
topology: tpu7x:2x2x1
jax: 0.10.0
libtpu: 0.0.40
codegen_flags: <defaults>
</compile_context>

<pallas_src>
import functools

import jax
import jax.numpy as jnp
from jax import lax
from jax.experimental import pallas as pl
from jax.experimental.pallas import tpu as pltpu


def _round_up(x, m):
    return ((x + m - 1) // m) * m


def gat_kernel(z_ref, wt_ref, b_ref, al_ref, ar_ref, edge_ref,
               o_ref, h_s, el_s, pack_s, pt_s, *, num_heads):
    f32 = jnp.float32
    Hh = num_heads
    Np = z_ref.shape[0]           # padded node count (multiple of 8)
    OHp = wt_ref.shape[1]         # padded out_size*num_heads (multiple of 128)
    TE = edge_ref.shape[1]        # edge tile size (multiple of 128)
    stride = _round_up(Hh, 8)     # sublane-aligned spacing inside the pack
    OFF_M = stride                # running max lives at [OFF_M, OFF_M+Hh)
    OFF_L = 2 * stride            # sum-of-exp / reciprocal lives here
    NEG = -1e30

    p = pl.program_id(0)          # phase: 0 = online softmax stats, 1 = output
    k = pl.program_id(1)          # edge tile

    dn_n = (((0,), (0,)), ((), ()))      # contract over the node axis
    dn_oh = (((1,), (1,)), ((), ()))     # contract over the flat head*out axis

    # ---- one-time init: projection, attention coefficients, accumulators ----
    @pl.when(jnp.logical_and(p == 0, k == 0))
    def _init():
        H = jnp.dot(z_ref[...], wt_ref[...], preferred_element_type=f32) + b_ref[...]
        h_s[...] = H                                              # [Np, OHp]
        # head-selection matrix Pt[h, j] = (j % Hh == h), built ONCE.
        jj = lax.broadcasted_iota(jnp.int32, (pt_s.shape[0], OHp), 1)
        hh = lax.broadcasted_iota(jnp.int32, (pt_s.shape[0], OHp), 0)
        pt_s[...] = ((jj % Hh) == hh).astype(f32)
        Pt = pt_s[0:Hh, :]                                        # [Hh, OHp]
        el_s[...] = lax.dot_general(H * al_ref[...], Pt, dn_oh,
                                    preferred_element_type=f32)   # [Np, Hh]
        e_r = lax.dot_general(H * ar_ref[...], Pt, dn_oh,
                              preferred_element_type=f32)         # [Np, Hh]
        pack_s[...] = jnp.zeros_like(pack_s)
        pack_s[:, 0:Hh] = e_r                                     # dst-side e_r
        pack_s[:, OFF_M:OFF_M + Hh] = jnp.full((Np, Hh), NEG, f32)  # running max
        o_ref[...] = jnp.zeros_like(o_ref)                        # output accum

    # ---- per-edge-tile work shared by both phases ----
    rows = lax.broadcasted_iota(jnp.int32, (Np, TE), 0)
    t_src = (rows == edge_ref[0:1, :]).astype(f32)      # [Np, TE] (src[e] == v)
    t_dst = (rows == edge_ref[1:2, :]).astype(f32)      # [Np, TE] (dst[e] == v)
    # gather e_l[src[e]] per edge (used by both phases)
    el_gT = lax.dot_general(el_s[...], t_src, dn_n,
                            preferred_element_type=f32)           # [Hh, TE]

    # ---- phase 0: fused online softmax (running max + rescaled sum-of-exp) --
    @pl.when(p == 0)
    def _online_softmax():
        er_gT = lax.dot_general(pack_s[:, 0:Hh], t_dst, dn_n,
                                preferred_element_type=f32)       # [Hh, TE]
        aT = el_gT + er_gT
        aT = jnp.where(aT >= 0, aT, 0.01 * aT)                    # leaky_relu
        # per-head masked tile max; single concatenated maximum + store
        negmask = (t_dst - 1.0) * jnp.float32(1e30)     # 0 on edge, -1e30 off
        tmax = jnp.concatenate(
            [jnp.max(aT[h:h + 1, :] * t_dst + negmask, axis=1, keepdims=True)
             for h in range(Hh)], axis=1)                         # [Np, Hh]
        m_old = pack_s[:, OFF_M:OFF_M + Hh]
        m_new = jnp.maximum(m_old, tmax)
        # gather m_new[dst[e]] per edge, accumulate rescaled sum-of-exp
        m_gT = lax.dot_general(m_new, t_dst, dn_n,
                               preferred_element_type=f32)        # [Hh, TE]
        exp_aT = jnp.exp(aT - m_gT)                               # [Hh, TE]
        l_tile = lax.dot_general(t_dst, exp_aT, (((1,), (1,)), ((), ())),
                                 preferred_element_type=f32)      # [Np, Hh]
        l_new = jnp.exp(m_old - m_new) * pack_s[:, OFF_L:OFF_L + Hh] + l_tile
        pack_s[:, OFF_M:OFF_M + Hh] = m_new
        pack_s[:, OFF_L:OFF_L + Hh] = l_new

        @pl.when(k == pl.num_programs(1) - 1)
        def _finalize():
            lsum = pack_s[:, OFF_L:OFF_L + Hh]
            # node-level reciprocal (N of them, not E); gathered in phase 1
            # through the pack matmul.  approx=True (~2^-12 rel) is borderline
            # against the 1e-4 check, so keep the exact divide.
            pack_s[:, OFF_L:OFF_L + Hh] = pl.reciprocal(lsum + 1e-16,
                                                        approx=False)

    # ---- phase 1: normalize, weight messages, scatter-add into src rows ----
    @pl.when(p == 1)
    def _phase_out():
        pk_gT = lax.dot_general(pack_s[...], t_dst, dn_n,
                                preferred_element_type=f32)       # [PW, TE]
        er_gT = pk_gT[0:Hh, :]
        m_gT = pk_gT[OFF_M:OFF_M + Hh, :]
        invl_gT = pk_gT[OFF_L:OFF_L + Hh, :]
        aT = el_gT + er_gT
        aT = jnp.where(aT >= 0, aT, 0.01 * aT)                    # leaky_relu
        attnT = jnp.exp(aT - m_gT) * invl_gT                      # [Hh, TE]
        # expand heads to the flat (lane-dense) column layout j = o*Hh + h
        # using the Pt scratch built once in _init.
        attn_full = lax.dot_general(attnT, pt_s[0:Hh, :], dn_n,
                                    preferred_element_type=f32)   # [TE, OHp]
        h_g = lax.dot_general(t_dst, h_s[...], dn_n,
                              preferred_element_type=f32)         # [TE, OHp]
        o_ref[...] += jnp.dot(t_src, attn_full * h_g,
                              preferred_element_type=f32)         # [Np, OHp]


def gat_forward(index, n, Z, params, *, out_size, num_heads, edge_tile=256):
    """index: [2, E] int; Z: [n, in_size] f32.  Returns [n, out_size, num_heads]."""
    Wt, b, a_l, a_r = params
    f32 = jnp.float32
    Hh = num_heads
    OH = out_size * num_heads
    OHp = _round_up(OH, 128)
    Np = _round_up(max(n, 8), 8)
    in_size = Z.shape[1]
    INp = _round_up(in_size, 8)
    E = index.shape[1]
    TE = _round_up(edge_tile, 128)
    Ep = _round_up(max(E, TE), TE)
    K = Ep // TE
    stride = _round_up(Hh, 8)
    PW = max(128, _round_up(3 * stride, 128))     # dst-side pack width

    # zero-pad parameters / features to lane/sublane-friendly shapes
    Zp = jnp.zeros((Np, INp), f32).at[:n, :in_size].set(Z.astype(f32))
    Wtp = jnp.zeros((INp, OHp), f32).at[:in_size, :OH].set(Wt.astype(f32))
    bp = jnp.zeros((1, OHp), f32).at[:, :OH].set(b.reshape(1, OH).astype(f32))
    alp = jnp.zeros((1, OHp), f32).at[:, :OH].set(a_l.reshape(1, OH).astype(f32))
    arp = jnp.zeros((1, OHp), f32).at[:, :OH].set(a_r.reshape(1, OH).astype(f32))
    # src/dst packed into ONE [2, Ep] int32 array; padded edge slots get an
    # out-of-range node id -> all-zero one-hot columns.
    edges = jnp.full((2, Ep), Np, jnp.int32).at[:, :E].set(index.astype(jnp.int32))

    # VMEM budget: real footprint + margin, capped at 48 MiB so it is safe on
    # v7x (64 MiB physical per TensorCore) as well as v5e/v6e (128 MiB).
    f32b = 4
    vmem_est = f32b * (
        2 * (Np * INp + INp * OHp + 3 * OHp + 2 * TE)   # double-buffered inputs
        + 2 * Np * OHp                                   # resident output
        + Np * OHp + Np * Hh + Np * PW + stride * OHp    # scratch
    ) + (4 << 20)                                        # compiler-internal slack
    vmem_limit = int(min(max(vmem_est, 16 << 20), 48 << 20))

    out_flat = pl.pallas_call(
        functools.partial(gat_kernel, num_heads=Hh),
        out_shape=jax.ShapeDtypeStruct((Np, OHp), f32),
        grid_spec=pltpu.PrefetchScalarGridSpec(
            num_scalar_prefetch=0,
            grid=(2, K),                                    # (phase, edge tile)
            in_specs=[
                pl.BlockSpec((Np, INp), lambda p, k: (0, 0)),   # Z
                pl.BlockSpec((INp, OHp), lambda p, k: (0, 0)),  # W^T (padded)
                pl.BlockSpec((1, OHp), lambda p, k: (0, 0)),    # bias
                pl.BlockSpec((1, OHp), lambda p, k: (0, 0)),    # a_l (flat)
                pl.BlockSpec((1, OHp), lambda p, k: (0, 0)),    # a_r (flat)
                pl.BlockSpec((2, TE), lambda p, k: (0, k)),     # [src; dst] ids
            ],
            out_specs=pl.BlockSpec((Np, OHp), lambda p, k: (0, 0)),
            scratch_shapes=[
                pltpu.VMEM((Np, OHp), f32),      # H = Z @ W^T + b
                pltpu.VMEM((Np, Hh), f32),       # e_l per node
                pltpu.VMEM((Np, PW), f32),       # dst pack: e_r | max | 1/sum
                pltpu.VMEM((stride, OHp), f32),  # head-expansion matrix Pt
            ],
        ),
        compiler_params=pltpu.CompilerParams(
            # both axes carry cross-iteration state through VMEM scratch
            dimension_semantics=("arbitrary", "arbitrary"),
            vmem_limit_bytes=vmem_limit,
        ),
    )(Zp, Wtp, bp, alp, arp, edges)
    return out_flat[:n, :OH].reshape(n, out_size, num_heads)


def ref_forward(index, n, Z, Wt, b, a_l, a_r, out_size, num_heads):
    """Pure-JAX reference mirroring the PyTorch forward (eval mode)."""
    src, dst = index[0], index[1]
    H = Z @ Wt + b
    Zr = H.reshape(Z.shape[0], out_size, num_heads)
    e_l = (Zr * a_l).sum(axis=1)
    e_r = (Zr * a_r).sum(axis=1)
    e = e_l[src] + e_r[dst]
    a = jnp.where(e >= 0, e, 0.01 * e)
    m = jax.ops.segment_max(a, dst, num_segments=n)
    m = jnp.where(jnp.isneginf(m), 0.0, m)
    ex = jnp.exp(a - m[dst])
    s = jax.ops.segment_sum(ex, dst, num_segments=n) + 1e-16
    attn = ex / s[dst]
    msg = attn[:, None, :] * Zr[dst]
    return jax.ops.segment_sum(msg, src, num_segments=n)


if __name__ == "__main__":
    key = jax.random.PRNGKey(0)
    N, in_size, out_size, num_heads, E = 64, 16, 8, 4, 500
    OH = out_size * num_heads
    k1, k2, k3, k4, k5, k6, k7 = jax.random.split(key, 7)

    gain = float(jnp.sqrt(2.0))  # nn.init.calculate_gain('relu')
    # W.weight: xavier_normal_ on [OH, in_size]; kernel consumes W^T: [in_size, OH]
    std_w = gain * float(jnp.sqrt(2.0 / (in_size + OH)))
    W = jax.random.normal(k1, (OH, in_size), jnp.float32) * std_w
    Wt = W.T
    bound = 1.0 / float(jnp.sqrt(in_size))
    b = jax.random.uniform(k2, (OH,), jnp.float32, -bound, bound)
    # a_l / a_r: xavier_normal_ on (1, out_size, num_heads)
    std_a = gain * float(jnp.sqrt(2.0 / (out_size * num_heads + num_heads)))
    a_l = jax.random.normal(k3, (1, out_size, num_heads), jnp.float32) * std_a
    a_r = jax.random.normal(k4, (1, out_size, num_heads), jnp.float32) * std_a

    Z = jax.random.normal(k5, (N, in_size), jnp.float32)
    src = jax.random.randint(k6, (E,), 0, N, jnp.int32)
    dst = jax.random.randint(k7, (E,), 0, N, jnp.int32)
    index = jnp.stack([src, dst])

    out = gat_forward(index, N, Z, (Wt, b, a_l, a_r),
                      out_size=out_size, num_heads=num_heads, edge_tile=256)
    out = jax.block_until_ready(out)

    ref = ref_forward(index, N, Z, Wt, b, a_l, a_r, out_size, num_heads)
    assert out.shape == (N, out_size, num_heads)
    max_err = float(jnp.max(jnp.abs(out - ref)))
    assert jnp.allclose(out, ref, rtol=1e-4, atol=1e-4), max_err
    print("KERNEL_OK")
</pallas_src>

<mosaic_0001>
module attributes {stable_mosaic.version = 11 : i64} {
  func.func @gat_kernel(%arg0: i32, %arg1: i32, %arg2: memref<64x16xf32, #tpu.memory_space<vmem>>, %arg3: memref<16x128xf32, #tpu.memory_space<vmem>>, %arg4: memref<1x128xf32, #tpu.memory_space<vmem>>, %arg5: memref<1x128xf32, #tpu.memory_space<vmem>>, %arg6: memref<1x128xf32, #tpu.memory_space<vmem>>, %arg7: memref<2x256xi32, #tpu.memory_space<vmem>>, %arg8: memref<64x128xf32, #tpu.memory_space<vmem>>, %arg9: memref<64x128xf32, #tpu.memory_space<vmem>>, %arg10: memref<64x4xf32, #tpu.memory_space<vmem>>, %arg11: memref<64x128xf32, #tpu.memory_space<vmem>>, %arg12: memref<8x128xf32, #tpu.memory_space<vmem>>) attributes {dimension_semantics = [#tpu.dimension_semantics<arbitrary>, #tpu.dimension_semantics<arbitrary>], iteration_bounds = array<i64: 2, 2>, scalar_prefetch = 0 : i64, scratch_operands = 4 : i64, tpu.core_type = #tpu.core_type<tc>, window_params = [{pipeline_mode = #tpu.pipeline_mode<synchronous>, transform_indices = @transform_0, window_bounds = array<i64: 64, 16>}, {pipeline_mode = #tpu.pipeline_mode<synchronous>, transform_indices = @transform_1, window_bounds = array<i64: 16, 128>}, {pipeline_mode = #tpu.pipeline_mode<synchronous>, transform_indices = @transform_2, window_bounds = array<i64: 1, 128>}, {pipeline_mode = #tpu.pipeline_mode<synchronous>, transform_indices = @transform_3, window_bounds = array<i64: 1, 128>}, {pipeline_mode = #tpu.pipeline_mode<synchronous>, transform_indices = @transform_4, window_bounds = array<i64: 1, 128>}, {transform_indices = @transform_5, window_bounds = array<i64: 2, 256>}, {pipeline_mode = #tpu.pipeline_mode<synchronous>, transform_indices = @transform_6, window_bounds = array<i64: 64, 128>}]} {
    %c0_i32 = arith.constant 0 : i32
    %0 = arith.cmpi eq, %arg0, %c0_i32 : i32
    %c0_i32_0 = arith.constant 0 : i32
    %1 = arith.cmpi eq, %arg1, %c0_i32_0 : i32
    %2 = arith.andi %0, %1 : i1
    %3 = arith.extui %2 : i1 to i32
    %c0_i32_1 = arith.constant 0 : i32
    %4 = arith.cmpi ne, %3, %c0_i32_1 : i32
    scf.if %4 {
      %c0_9 = arith.constant 0 : index
      %c0_10 = arith.constant 0 : index
      %24 = vector.load %arg2[%c0_9, %c0_10] : memref<64x16xf32, #tpu.memory_space<vmem>>, vector<64x16xf32>
      %c0_11 = arith.constant 0 : index
      %c0_12 = arith.constant 0 : index
      %25 = vector.load %arg3[%c0_11, %c0_12] : memref<16x128xf32, #tpu.memory_space<vmem>>, vector<16x128xf32>
      %cst_13 = arith.constant dense<0.000000e+00> : vector<64x128xf32>
      %26 = tpu.matmul %24, %25, %cst_13 {dimension_numbers = #tpu.dot_dimension_numbers<[1], [0], [0], [1], [0, 0, 1, 1], [], []>} : vector<64x16xf32>, vector<16x128xf32>, vector<64x128xf32> -> vector<64x128xf32>
      %c0_14 = arith.constant 0 : index
      %c0_15 = arith.constant 0 : index
      %27 = vector.load %arg4[%c0_14, %c0_15] : memref<1x128xf32, #tpu.memory_space<vmem>>, vector<1x128xf32>
      %28 = vector.broadcast %27 : vector<1x128xf32> to vector<64x128xf32>
      %29 = arith.addf %26, %28 : vector<64x128xf32>
      %c0_16 = arith.constant 0 : index
      %c0_17 = arith.constant 0 : index
      %30 = vector.load %arg9[%c0_16, %c0_17] : memref<64x128xf32, #tpu.memory_space<vmem>>, vector<64x128xf32>
      tpu.vector_store %arg9[%c0_16, %c0_17], %29 {strides = array<i32>} : memref<64x128xf32, #tpu.memory_space<vmem>>, vector<64x128xf32>,
      %31 = tpu.iota {dimensions = array<i32: 1>} : vector<8x128xi32>
      %32 = tpu.iota {dimensions = array<i32: 0>} : vector<8x128xi32>
      %c4_i32 = arith.constant 4 : i32
      %c0_i32_18 = arith.constant 0 : i32
      %33 = arith.cmpi eq, %c4_i32, %c0_i32_18 : i32
      %c1_i32_19 = arith.constant 1 : i32
      %34 = arith.select %33, %c1_i32_19, %c4_i32 : i32
      %35 = vector.broadcast %34 : i32 to vector<8x128xi32>
      %36 = arith.remsi %31, %35 : vector<8x128xi32>
      %c0_i32_20 = arith.constant 0 : i32
      %37 = vector.broadcast %c0_i32_20 : i32 to vector<8x128xi32>
      %38 = arith.cmpi ne, %36, %37 : vector<8x128xi32>
      %c0_i32_21 = arith.constant 0 : i32
      %39 = vector.broadcast %c0_i32_21 : i32 to vector<8x128xi32>
      %40 = arith.cmpi slt, %36, %39 : vector<8x128xi32>
      %c0_i32_22 = arith.constant 0 : i32
      %41 = arith.cmpi slt, %34, %c0_i32_22 : i32
      %42 = vector.broadcast %41 : i1 to vector<8x128xi1>
      %43 = vector.broadcast %42 : vector<8x128xi1> to vector<8x128xi1>
      %44 = arith.xori %40, %43 : vector<8x128xi1>
      %45 = arith.andi %44, %38 : vector<8x128xi1>
      %46 = vector.broadcast %34 : i32 to vector<8x128xi32>
      %47 = arith.addi %36, %46 : vector<8x128xi32>
      %48 = arith.select %45, %47, %36 : vector<8x128xi1>, vector<8x128xi32>
      %49 = arith.cmpi eq, %48, %32 : vector<8x128xi32>
      %50 = arith.extui %49 : vector<8x128xi1> to vector<8x128xi32>
      %51 = arith.sitofp %50 : vector<8x128xi32> to vector<8x128xf32>
      %c0_23 = arith.constant 0 : index
      %c0_24 = arith.constant 0 : index
      %52 = vector.load %arg12[%c0_23, %c0_24] : memref<8x128xf32, #tpu.memory_space<vmem>>, vector<8x128xf32>
      tpu.vector_store %arg12[%c0_23, %c0_24], %51 {strides = array<i32>} : memref<8x128xf32, #tpu.memory_space<vmem>>, vector<8x128xf32>,
      %c0_25 = arith.constant 0 : index
      %c0_26 = arith.constant 0 : index
      %53 = vector.load %arg12[%c0_25, %c0_26] : memref<8x128xf32, #tpu.memory_space<vmem>>, vector<4x128xf32>
      %c0_27 = arith.constant 0 : index
      %c0_28 = arith.constant 0 : index
      %54 = vector.load %arg5[%c0_27, %c0_28] : memref<1x128xf32, #tpu.memory_space<vmem>>, vector<1x128xf32>
      %55 = vector.broadcast %54 : vector<1x128xf32> to vector<64x128xf32>
      %56 = arith.mulf %29, %55 : vector<64x128xf32>
      %cst_29 = arith.constant dense<0.000000e+00> : vector<64x4xf32>
      %57 = tpu.matmul %56, %53, %cst_29 {dimension_numbers = #tpu.dot_dimension_numbers<[1], [1], [0], [0], [0, 0, 1, 0], [], []>} : vector<64x128xf32>, vector<4x128xf32>, vector<64x4xf32> -> vector<64x4xf32>
      %c0_30 = arith.constant 0 : index
      %c0_31 = arith.constant 0 : index
      %58 = vector.load %arg10[%c0_30, %c0_31] : memref<64x4xf32, #tpu.memory_space<vmem>>, vector<64x4xf32>
      tpu.vector_store %arg10[%c0_30, %c0_31], %57 {strides = array<i32>} : memref<64x4xf32, #tpu.memory_space<vmem>>, vector<64x4xf32>,
      %c0_32 = arith.constant 0 : index
      %c0_33 = arith.constant 0 : index
      %59 = vector.load %arg6[%c0_32, %c0_33] : memref<1x128xf32, #tpu.memory_space<vmem>>, vector<1x128xf32>
      %60 = vector.broadcast %59 : vector<1x128xf32> to vector<64x128xf32>
      %61 = arith.mulf %29, %60 : vector<64x128xf32>
      %cst_34 = arith.constant dense<0.000000e+00> : vector<64x4xf32>
      %62 = tpu.matmul %61, %53, %cst_34 {dimension_numbers = #tpu.dot_dimension_numbers<[1], [1], [0], [0], [0, 0, 1, 0], [], []>} : vector<64x128xf32>, vector<4x128xf32>, vector<64x4xf32> -> vector<64x4xf32>
      %cst_35 = arith.constant 0.000000e+00 : f32
      %63 = vector.broadcast %cst_35 : f32 to vector<64x128xf32>
      %c0_36 = arith.constant 0 : index
      %c0_37 = arith.constant 0 : index
      %64 = vector.load %arg11[%c0_36, %c0_37] : memref<64x128xf32, #tpu.memory_space<vmem>>, vector<64x128xf32>
      tpu.vector_store %arg11[%c0_36, %c0_37], %63 {strides = array<i32>} : memref<64x128xf32, #tpu.memory_space<vmem>>, vector<64x128xf32>,
      %c0_38 = arith.constant 0 : index
      %c0_39 = arith.constant 0 : index
      %65 = vector.load %arg11[%c0_38, %c0_39] : memref<64x128xf32, #tpu.memory_space<vmem>>, vector<64x4xf32>
      tpu.vector_store %arg11[%c0_38, %c0_39], %62 {strides = array<i32>} : memref<64x128xf32, #tpu.memory_space<vmem>>, vector<64x4xf32>,
      %cst_40 = arith.constant -1.000000e+30 : f32
      %66 = vector.broadcast %cst_40 : f32 to vector<64x4xf32>
      %c0_41 = arith.constant 0 : index
      %c8 = arith.constant 8 : index
      %67 = vector.load %arg11[%c0_41, %c8] : memref<64x128xf32, #tpu.memory_space<vmem>>, vector<64x4xf32>
      tpu.vector_store %arg11[%c0_41, %c8], %66 {strides = array<i32>} : memref<64x128xf32, #tpu.memory_space<vmem>>, vector<64x4xf32>,
      %cst_42 = arith.constant 0.000000e+00 : f32
      %68 = vector.broadcast %cst_42 : f32 to vector<64x128xf32>
      %c0_43 = arith.constant 0 : index
      %c0_44 = arith.constant 0 : index
      %69 = vector.load %arg8[%c0_43, %c0_44] : memref<64x128xf32, #tpu.memory_space<vmem>>, vector<64x128xf32>
      tpu.vector_store %arg8[%c0_43, %c0_44], %68 {strides = array<i32>} : memref<64x128xf32, #tpu.memory_space<vmem>>, vector<64x128xf32>,
    } else {
    }
    %5 = tpu.iota {dimensions = array<i32: 0>} : vector<64x256xi32>
    %c0 = arith.constant 0 : index
    %c0_2 = arith.constant 0 : index
    %6 = vector.load %arg7[%c0, %c0_2] : memref<2x256xi32, #tpu.memory_space<vmem>>, vector<1x256xi32>
    %7 = vector.broadcast %6 : vector<1x256xi32> to vector<64x256xi32>
    %8 = arith.cmpi eq, %5, %7 : vector<64x256xi32>
    %9 = arith.extui %8 : vector<64x256xi1> to vector<64x256xi32>
    %10 = arith.sitofp %9 : vector<64x256xi32> to vector<64x256xf32>
    %c1 = arith.constant 1 : index
    %c0_3 = arith.constant 0 : index
    %11 = vector.load %arg7[%c1, %c0_3] : memref<2x256xi32, #tpu.memory_space<vmem>>, vector<1x256xi32>
    %12 = vector.broadcast %11 : vector<1x256xi32> to vector<64x256xi32>
    %13 = arith.cmpi eq, %5, %12 : vector<64x256xi32>
    %14 = arith.extui %13 : vector<64x256xi1> to vector<64x256xi32>
    %15 = arith.sitofp %14 : vector<64x256xi32> to vector<64x256xf32>
    %c0_4 = arith.constant 0 : index
    %c0_5 = arith.constant 0 : index
    %16 = vector.load %arg10[%c0_4, %c0_5] : memref<64x4xf32, #tpu.memory_space<vmem>>, vector<64x4xf32>
    %cst = arith.constant dense<0.000000e+00> : vector<4x256xf32>
    %17 = tpu.matmul %16, %10, %cst {dimension_numbers = #tpu.dot_dimension_numbers<[0], [0], [1], [1], [0, 1, 1, 1], [], []>} : vector<64x4xf32>, vector<64x256xf32>, vector<4x256xf32> -> vector<4x256xf32>
    %c0_i32_6 = arith.constant 0 : i32
    %18 = arith.cmpi eq, %arg0, %c0_i32_6 : i32
    %19 = arith.extui %18 : i1 to i32
    %c0_i32_7 = arith.constant 0 : i32
    %20 = arith.cmpi ne, %19, %c0_i32_7 : i32
    scf.if %20 {
      %c0_9 = arith.constant 0 : index
      %c0_10 = arith.constant 0 : index
      %24 = vector.load %arg11[%c0_9, %c0_10] : memref<64x128xf32, #tpu.memory_space<vmem>>, vector<64x4xf32>
      %cst_11 = arith.constant dense<0.000000e+00> : vector<4x256xf32>
      %25 = tpu.matmul %24, %15, %cst_11 {dimension_numbers = #tpu.dot_dimension_numbers<[0], [0], [1], [1], [0, 1, 1, 1], [], []>} : vector<64x4xf32>, vector<64x256xf32>, vector<4x256xf32> -> vector<4x256xf32>
      %26 = arith.addf %17, %25 : vector<4x256xf32>
      %cst_12 = arith.constant 0.000000e+00 : f32
      %27 = vector.broadcast %cst_12 : f32 to vector<4x256xf32>
      %28 = arith.cmpf oge, %26, %27 : vector<4x256xf32>
      %cst_13 = arith.constant 0.00999999977 : f32
      %29 = vector.broadcast %cst_13 : f32 to vector<4x256xf32>
      %30 = arith.mulf %29, %26 : vector<4x256xf32>
      %31 = arith.select %28, %26, %30 : vector<4x256xi1>, vector<4x256xf32>
      %cst_14 = arith.constant 1.000000e+00 : f32
      %32 = vector.broadcast %cst_14 : f32 to vector<64x256xf32>
      %33 = arith.subf %15, %32 : vector<64x256xf32>
      %cst_15 = arith.constant 1.000000e+30 : f32
      %34 = vector.broadcast %cst_15 : f32 to vector<64x256xf32>
      %35 = arith.mulf %33, %34 : vector<64x256xf32>
      %36 = vector.extract_strided_slice %31 {offsets = [0, 0], sizes = [1, 256], strides = [1, 1]} : vector<4x256xf32> to vector<1x256xf32>
      %37 = vector.broadcast %36 : vector<1x256xf32> to vector<64x256xf32>
      %38 = arith.mulf %37, %15 : vector<64x256xf32>
      %39 = arith.addf %38, %35 : vector<64x256xf32>
      %cst_16 = arith.constant dense<0xFF800000> : vector<64xf32>
      %40 = vector.multi_reduction <maximumf>, %39, %cst_16 [1] : vector<64x256xf32> to vector<64xf32>
      %41 = vector.shape_cast %40 : vector<64xf32> to vector<64x1xf32>
      %42 = vector.extract_strided_slice %31 {offsets = [1, 0], sizes = [1, 256], strides = [1, 1]} : vector<4x256xf32> to vector<1x256xf32>
      %43 = vector.broadcast %42 : vector<1x256xf32> to vector<64x256xf32>
      %44 = arith.mulf %43, %15 : vector<64x256xf32>
      %45 = arith.addf %44, %35 : vector<64x256xf32>
      %cst_17 = arith.constant dense<0xFF800000> : vector<64xf32>
      %46 = vector.multi_reduction <maximumf>, %45, %cst_17 [1] : vector<64x256xf32> to vector<64xf32>
      %47 = vector.shape_cast %46 : vector<64xf32> to vector<64x1xf32>
      %48 = vector.extract_strided_slice %31 {offsets = [2, 0], sizes = [1, 256], strides = [1, 1]} : vector<4x256xf32> to vector<1x256xf32>
      %49 = vector.broadcast %48 : vector<1x256xf32> to vector<64x256xf32>
      %50 = arith.mulf %49, %15 : vector<64x256xf32>
      %51 = arith.addf %50, %35 : vector<64x256xf32>
      %cst_18 = arith.constant dense<0xFF800000> : vector<64xf32>
      %52 = vector.multi_reduction <maximumf>, %51, %cst_18 [1] : vector<64x256xf32> to vector<64xf32>
      %53 = vector.shape_cast %52 : vector<64xf32> to vector<64x1xf32>
      %54 = vector.extract_strided_slice %31 {offsets = [3, 0], sizes = [1, 256], strides = [1, 1]} : vector<4x256xf32> to vector<1x256xf32>
      %55 = vector.broadcast %54 : vector<1x256xf32> to vector<64x256xf32>
      %56 = arith.mulf %55, %15 : vector<64x256xf32>
      %57 = arith.addf %56, %35 : vector<64x256xf32>
      %cst_19 = arith.constant dense<0xFF800000> : vector<64xf32>
      %58 = vector.multi_reduction <maximumf>, %57, %cst_19 [1] : vector<64x256xf32> to vector<64xf32>
      %59 = vector.shape_cast %58 : vector<64xf32> to vector<64x1xf32>
      %60 = tpu.concatenate %41, %47, %53, %59 in 1 : vector<64x1xf32>, vector<64x1xf32>, vector<64x1xf32>, vector<64x1xf32> -> vector<64x4xf32>
      %c0_20 = arith.constant 0 : index
      %c8 = arith.constant 8 : index
      %61 = vector.load %arg11[%c0_20, %c8] : memref<64x128xf32, #tpu.memory_space<vmem>>, vector<64x4xf32>
      %62 = arith.maximumf %61, %60 : vector<64x4xf32>
      %cst_21 = arith.constant dense<0.000000e+00> : vector<4x256xf32>
      %63 = tpu.matmul %62, %15, %cst_21 {dimension_numbers = #tpu.dot_dimension_numbers<[0], [0], [1], [1], [0, 1, 1, 1], [], []>} : vector<64x4xf32>, vector<64x256xf32>, vector<4x256xf32> -> vector<4x256xf32>
      %64 = arith.subf %31, %63 : vector<4x256xf32>
      %65 = math.exp %64 : vector<4x256xf32>
      %cst_22 = arith.constant dense<0.000000e+00> : vector<64x4xf32>
      %66 = tpu.matmul %15, %65, %cst_22 {dimension_numbers = #tpu.dot_dimension_numbers<[1], [1], [0], [0], [0, 0, 1, 0], [], []>} : vector<64x256xf32>, vector<4x256xf32>, vector<64x4xf32> -> vector<64x4xf32>
      %67 = arith.subf %61, %62 : vector<64x4xf32>
      %68 = math.exp %67 : vector<64x4xf32>
      %c0_23 = arith.constant 0 : index
      %c16 = arith.constant 16 : index
      %69 = vector.load %arg11[%c0_23, %c16] : memref<64x128xf32, #tpu.memory_space<vmem>>, vector<64x4xf32>
      %70 = arith.mulf %68, %69 : vector<64x4xf32>
      %71 = arith.addf %70, %66 : vector<64x4xf32>
      %c0_24 = arith.constant 0 : index
      %c8_25 = arith.constant 8 : index
      %72 = vector.load %arg11[%c0_24, %c8_25] : memref<64x128xf32, #tpu.memory_space<vmem>>, vector<64x4xf32>
      tpu.vector_store %arg11[%c0_24, %c8_25], %62 {strides = array<i32>} : memref<64x128xf32, #tpu.memory_space<vmem>>, vector<64x4xf32>,
      %c0_26 = arith.constant 0 : index
      %c16_27 = arith.constant 16 : index
      %73 = vector.load %arg11[%c0_26, %c16_27] : memref<64x128xf32, #tpu.memory_space<vmem>>, vector<64x4xf32>
      tpu.vector_store %arg11[%c0_26, %c16_27], %71 {strides = array<i32>} : memref<64x128xf32, #tpu.memory_space<vmem>>, vector<64x4xf32>,
      %c1_i32_28 = arith.constant 1 : i32
      %74 = arith.cmpi eq, %arg1, %c1_i32_28 : i32
      %75 = arith.extui %74 : i1 to i32
      %c0_i32_29 = arith.constant 0 : i32
      %76 = arith.cmpi ne, %75, %c0_i32_29 : i32
      scf.if %76 {
        %c0_30 = arith.constant 0 : index
        %c16_31 = arith.constant 16 : index
        %77 = vector.load %arg11[%c0_30, %c16_31] : memref<64x128xf32, #tpu.memory_space<vmem>>, vector<64x4xf32>
        %cst_32 = arith.constant 1.000000e-16 : f32
        %78 = vector.broadcast %cst_32 : f32 to vector<64x4xf32>
        %79 = arith.addf %77, %78 : vector<64x4xf32>
        %80 = tpu.reciprocal %79 : vector<64x4xf32> -> vector<64x4xf32>
        %c0_33 = arith.constant 0 : index
        %c16_34 = arith.constant 16 : index
        %81 = vector.load %arg11[%c0_33, %c16_34] : memref<64x128xf32, #tpu.memory_space<vmem>>, vector<64x4xf32>
        tpu.vector_store %arg11[%c0_33, %c16_34], %80 {strides = array<i32>} : memref<64x128xf32, #tpu.memory_space<vmem>>, vector<64x4xf32>,
      } else {
      }
    } else {
    }
    %c1_i32 = arith.constant 1 : i32
    %21 = arith.cmpi eq, %arg0, %c1_i32 : i32
    %22 = arith.extui %21 : i1 to i32
    %c0_i32_8 = arith.constant 0 : i32
    %23 = arith.cmpi ne, %22, %c0_i32_8 : i32
    scf.if %23 {
      %c0_9 = arith.constant 0 : index
      %c0_10 = arith.constant 0 : index
      %24 = vector.load %arg11[%c0_9, %c0_10] : memref<64x128xf32, #tpu.memory_space<vmem>>, vector<64x128xf32>
      %cst_11 = arith.constant dense<0.000000e+00> : vector<128x256xf32>
      %25 = tpu.matmul %24, %15, %cst_11 {dimension_numbers = #tpu.dot_dimension_numbers<[0], [0], [1], [1], [0, 1, 1, 1], [], []>} : vector<64x128xf32>, vector<64x256xf32>, vector<128x256xf32> -> vector<128x256xf32>
      %26 = vector.extract_strided_slice %25 {offsets = [0, 0], sizes = [4, 256], strides = [1, 1]} : vector<128x256xf32> to vector<4x256xf32>
      %27 = vector.extract_strided_slice %25 {offsets = [8, 0], sizes = [4, 256], strides = [1, 1]} : vector<128x256xf32> to vector<4x256xf32>
      %28 = vector.extract_strided_slice %25 {offsets = [16, 0], sizes = [4, 256], strides = [1, 1]} : vector<128x256xf32> to vector<4x256xf32>
      %29 = arith.addf %17, %26 : vector<4x256xf32>
      %cst_12 = arith.constant 0.000000e+00 : f32
      %30 = vector.broadcast %cst_12 : f32 to vector<4x256xf32>
      %31 = arith.cmpf oge, %29, %30 : vector<4x256xf32>
      %cst_13 = arith.constant 0.00999999977 : f32
      %32 = vector.broadcast %cst_13 : f32 to vector<4x256xf32>
      %33 = arith.mulf %32, %29 : vector<4x256xf32>
      %34 = arith.select %31, %29, %33 : vector<4x256xi1>, vector<4x256xf32>
      %35 = arith.subf %34, %27 : vector<4x256xf32>
      %36 = math.exp %35 : vector<4x256xf32>
      %37 = arith.mulf %36, %28 : vector<4x256xf32>
      %c0_14 = arith.constant 0 : index
      %c0_15 = arith.constant 0 : index
      %38 = vector.load %arg12[%c0_14, %c0_15] : memref<8x128xf32, #tpu.memory_space<vmem>>, vector<4x128xf32>
      %cst_16 = arith.constant dense<0.000000e+00> : vector<256x128xf32>
      %39 = tpu.matmul %37, %38, %cst_16 {dimension_numbers = #tpu.dot_dimension_numbers<[0], [0], [1], [1], [0, 1, 1, 1], [], []>} : vector<4x256xf32>, vector<4x128xf32>, vector<256x128xf32> -> vector<256x128xf32>
      %c0_17 = arith.constant 0 : index
      %c0_18 = arith.constant 0 : index
      %40 = vector.load %arg9[%c0_17, %c0_18] : memref<64x128xf32, #tpu.memory_space<vmem>>, vector<64x128xf32>
      %cst_19 = arith.constant dense<0.000000e+00> : vector<256x128xf32>
      %41 = tpu.matmul %15, %40, %cst_19 {dimension_numbers = #tpu.dot_dimension_numbers<[0], [0], [1], [1], [0, 1, 1, 1], [], []>} : vector<64x256xf32>, vector<64x128xf32>, vector<256x128xf32> -> vector<256x128xf32>
      %c0_20 = arith.constant 0 : index
      %c0_21 = arith.constant 0 : index
      %42 = vector.load %arg8[%c0_20, %c0_21] : memref<64x128xf32, #tpu.memory_space<vmem>>, vector<64x128xf32>
      %43 = arith.mulf %39, %41 : vector<256x128xf32>
      %cst_22 = arith.constant dense<0.000000e+00> : vector<64x128xf32>
      %44 = tpu.matmul %10, %43, %cst_22 {dimension_numbers = #tpu.dot_dimension_numbers<[1], [0], [0], [1], [0, 0, 1, 1], [], []>} : vector<64x256xf32>, vector<256x128xf32>, vector<64x128xf32> -> vector<64x128xf32>
      %45 = arith.addf %42, %44 : vector<64x128xf32>
      %c0_23 = arith.constant 0 : index
      %c0_24 = arith.constant 0 : index
      %46 = vector.load %arg8[%c0_23, %c0_24] : memref<64x128xf32, #tpu.memory_space<vmem>>, vector<64x128xf32>
      tpu.vector_store %arg8[%c0_23, %c0_24], %45 {strides = array<i32>} : memref<64x128xf32, #tpu.memory_space<vmem>>, vector<64x128xf32>,
    } else {
    }
    return
  }
  func.func @transform_0(%arg0: i32, %arg1: i32) -> (i32, i32) {
    %c0_i32 = arith.constant 0 : i32
    %c0_i32_0 = arith.constant 0 : i32
    %c0_i32_1 = arith.constant 0 : i32
    return %c0_i32, %c0_i32_0 : i32, i32
  }
  func.func @transform_1(%arg0: i32, %arg1: i32) -> (i32, i32) {
    %c0_i32 = arith.constant 0 : i32
    %c0_i32_0 = arith.constant 0 : i32
    %c0_i32_1 = arith.constant 0 : i32
    return %c0_i32, %c0_i32_0 : i32, i32
  }
  func.func @transform_2(%arg0: i32, %arg1: i32) -> (i32, i32) {
    %c0_i32 = arith.constant 0 : i32
    %c0_i32_0 = arith.constant 0 : i32
    %c0_i32_1 = arith.constant 0 : i32
    return %c0_i32, %c0_i32_0 : i32, i32
  }
  func.func @transform_3(%arg0: i32, %arg1: i32) -> (i32, i32) {
    %c0_i32 = arith.constant 0 : i32
    %c0_i32_0 = arith.constant 0 : i32
    %c0_i32_1 = arith.constant 0 : i32
    return %c0_i32, %c0_i32_0 : i32, i32
  }
  func.func @transform_4(%arg0: i32, %arg1: i32) -> (i32, i32) {
    %c0_i32 = arith.constant 0 : i32
    %c0_i32_0 = arith.constant 0 : i32
    %c0_i32_1 = arith.constant 0 : i32
    return %c0_i32, %c0_i32_0 : i32, i32
  }
  func.func @transform_5(%arg0: i32, %arg1: i32) -> (i32, i32) {
    %c0_i32 = arith.constant 0 : i32
    %c0_i32_0 = arith.constant 0 : i32
    return %c0_i32, %arg1 : i32, i32
  }
  func.func @transform_6(%arg0: i32, %arg1: i32) -> (i32, i32) {
    %c0_i32 = arith.constant 0 : i32
    %c0_i32_0 = arith.constant 0 : i32
    %c0_i32_1 = arith.constant 0 : i32
    return %c0_i32, %c0_i32_0 : i32, i32
  }
}

</mosaic_0001>

<llo_original>
// kernel: tpu_custom_call.1
$region0: #{tpu_custom_call.1}
  #allocation0 [shape = 'u32[]', space=smem, size = 0x4, offset = 0x4, fixed_abs, tag = 'smem constant byte address 0x4 - core index']
  #allocation1 [shape = 'u32[144,128]{1,0:T(1,128)}', space=vmem, size = 0x12000, scoped, tag = 'internal scratch']
  #allocation2 [shape = 'f32[64,128]{1,0:T(8,128)}', space=vmem, size = 0x8000, scoped, tag = 'scratch operand']
  #allocation3 [shape = 'f32[64,4]{1,0:T(8,128)}', space=vmem, size = 0x8000, scoped, tag = 'scratch operand']
  #allocation4 [shape = 'f32[64,128]{1,0:T(8,128)}', space=vmem, size = 0x8000, scoped, tag = 'scratch operand']
  #allocation5 [shape = 'f32[8,128]{1,0:T(8,128)}', space=vmem, size = 0x1000, scoped, tag = 'scratch operand']
  %s0 = inlined_call_operand.vmem [shape: f32[64,16], index: 0, kind: input, shape index: {}]
  %s1 = inlined_call_operand.vmem [shape: f32[16,128], index: 1, kind: input, shape index: {}]
  %s2 = inlined_call_operand.vmem [shape: f32[1,128], index: 2, kind: input, shape index: {}]
  %s3 = inlined_call_operand.vmem [shape: f32[1,128], index: 3, kind: input, shape index: {}]
  %s4 = inlined_call_operand.vmem [shape: f32[1,128], index: 4, kind: input, shape index: {}]
  %s5 = inlined_call_operand.vmem [shape: s32[2,512], index: 5, kind: input, shape index: {}]
  %s6 = inlined_call_operand.hbm [shape: f32[64,128], index: 6, kind: output, shape index: {}]
  %s7 = sld [smem:[#allocation0]]
  $region73: #{tpu_custom_call.1} parent=0
    _
  %s9 = ssub.s32 1, %s7
  %s10 = scalar_select 0, %s9, %s7
  $region1: #{tpu_custom_call.1} parent=0
    #allocation6 [shape = 'u8[32768]{0}', space=vmem, size = 0x8000, scoped, tag = 'output window, operand 0, single buffered']
    #allocation7 [shape = 's32[2]{0}', space=sflag, size = 0x8, scoped, tag = 'scoped memory for tpu_custom_call.1']
    %11 = vsyncpa [#allocation7], 0
    loop: start=0, step=1, limit=6
    $region2: #{tpu_custom_call.1} parent=1 // loop_pre_header
      _
    $region3: #{tpu_custom_call.1} parent=1 // loop_header
      %s13 = sphi 0, %s17
      %p14 = scmp.ge.s32.totalorder %s13, 6
      %s20 = sphi 0, %s32
      %s21 = sphi 0, %s28
      %s22 = sphi 0, %s20
      %s23 = sphi 0, %s21
      %s24 = sphi 0, %s22
      %s25 = sphi 0, %s23
      %s33 = sphi 0, %s33
      %s35 = sphi 0, %s33
      %s36 = sphi 0, %s35
      %s50 = sphi 0, %s36
      %s54 = sphi 0, %s54
      %s56 = sphi 0, %s54
      %s57 = sphi 0, %s56
      %s71 = sphi 0, %s57
      %s75 = sphi 0, %s75
      %s77 = sphi 0, %s75
      %s78 = sphi 0, %s77
      %s92 = sphi 0, %s78
      %s96 = sphi 0, %s96
      %s98 = sphi 0, %s96
      %s99 = sphi 0, %s98
      %s113 = sphi 0, %s99
      %s117 = sphi 0, %s117
      %s119 = sphi 0, %s117
      %s120 = sphi 0, %s119
      %s134 = sphi 0, %s120
      %s140 = sphi 0, %s142
      %s143 = sphi 0, %s140
      %s144 = sphi 0, %s143
      %s160 = sphi 0, %s144
      %s164 = sphi 0, %s164
      %s166 = sphi 0, %s164
      %s167 = sphi 0, %s166
      %s181 = sphi 0, %s167
    $region4: #{tpu_custom_call.1} parent=1 // loop_header_branch
      %16 = sbr.rel (%p14) target = $region8
    $region5: #{tpu_custom_call.1} parent=1 // loop_body
      %s18 = ssub.s32 %s13, 1
      %s19 = ssub.s32 %s13, 2
      %s26 = sadd.s32 1, %s21
      %p27 = scmp.ge.s32.totalorder %s26, 2
      %s28 = scalar_select %p27, 0, %s26
      %s29 = sadd.s32 1, %s20
      %s30 = scalar_select %p27, %s29, %s20
      %p31 = scmp.ge.s32.totalorder %s30, 2
      %s32 = scalar_select %p31, 0, %s30
      %s34 = sadd.s32 %s33, 1
      %p37 = scmp.eq.s32.totalorder %s13, 3
      %p38 = scmp.ne.s32.totalorder %s33, %s35
      %p39 = scmp.eq.s32.totalorder %s13, 0
      %p40 = por %p38, %p39
      %p41 = scmp.ne.s32.totalorder %s33, %s35
      %p42 = scmp.eq.s32.totalorder %s18, 3
      %p43 = por %p41, %p42
      %p44 = scmp.ne.s32.totalorder %s35, %s36
      %p45 = scmp.eq.s32.totalorder %s18, 0
      %p46 = por %p44, %p45
      %p47 = scmp.ne.s32.totalorder %s35, %s36
      %p48 = scmp.eq.s32.totalorder %s19, 3
      %p49 = por %p47, %p48
      %p51 = scmp.ne.s32.totalorder %s36, %s50
      %p52 = scmp.eq.s32.totalorder %s19, 0
      %p53 = por %p51, %p52
      %s55 = sadd.s32 %s54, 1
      %p58 = scmp.eq.s32.totalorder %s13, 3
      %p59 = scmp.ne.s32.totalorder %s54, %s56
      %p60 = scmp.eq.s32.totalorder %s13, 0
      %p61 = por %p59, %p60
      %p62 = scmp.ne.s32.totalorder %s54, %s56
      %p63 = scmp.eq.s32.totalorder %s18, 3
      %p64 = por %p62, %p63
      %p65 = scmp.ne.s32.totalorder %s56, %s57
      %p66 = scmp.eq.s32.totalorder %s18, 0
      %p67 = por %p65, %p66
      %p68 = scmp.ne.s32.totalorder %s56, %s57
      %p69 = scmp.eq.s32.totalorder %s19, 3
      %p70 = por %p68, %p69
      %p72 = scmp.ne.s32.totalorder %s57, %s71
      %p73 = scmp.eq.s32.totalorder %s19, 0
      %p74 = por %p72, %p73
      %s76 = sadd.s32 %s75, 1
      %p79 = scmp.eq.s32.totalorder %s13, 3
      %p80 = scmp.ne.s32.totalorder %s75, %s77
      %p81 = scmp.eq.s32.totalorder %s13, 0
      %p82 = por %p80, %p81
      %p83 = scmp.ne.s32.totalorder %s75, %s77
      %p84 = scmp.eq.s32.totalorder %s18, 3
      %p85 = por %p83, %p84
      %p86 = scmp.ne.s32.totalorder %s77, %s78
      %p87 = scmp.eq.s32.totalorder %s18, 0
      %p88 = por %p86, %p87
      %p89 = scmp.ne.s32.totalorder %s77, %s78
      %p90 = scmp.eq.s32.totalorder %s19, 3
      %p91 = por %p89, %p90
      %p93 = scmp.ne.s32.totalorder %s78, %s92
      %p94 = scmp.eq.s32.totalorder %s19, 0
      %p95 = por %p93, %p94
      %s97 = sadd.s32 %s96, 1
      %p100 = scmp.eq.s32.totalorder %s13, 3
      %p101 = scmp.ne.s32.totalorder %s96, %s98
      %p102 = scmp.eq.s32.totalorder %s13, 0
      %p103 = por %p101, %p102
      %p104 = scmp.ne.s32.totalorder %s96, %s98
      %p105 = scmp.eq.s32.totalorder %s18, 3
      %p106 = por %p104, %p105
      %p107 = scmp.ne.s32.totalorder %s98, %s99
      %p108 = scmp.eq.s32.totalorder %s18, 0
      %p109 = por %p107, %p108
      %p110 = scmp.ne.s32.totalorder %s98, %s99
      %p111 = scmp.eq.s32.totalorder %s19, 3
      %p112 = por %p110, %p111
      %p114 = scmp.ne.s32.totalorder %s99, %s113
      %p115 = scmp.eq.s32.totalorder %s19, 0
      %p116 = por %p114, %p115
      %s118 = sadd.s32 %s117, 1
      %p121 = scmp.eq.s32.totalorder %s13, 3
      %p122 = scmp.ne.s32.totalorder %s117, %s119
      %p123 = scmp.eq.s32.totalorder %s13, 0
      %p124 = por %p122, %p123
      %p125 = scmp.ne.s32.totalorder %s117, %s119
      %p126 = scmp.eq.s32.totalorder %s18, 3
      %p127 = por %p125, %p126
      %p128 = scmp.ne.s32.totalorder %s119, %s120
      %p129 = scmp.eq.s32.totalorder %s18, 0
      %p130 = por %p128, %p129
      %p131 = scmp.ne.s32.totalorder %s119, %s120
      %p132 = scmp.eq.s32.totalorder %s19, 3
      %p133 = por %p131, %p132
      %p135 = scmp.ne.s32.totalorder %s120, %s134
      %p136 = scmp.eq.s32.totalorder %s19, 0
      %p137 = por %p135, %p136
      %s138 = ssub.s32 %s21, %s28
      %p139 = scmp.eq.s32.totalorder %s138, 0
      %s141 = sadd.s32 %s140, 1
      %s142 = scalar_select %p139, %s140, %s141
      %p145 = pneg %p139
      %p146 = scmp.eq.s32.totalorder %s13, 3
      %p147 = por %p145, %p146
      %p148 = scmp.ne.s32.totalorder %s140, %s143
      %p149 = scmp.eq.s32.totalorder %s13, 0
      %p150 = por %p148, %p149
      %p151 = scmp.ne.s32.totalorder %s140, %s143
      %p152 = scmp.eq.s32.totalorder %s18, 3
      %p153 = por %p151, %p152
      %p154 = scmp.ne.s32.totalorder %s143, %s144
      %p155 = scmp.eq.s32.totalorder %s18, 0
      %p156 = por %p154, %p155
      %p157 = scmp.ne.s32.totalorder %s143, %s144
      %p158 = scmp.eq.s32.totalorder %s19, 3
      %p159 = por %p157, %p158
      %p161 = scmp.ne.s32.totalorder %s144, %s160
      %p162 = scmp.eq.s32.totalorder %s19, 0
      %p163 = por %p161, %p162
      %s165 = sadd.s32 %s164, 1
      %p168 = scmp.eq.s32.totalorder %s13, 3
      %p169 = scmp.ne.s32.totalorder %s164, %s166
      %p170 = scmp.eq.s32.totalorder %s13, 0
      %p171 = por %p169, %p170
      %p172 = scmp.ne.s32.totalorder %s164, %s166
      %p173 = scmp.eq.s32.totalorder %s18, 3
      %p174 = por %p172, %p173
      %p175 = scmp.ne.s32.totalorder %s166, %s167
      %p176 = scmp.eq.s32.totalorder %s18, 0
      %p177 = por %p175, %p176
      %p178 = scmp.ne.s32.totalorder %s166, %s167
      %p179 = scmp.eq.s32.totalorder %s19, 3
      %p180 = por %p178, %p179
      %p182 = scmp.ne.s32.totalorder %s167, %s181
      %p183 = scmp.eq.s32.totalorder %s19, 0
      %p184 = por %p182, %p183
      %p185 = scmp.le.s32.totalorder 1, %s13
      %p186 = scmp.lt.s32.totalorder %s13, 5
      %p187 = pnand %p185, %p186
      %p188 = pneg %p187
      // Predicated region
      $region9: #{tpu_custom_call.1} parent=5 // pred_check
        _
      $region10: #{tpu_custom_call.1} parent=5 // pred_check_branch
        %190 = sbr.rel (%p187) target = $region12
      $region11: #{tpu_custom_call.1} parent=5 // pred_region
        %s191 = ssub.s32 %s13, 1
        // Predicated region
        $region13: #{tpu_custom_call.1} parent=11 // pred_check
          %p192 = pneg %p46
        $region14: #{tpu_custom_call.1} parent=11 // pred_check_branch
          %194 = sbr.rel (%p192) target = $region16
        $region15: #{tpu_custom_call.1} parent=11 // pred_region
          _
        $region16: #{tpu_custom_call.1} parent=11 // pred_fallthru
          _
        // Predicated region
        $region17: #{tpu_custom_call.1} parent=11 // pred_check
          %p195 = pneg %p67
        $region18: #{tpu_custom_call.1} parent=11 // pred_check_branch
          %197 = sbr.rel (%p195) target = $region20
        $region19: #{tpu_custom_call.1} parent=11 // pred_region
          _
        $region20: #{tpu_custom_call.1} parent=11 // pred_fallthru
          _
        // Predicated region
        $region21: #{tpu_custom_call.1} parent=11 // pred_check
          %p198 = pneg %p88
        $region22: #{tpu_custom_call.1} parent=11 // pred_check_branch
          %200 = sbr.rel (%p198) target = $region24
        $region23: #{tpu_custom_call.1} parent=11 // pred_region
          _
        $region24: #{tpu_custom_call.1} parent=11 // pred_fallthru
          _
        // Predicated region
        $region25: #{tpu_custom_call.1} parent=11 // pred_check
          %p201 = pneg %p109
        $region26: #{tpu_custom_call.1} parent=11 // pred_check_branch
          %203 = sbr.rel (%p201) target = $region28
        $region27: #{tpu_custom_call.1} parent=11 // pred_region
          _
        $region28: #{tpu_custom_call.1} parent=11 // pred_fallthru
          _
        // Predicated region
        $region29: #{tpu_custom_call.1} parent=11 // pred_check
          %p204 = pneg %p130
        $region30: #{tpu_custom_call.1} parent=11 // pred_check_branch
          %206 = sbr.rel (%p204) target = $region32
        $region31: #{tpu_custom_call.1} parent=11 // pred_region
          _
        $region32: #{tpu_custom_call.1} parent=11 // pred_fallthru
          _
      $region12: #{tpu_custom_call.1} parent=5 // pred_fallthru
        _
      %p207 = scmp.lt.s32.totalorder %s13, 4
      // Predicated region
      $region33: #{tpu_custom_call.1} parent=5 // pred_check
        %p208 = pneg %p207
      $region34: #{tpu_custom_call.1} parent=5 // pred_check_branch
        %210 = sbr.rel (%p208) target = $region36
      $region35: #{tpu_custom_call.1} parent=5 // pred_region
        // Predicated region
        $region37: #{tpu_custom_call.1} parent=35 // pred_check
          %p211 = pneg %p150
        $region38: #{tpu_custom_call.1} parent=35 // pred_check_branch
          %213 = sbr.rel (%p211) target = $region40
        $region39: #{tpu_custom_call.1} parent=35 // pred_region
          %s214 = smul.u32 2, %s21
          %p215 = scmp.lt.s32.totalorder %s214, 3
          %s216 = scalar_select %p215, %s214, 3
          %s217 = smul.addr %s216, 2
          %s218 = scalar_lea.vmem %s5, %s217
          %s219 = smul.u32 2, %s21
        $region40: #{tpu_custom_call.1} parent=35 // pred_fallthru
          _
      $region36: #{tpu_custom_call.1} parent=5 // pred_fallthru
        _
      %p220 = scmp.le.s32.totalorder 1, %s13
      %p221 = scmp.lt.s32.totalorder %s13, 5
      %p222 = pnand %p220, %p221
      %p223 = pneg %p222
      // Predicated region
      $region41: #{tpu_custom_call.1} parent=5 // pred_check
        _
      $region42: #{tpu_custom_call.1} parent=5 // pred_check_branch
        %225 = sbr.rel (%p222) target = $region44
      $region43: #{tpu_custom_call.1} parent=5 // pred_region
        %s226 = ssub.s32 %s13, 1
        %p227 = pneg %p46
        %p228 = pneg %p43
        %p229 = pneg %p67
        %p230 = pneg %p64
        %p231 = pneg %p88
        %p232 = pneg %p85
        %p233 = pneg %p109
        %p234 = pneg %p106
        %p235 = pneg %p130
        %p236 = pneg %p127
        %s237 = smul.u32 2, %s23
        %p238 = scmp.lt.s32.totalorder %s237, 3
        %s239 = scalar_select %p238, %s237, 3
        %s240 = smul.addr %s239, 2
        %s241 = scalar_lea.vmem %s5, %s240
        %p242 = pneg %p156
        %p243 = pneg %p153
        %p244 = pneg %p177
        %p245 = pneg %p174
        %s246 = smul.u32 2, %s23
        %p247 = scmp.lt.s32.totalorder %s246, 3
        %s248 = scalar_select %p247, %s246, 3
        %s249 = smul.addr %s248, 2
        %s250 = scalar_lea.vmem %s5, %s249
        %s251 = smul.u32 2, %s23
        %p252 = scmp.eq.s32.totalorder %s22, 0
        %p253 = scmp.eq.s32.totalorder %s23, 0
        %p254 = pnand %p252, %p253
        %p255 = pneg %p254
        // Predicated region
        $region45: #{tpu_custom_call.1} parent=43 // pred_check
          _
        $region46: #{tpu_custom_call.1} parent=43 // pred_check_branch
          %257 = sbr.rel (%p254) target = $region48
        $region47: #{tpu_custom_call.1} parent=43 // pred_region
          %v258 = vld [vmem:[%s0] sm:$0xff]
          %v259 = vld [vmem:[%s0 + $0x8] sm:$0xff]
          %v260 = vld [vmem:[%s0 + $0x10] sm:$0xff]
          %v261 = vld [vmem:[%s0 + $0x18] sm:$0xff]
          %v262 = vld [vmem:[%s0 + $0x20] sm:$0xff]
          %v263 = vld [vmem:[%s0 + $0x28] sm:$0xff]
          %v264 = vld [vmem:[%s0 + $0x30] sm:$0xff]
          %v265 = vld [vmem:[%s0 + $0x38] sm:$0xff]
          %v266 = vld [vmem:[%s1] sm:$0xff]
          %v267 = vld [vmem:[%s1 + $0x8] sm:$0xff]
          %v268 = vld [vmem:[%s2] sm:$0x1]
          %v270 = vlaneseq
          %v271 = vshrl.u32 %v270, 7
          %v272 = vsub.s32 0, %v271
          %v273 = vrot.slane %v268, %v272
          %vm275 = vcmask 130048
          %v277 = vsel %vm275, %v258, 0
          %v280 = vsel %vm275, %v259, 0
          %v283 = vsel %vm275, %v260, 0
          %v286 = vsel %vm275, %v261, 0
          %v289 = vsel %vm275, %v262, 0
          %v292 = vsel %vm275, %v263, 0
          %v295 = vsel %vm275, %v264, 0
          %v298 = vsel %vm275, %v265, 0
          %300 = vmatprep.subr.mxu0 0.0
          %301 = vmatpush1.msra.mxu0 %v266
          %302 = vmatprep.subr.mxu0 0.0
          %303 = vmatpush1.msra.mxu0 %v267
          %304 = vmatprep.subr.mxu0 0.0
          %305 = vmatpush1.msra.mxu0 0.0
          %306 = vmatprep.subr.mxu0 0.0
          %307 = vmatpush1.msra.mxu0 0.0
          %308 = vmatprep.subr.mxu0 0.0
          %309 = vmatpush1.msra.mxu0 0.0
          %310 = vmatprep.subr.mxu0 0.0
          %311 = vmatpush1.msra.mxu0 0.0
          %312 = vmatprep.subr.mxu0 0.0
          %313 = vmatpush1.msra.mxu0 0.0
          %314 = vmatprep.subr.mxu0 0.0
          %315 = vmatpush1.msra.mxu0 0.0
          %316 = vmatprep.subr.mxu0 0.0
          %317 = vmatpush1.msra.mxu0 0.0
          %318 = vmatprep.subr.mxu0 0.0
          %319 = vmatpush1.msra.mxu0 0.0
          %320 = vmatprep.subr.mxu0 0.0
          %321 = vmatpush1.msra.mxu0 0.0
          %322 = vmatprep.subr.mxu0 0.0
          %323 = vmatpush1.msra.mxu0 0.0
          %324 = vmatprep.subr.mxu0 0.0
          %325 = vmatpush1.msra.mxu0 0.0
          %326 = vmatprep.subr.mxu0 0.0
          %327 = vmatpush1.msra.mxu0 0.0
          %328 = vmatprep.subr.mxu0 0.0
          %329 = vmatpush1.msra.mxu0 0.0
          %330 = vmatprep.subr.mxu0 0.0
          %331 = vmatpush1.msra.mxu0 0.0
          %332 = vmatprep.subr.mxu0 0.0
          %333 = vmatpush1.msra.mxu0 0.0
          %334 = vmatprep.subr.mxu0 0.0
          %335 = vmatpush1.msra.mxu0 0.0
          %336 = vmatprep.subr.mxu0 0.0
          %337 = vmatpush1.msra.mxu0 0.0
          %338 = vmatprep.subr.mxu0 0.0
          %339 = vmatpush1.msra.mxu0 0.0
          %340 = vmatprep.subr.mxu0 0.0
          %341 = vmatpush1.msra.mxu0 0.0
          %342 = vmatprep.subr.mxu0 0.0
          %343 = vmatpush1.msra.mxu0 0.0
          %344 = vmatprep.subr.mxu0 0.0
          %345 = vmatpush1.msra.mxu0 0.0
          %346 = vmatprep.subr.mxu0 0.0
          %347 = vmatpush1.msra.mxu0 0.0
          %348 = vmatprep.subr.mxu0 0.0
          %349 = vmatpush1.msra.mxu0 0.0
          %350 = vmatprep.subr.mxu0 0.0
          %351 = vmatpush1.msra.mxu0 0.0
          %352 = vmatprep.subr.mxu0 0.0
          %353 = vmatpush1.msra.mxu0 0.0
          %354 = vmatprep.subr.mxu0 0.0
          %355 = vmatpush1.msra.mxu0 0.0
          %356 = vmatprep.subr.mxu0 0.0
          %357 = vmatpush1.msra.mxu0 0.0
          %358 = vmatprep.subr.mxu0 0.0
          %359 = vmatpush1.msra.mxu0 0.0
          %360 = vmatprep.subr.mxu0 0.0
          %361 = vmatpush1.msra.mxu0 0.0
          %362 = vmatprep.subr.mxu0 0.0
          %363 = vmatpush1.msra.mxu0 0.0
          %364 = vmatprep.mubr.f32.mxu0 0.0
          %365 = vmatmul.mubr.f32.gmra.mrb[0].mxu0 %v277
          %v366 = vpop.f32.mrb[0].mxu0
          %v367 = vadd.f32 %v273, %v366
          %v368 = vpop.f32.mrb[0].mxu0
          %369 = vmatprep.mubr.f32.mxu0 0.0
          %370 = vmatmul.mubr.f32.gmra.mrb[0].mxu0 %v280
          %v371 = vpop.f32.mrb[0].mxu0
          %v372 = vadd.f32 %v273, %v371
          %v373 = vpop.f32.mrb[0].mxu0
          %374 = vmatprep.mubr.f32.mxu0 0.0
          %375 = vmatmul.mubr.f32.gmra.mrb[0].mxu0 %v283
          %v376 = vpop.f32.mrb[0].mxu0
          %v377 = vadd.f32 %v273, %v376
          %v378 = vpop.f32.mrb[0].mxu0
          %379 = vmatprep.mubr.f32.mxu0 0.0
          %380 = vmatmul.mubr.f32.gmra.mrb[0].mxu0 %v286
          %v381 = vpop.f32.mrb[0].mxu0
          %v382 = vadd.f32 %v273, %v381
          %v383 = vpop.f32.mrb[0].mxu0
          %384 = vmatprep.mubr.f32.mxu0 0.0
          %385 = vmatmul.mubr.f32.gmra.mrb[0].mxu0 %v289
          %v386 = vpop.f32.mrb[0].mxu0
          %v387 = vadd.f32 %v273, %v386
          %v388 = vpop.f32.mrb[0].mxu0
          %389 = vmatprep.mubr.f32.mxu0 0.0
          %390 = vmatmul.mubr.f32.gmra.mrb[0].mxu0 %v292
          %v391 = vpop.f32.mrb[0].mxu0
          %v392 = vadd.f32 %v273, %v391
          %v393 = vpop.f32.mrb[0].mxu0
          %394 = vmatprep.mubr.f32.mxu0 0.0
          %395 = vmatmul.mubr.f32.gmra.mrb[0].mxu0 %v295
          %v396 = vpop.f32.mrb[0].mxu0
          %v397 = vadd.f32 %v273, %v396
          %v398 = vpop.f32.mrb[0].mxu0
          %399 = vmatprep.mubr.f32.mxu0 0.0
          %400 = vmatmul.mubr.f32.gmra.mrb[0].mxu0 %v298
          %v401 = vpop.f32.mrb[0].mxu0
          %v402 = vadd.f32 %v273, %v401
          %v403 = vpop.f32.mrb[0].mxu0
          %404 = vdwg.mxu0
          %405 = vst [vmem:[#allocation2] sm:$0xff] %v367
          %406 = vst [vmem:[#allocation2 + $0x8] sm:$0xff] %v372
          %407 = vst [vmem:[#allocation2 + $0x10] sm:$0xff] %v377
          %408 = vst [vmem:[#allocation2 + $0x18] sm:$0xff] %v382
          %409 = vst [vmem:[#allocation2 + $0x20] sm:$0xff] %v387
          %410 = vst [vmem:[#allocation2 + $0x28] sm:$0xff] %v392
          %411 = vst [vmem:[#allocation2 + $0x30] sm:$0xff] %v397
          %412 = vst [vmem:[#allocation2 + $0x38] sm:$0xff] %v402
          %v413 = vlaneseq
          %v414 = vand.u32 %v413, 127
          %v415 = vlaneseq
          %v416 = vshrl.u32 %v415, 7
          %vm417 = vcmp.lt.s32.totalorder %v414, 0
          %v418 = vsub.s32 0, %v414
          %v419 = vsel %vm417, %v418, %v414
          %v420 = vshrl.u32 %v419, 2
          %v421 = vand.u32 %v419, 3
          %v422 = vsub.s32 0, %v421
          %v423 = vsel %vm417, %v422, %v421
          %vm424 = vcmp.ne.s32.totalorder %v423, 0
          %vm425 = vcmp.lt.s32.totalorder %v423, 0
          %vm426 = vmand %vm425, %vm424
          %v427 = vadd.s32 %v423, 4
          %v428 = vsel %vm426, %v427, %v423
          %vm429 = vcmp.eq.s32.totalorder %v428, %v416
          %v430 = vsel %vm429, 1, 0
          %v431 = vcvt.s32.f32 %v430
          %432 = vst [vmem:[#allocation5] sm:$0xff] %v431
          %v433 = vld [vmem:[#allocation5] sm:$0xf]
          %v434 = vld [vmem:[%s3] sm:$0x1]
          %v436 = vlaneseq
          %v437 = vshrl.u32 %v436, 7
          %v438 = vsub.s32 0, %v437
          %v439 = vrot.slane %v434, %v438
          %v441 = vmul.f32 %v367, %v439
          %v442 = vmul.f32 %v372, %v439
          %v443 = vmul.f32 %v377, %v439
          %v444 = vmul.f32 %v382, %v439
          %v445 = vmul.f32 %v387, %v439
          %v446 = vmul.f32 %v392, %v439
          %v447 = vmul.f32 %v397, %v439
          %v448 = vmul.f32 %v402, %v439
          %449 = vmatprep.subr.mxu0 0.0
          %450 = vmatpush1.xpose.msra.mxu0 %v433
          %451 = vmatprep.subr.mxu0 0.0
          %452 = vmatpush1.xpose.msra.mxu0 0.0
          %453 = vmatprep.subr.mxu0 0.0
          %454 = vmatpush1.xpose.msra.mxu0 0.0
          %455 = vmatprep.subr.mxu0 0.0
          %456 = vmatpush1.xpose.msra.mxu0 0.0
          %457 = vmatprep.subr.mxu0 0.0
          %458 = vmatpush1.xpose.msra.mxu0 0.0
          %459 = vmatprep.subr.mxu0 0.0
          %460 = vmatpush1.xpose.msra.mxu0 0.0
          %461 = vmatprep.subr.mxu0 0.0
          %462 = vmatpush1.xpose.msra.mxu0 0.0
          %463 = vmatprep.subr.mxu0 0.0
          %464 = vmatpush1.xpose.msra.mxu0 0.0
          %465 = vmatprep.subr.mxu0 0.0
          %466 = vmatpush1.xpose.msra.mxu0 0.0
          %467 = vmatprep.subr.mxu0 0.0
          %468 = vmatpush1.xpose.msra.mxu0 0.0
          %469 = vmatprep.subr.mxu0 0.0
          %470 = vmatpush1.xpose.msra.mxu0 0.0
          %471 = vmatprep.subr.mxu0 0.0
          %472 = vmatpush1.xpose.msra.mxu0 0.0
          %473 = vmatprep.subr.mxu0 0.0
          %474 = vmatpush1.xpose.msra.mxu0 0.0
          %475 = vmatprep.subr.mxu0 0.0
          %476 = vmatpush1.xpose.msra.mxu0 0.0
          %477 = vmatprep.subr.mxu0 0.0
          %478 = vmatpush1.xpose.msra.mxu0 0.0
          %479 = vmatprep.subr.mxu0 0.0
          %480 = vmatpush1.xpose.msra.mxu0 0.0
          %481 = vmatprep.subr.mxu0 0.0
          %482 = vmatpush1.xpose.msra.mxu0 0.0
          %483 = vmatprep.subr.mxu0 0.0
          %484 = vmatpush1.xpose.msra.mxu0 0.0
          %485 = vmatprep.subr.mxu0 0.0
          %486 = vmatpush1.xpose.msra.mxu0 0.0
          %487 = vmatprep.subr.mxu0 0.0
          %488 = vmatpush1.xpose.msra.mxu0 0.0
          %489 = vmatprep.subr.mxu0 0.0
          %490 = vmatpush1.xpose.msra.mxu0 0.0
          %491 = vmatprep.subr.mxu0 0.0
          %492 = vmatpush1.xpose.msra.mxu0 0.0
          %493 = vmatprep.subr.mxu0 0.0
          %494 = vmatpush1.xpose.msra.mxu0 0.0
          %495 = vmatprep.subr.mxu0 0.0
          %496 = vmatpush1.xpose.msra.mxu0 0.0
          %497 = vmatprep.subr.mxu0 0.0
          %498 = vmatpush1.xpose.msra.mxu0 0.0
          %499 = vmatprep.subr.mxu0 0.0
          %500 = vmatpush1.xpose.msra.mxu0 0.0
          %501 = vmatprep.subr.mxu0 0.0
          %502 = vmatpush1.xpose.msra.mxu0 0.0
          %503 = vmatprep.subr.mxu0 0.0
          %504 = vmatpush1.xpose.msra.mxu0 0.0
          %505 = vmatprep.subr.mxu0 0.0
          %506 = vmatpush1.xpose.msra.mxu0 0.0
          %507 = vmatprep.subr.mxu0 0.0
          %508 = vmatpush1.xpose.msra.mxu0 0.0
          %509 = vmatprep.subr.mxu0 0.0
          %510 = vmatpush1.xpose.msra.mxu0 0.0
          %511 = vmatprep.subr.mxu0 0.0
          %512 = vmatpush1.xpose.msra.mxu0 0.0
          %513 = vmatprep.mubr.f32.mxu0 0.0
          %514 = vmatmul.mubr.f32.gmra.mrb[0].mxu0 %v441
          %v515 = vpop.f32.mrb[0].mxu0
          %v516 = vadd.f32 0.0, %v515
          %v517 = vpop.f32.mrb[0].mxu0
          %518 = vmatprep.mubr.f32.mxu0 0.0
          %519 = vmatmul.mubr.f32.gmra.mrb[0].mxu0 %v442
          %v520 = vpop.f32.mrb[0].mxu0
          %v521 = vadd.f32 0.0, %v520
          %v522 = vpop.f32.mrb[0].mxu0
          %523 = vmatprep.mubr.f32.mxu0 0.0
          %524 = vmatmul.mubr.f32.gmra.mrb[0].mxu0 %v443
          %v525 = vpop.f32.mrb[0].mxu0
          %v526 = vadd.f32 0.0, %v525
          %v527 = vpop.f32.mrb[0].mxu0
          %528 = vmatprep.mubr.f32.mxu0 0.0
          %529 = vmatmul.mubr.f32.gmra.mrb[0].mxu0 %v444
          %v530 = vpop.f32.mrb[0].mxu0
          %v531 = vadd.f32 0.0, %v530
          %v532 = vpop.f32.mrb[0].mxu0
          %533 = vmatprep.mubr.f32.mxu0 0.0
          %534 = vmatmul.mubr.f32.gmra.mrb[0].mxu0 %v445
          %v535 = vpop.f32.mrb[0].mxu0
          %v536 = vadd.f32 0.0, %v535
          %v537 = vpop.f32.mrb[0].mxu0
          %538 = vmatprep.mubr.f32.mxu0 0.0
          %539 = vmatmul.mubr.f32.gmra.mrb[0].mxu0 %v446
          %v540 = vpop.f32.mrb[0].mxu0
          %v541 = vadd.f32 0.0, %v540
          %v542 = vpop.f32.mrb[0].mxu0
          %543 = vmatprep.mubr.f32.mxu0 0.0
          %544 = vmatmul.mubr.f32.gmra.mrb[0].mxu0 %v447
          %v545 = vpop.f32.mrb[0].mxu0
          %v546 = vadd.f32 0.0, %v545
          %v547 = vpop.f32.mrb[0].mxu0
          %548 = vmatprep.mubr.f32.mxu0 0.0
          %549 = vmatmul.mubr.f32.gmra.mrb[0].mxu0 %v448
          %v550 = vpop.f32.mrb[0].mxu0
          %v551 = vadd.f32 0.0, %v550
          %v552 = vpop.f32.mrb[0].mxu0
          %553 = vdwg.mxu0
          %vm554 = vcmask 31744
          %555 = vst.msk [vmem:[#allocation3] sm:$0xff] %vm554, %v516
          %556 = vst.msk [vmem:[#allocation3 + $0x8] sm:$0xff] %vm554, %v521
          %557 = vst.msk [vmem:[#allocation3 + $0x10] sm:$0xff] %vm554, %v526
          %558 = vst.msk [vmem:[#allocation3 + $0x18] sm:$0xff] %vm554, %v531
          %559 = vst.msk [vmem:[#allocation3 + $0x20] sm:$0xff] %vm554, %v536
          %560 = vst.msk [vmem:[#allocation3 + $0x28] sm:$0xff] %vm554, %v541
          %561 = vst.msk [vmem:[#allocation3 + $0x30] sm:$0xff] %vm554, %v546
          %562 = vst.msk [vmem:[#allocation3 + $0x38] sm:$0xff] %vm554, %v551
          %v563 = vld [vmem:[%s4] sm:$0x1]
          %v565 = vlaneseq
          %v566 = vshrl.u32 %v565, 7
          %v567 = vsub.s32 0, %v566
          %v568 = vrot.slane %v563, %v567
          %v570 = vmul.f32 %v367, %v568
          %v571 = vmul.f32 %v372, %v568
          %v572 = vmul.f32 %v377, %v568
          %v573 = vmul.f32 %v382, %v568
          %v574 = vmul.f32 %v387, %v568
          %v575 = vmul.f32 %v392, %v568
          %v576 = vmul.f32 %v397, %v568
          %v577 = vmul.f32 %v402, %v568
          %578 = vmatprep.subr.mxu0 0.0
          %579 = vmatpush1.xpose.msra.mxu0 %v433
          %580 = vmatprep.subr.mxu0 0.0
          %581 = vmatpush1.xpose.msra.mxu0 0.0
          %582 = vmatprep.subr.mxu0 0.0
          %583 = vmatpush1.xpose.msra.mxu0 0.0
          %584 = vmatprep.subr.mxu0 0.0
          %585 = vmatpush1.xpose.msra.mxu0 0.0
          %586 = vmatprep.subr.mxu0 0.0
          %587 = vmatpush1.xpose.msra.mxu0 0.0
          %588 = vmatprep.subr.mxu0 0.0
          %589 = vmatpush1.xpose.msra.mxu0 0.0
          %590 = vmatprep.subr.mxu0 0.0
          %591 = vmatpush1.xpose.msra.mxu0 0.0
          %592 = vmatprep.subr.mxu0 0.0
          %593 = vmatpush1.xpose.msra.mxu0 0.0
          %594 = vmatprep.subr.mxu0 0.0
          %595 = vmatpush1.xpose.msra.mxu0 0.0
          %596 = vmatprep.subr.mxu0 0.0
          %597 = vmatpush1.xpose.msra.mxu0 0.0
          %598 = vmatprep.subr.mxu0 0.0
          %599 = vmatpush1.xpose.msra.mxu0 0.0
          %600 = vmatprep.subr.mxu0 0.0
          %601 = vmatpush1.xpose.msra.mxu0 0.0
          %602 = vmatprep.subr.mxu0 0.0
          %603 = vmatpush1.xpose.msra.mxu0 0.0
          %604 = vmatprep.subr.mxu0 0.0
          %605 = vmatpush1.xpose.msra.mxu0 0.0
          %606 = vmatprep.subr.mxu0 0.0
          %607 = vmatpush1.xpose.msra.mxu0 0.0
          %608 = vmatprep.subr.mxu0 0.0
          %609 = vmatpush1.xpose.msra.mxu0 0.0
          %610 = vmatprep.subr.mxu0 0.0
          %611 = vmatpush1.xpose.msra.mxu0 0.0
          %612 = vmatprep.subr.mxu0 0.0
          %613 = vmatpush1.xpose.msra.mxu0 0.0
          %614 = vmatprep.subr.mxu0 0.0
          %615 = vmatpush1.xpose.msra.mxu0 0.0
          %616 = vmatprep.subr.mxu0 0.0
          %617 = vmatpush1.xpose.msra.mxu0 0.0
          %618 = vmatprep.subr.mxu0 0.0
          %619 = vmatpush1.xpose.msra.mxu0 0.0
          %620 = vmatprep.subr.mxu0 0.0
          %621 = vmatpush1.xpose.msra.mxu0 0.0
          %622 = vmatprep.subr.mxu0 0.0
          %623 = vmatpush1.xpose.msra.mxu0 0.0
          %624 = vmatprep.subr.mxu0 0.0
          %625 = vmatpush1.xpose.msra.mxu0 0.0
          %626 = vmatprep.subr.mxu0 0.0
          %627 = vmatpush1.xpose.msra.mxu0 0.0
          %628 = vmatprep.subr.mxu0 0.0
          %629 = vmatpush1.xpose.msra.mxu0 0.0
          %630 = vmatprep.subr.mxu0 0.0
          %631 = vmatpush1.xpose.msra.mxu0 0.0
          %632 = vmatprep.subr.mxu0 0.0
          %633 = vmatpush1.xpose.msra.mxu0 0.0
          %634 = vmatprep.subr.mxu0 0.0
          %635 = vmatpush1.xpose.msra.mxu0 0.0
          %636 = vmatprep.subr.mxu0 0.0
          %637 = vmatpush1.xpose.msra.mxu0 0.0
          %638 = vmatprep.subr.mxu0 0.0
          %639 = vmatpush1.xpose.msra.mxu0 0.0
          %640 = vmatprep.subr.mxu0 0.0
          %641 = vmatpush1.xpose.msra.mxu0 0.0
          %642 = vmatprep.mubr.f32.mxu0 0.0
          %643 = vmatmul.mubr.f32.gmra.mrb[0].mxu0 %v570
          %v644 = vpop.f32.mrb[0].mxu0
          %v645 = vadd.f32 0.0, %v644
          %v646 = vpop.f32.mrb[0].mxu0
          %647 = vmatprep.mubr.f32.mxu0 0.0
          %648 = vmatmul.mubr.f32.gmra.mrb[0].mxu0 %v571
          %v649 = vpop.f32.mrb[0].mxu0
          %v650 = vadd.f32 0.0, %v649
          %v651 = vpop.f32.mrb[0].mxu0
          %652 = vmatprep.mubr.f32.mxu0 0.0
          %653 = vmatmul.mubr.f32.gmra.mrb[0].mxu0 %v572
          %v654 = vpop.f32.mrb[0].mxu0
          %v655 = vadd.f32 0.0, %v654
          %v656 = vpop.f32.mrb[0].mxu0
          %657 = vmatprep.mubr.f32.mxu0 0.0
          %658 = vmatmul.mubr.f32.gmra.mrb[0].mxu0 %v573
          %v659 = vpop.f32.mrb[0].mxu0
          %v660 = vadd.f32 0.0, %v659
          %v661 = vpop.f32.mrb[0].mxu0
          %662 = vmatprep.mubr.f32.mxu0 0.0
          %663 = vmatmul.mubr.f32.gmra.mrb[0].mxu0 %v574
          %v664 = vpop.f32.mrb[0].mxu0
          %v665 = vadd.f32 0.0, %v664
          %v666 = vpop.f32.mrb[0].mxu0
          %667 = vmatprep.mubr.f32.mxu0 0.0
          %668 = vmatmul.mubr.f32.gmra.mrb[0].mxu0 %v575
          %v669 = vpop.f32.mrb[0].mxu0
          %v670 = vadd.f32 0.0, %v669
          %v671 = vpop.f32.mrb[0].mxu0
          %672 = vmatprep.mubr.f32.mxu0 0.0
          %673 = vmatmul.mubr.f32.gmra.mrb[0].mxu0 %v576
          %v674 = vpop.f32.mrb[0].mxu0
          %v675 = vadd.f32 0.0, %v674
          %v676 = vpop.f32.mrb[0].mxu0
          %677 = vmatprep.mubr.f32.mxu0 0.0
          %678 = vmatmul.mubr.f32.gmra.mrb[0].mxu0 %v577
          %v679 = vpop.f32.mrb[0].mxu0
          %v680 = vadd.f32 0.0, %v679
          %v681 = vpop.f32.mrb[0].mxu0
          %682 = vdwg.mxu0
          %683 = vst [vmem:[#allocation4] sm:$0xff] 0.0
          %684 = vst [vmem:[#allocation4 + $0x8] sm:$0xff] 0.0
          %685 = vst [vmem:[#allocation4 + $0x10] sm:$0xff] 0.0
          %686 = vst [vmem:[#allocation4 + $0x18] sm:$0xff] 0.0
          %687 = vst [vmem:[#allocation4 + $0x20] sm:$0xff] 0.0
          %688 = vst [vmem:[#allocation4 + $0x28] sm:$0xff] 0.0
          %689 = vst [vmem:[#allocation4 + $0x30] sm:$0xff] 0.0
          %690 = vst [vmem:[#allocation4 + $0x38] sm:$0xff] 0.0
          %691 = vst.msk [vmem:[#allocation4] sm:$0xff] %vm554, %v645
          %692 = vst.msk [vmem:[#allocation4 + $0x8] sm:$0xff] %vm554, %v650
          %693 = vst.msk [vmem:[#allocation4 + $0x10] sm:$0xff] %vm554, %v655
          %694 = vst.msk [vmem:[#allocation4 + $0x18] sm:$0xff] %vm554, %v660
          %695 = vst.msk [vmem:[#allocation4 + $0x20] sm:$0xff] %vm554, %v665
          %696 = vst.msk [vmem:[#allocation4 + $0x28] sm:$0xff] %vm554, %v670
          %697 = vst.msk [vmem:[#allocation4 + $0x30] sm:$0xff] %vm554, %v675
          %698 = vst.msk [vmem:[#allocation4 + $0x38] sm:$0xff] %vm554, %v680
          %vm699 = vcmask 97344
          %700 = vst.msk [vmem:[#allocation4] sm:$0xff] %vm699, -1e+30
          %701 = vst.msk [vmem:[#allocation4 + $0x8] sm:$0xff] %vm699, -1e+30
          %702 = vst.msk [vmem:[#allocation4 + $0x10] sm:$0xff] %vm699, -1e+30
          %703 = vst.msk [vmem:[#allocation4 + $0x18] sm:$0xff] %vm699, -1e+30
          %704 = vst.msk [vmem:[#allocation4 + $0x20] sm:$0xff] %vm699, -1e+30
          %705 = vst.msk [vmem:[#allocation4 + $0x28] sm:$0xff] %vm699, -1e+30
          %706 = vst.msk [vmem:[#allocation4 + $0x30] sm:$0xff] %vm699, -1e+30
          %707 = vst.msk [vmem:[#allocation4 + $0x38] sm:$0xff] %vm699, -1e+30
          %708 = vst [vmem:[#allocation6] sm:$0xff] 0.0
          %709 = vst [vmem:[#allocation6 + $0x8] sm:$0xff] 0.0
          %710 = vst [vmem:[#allocation6 + $0x10] sm:$0xff] 0.0
          %711 = vst [vmem:[#allocation6 + $0x18] sm:$0xff] 0.0
          %712 = vst [vmem:[#allocation6 + $0x20] sm:$0xff] 0.0
          %713 = vst [vmem:[#allocation6 + $0x28] sm:$0xff] 0.0
          %714 = vst [vmem:[#allocation6 + $0x30] sm:$0xff] 0.0
          %715 = vst [vmem:[#allocation6 + $0x38] sm:$0xff] 0.0
        $region48: #{tpu_custom_call.1} parent=43 // pred_fallthru
          _
        %v716 = vlaneseq
        %v717 = vshrl.u32 %v716, 7
        %v718 = vadd.s32 %v717, 8
        %v719 = vadd.s32 %v717, 16
        %v720 = vadd.s32 %v717, 24
        %v721 = vadd.s32 %v717, 32
        %v722 = vadd.s32 %v717, 40
        %v723 = vadd.s32 %v717, 48
        %v724 = vadd.s32 %v717, 56
        %v725 = vld [vmem:[%s250] ss:$2 sm:$0x3]
        %v726 = vlaneseq
        %v727 = vshrl.u32 %v726, 7
        %v728 = vsub.s32 0, %v727
        %v729 = vrot.slane %v725, %v728
        %v730 = vlaneseq
        %v731 = vshrl.u32 %v730, 7
        %v732 = vsub.s32 1, %v731
        %v733 = vrot.slane %v725, %v732
        %vm734 = vcmp.eq.s32.totalorder %v717, %v729
        %vm735 = vcmp.eq.s32.totalorder %v717, %v733
        %vm736 = vcmp.eq.s32.totalorder %v718, %v729
        %vm737 = vcmp.eq.s32.totalorder %v718, %v733
        %vm738 = vcmp.eq.s32.totalorder %v719, %v729
        %vm739 = vcmp.eq.s32.totalorder %v719, %v733
        %vm740 = vcmp.eq.s32.totalorder %v720, %v729
        %vm741 = vcmp.eq.s32.totalorder %v720, %v733
        %vm742 = vcmp.eq.s32.totalorder %v721, %v729
        %vm743 = vcmp.eq.s32.totalorder %v721, %v733
        %vm744 = vcmp.eq.s32.totalorder %v722, %v729
        %vm745 = vcmp.eq.s32.totalorder %v722, %v733
        %vm746 = vcmp.eq.s32.totalorder %v723, %v729
        %vm747 = vcmp.eq.s32.totalorder %v723, %v733
        %vm748 = vcmp.eq.s32.totalorder %v724, %v729
        %vm749 = vcmp.eq.s32.totalorder %v724, %v733
        %v750 = vsel %vm734, 1, 0
        %v751 = vsel %vm735, 1, 0
        %v752 = vsel %vm736, 1, 0
        %v753 = vsel %vm737, 1, 0
        %v754 = vsel %vm738, 1, 0
        %v755 = vsel %vm739, 1, 0
        %v756 = vsel %vm740, 1, 0
        %v757 = vsel %vm741, 1, 0
        %v758 = vsel %vm742, 1, 0
        %v759 = vsel %vm743, 1, 0
        %v760 = vsel %vm744, 1, 0
        %v761 = vsel %vm745, 1, 0
        %v762 = vsel %vm746, 1, 0
        %v763 = vsel %vm747, 1, 0
        %v764 = vsel %vm748, 1, 0
        %v765 = vsel %vm749, 1, 0
        %v766 = vcvt.s32.f32 %v750
        %v767 = vcvt.s32.f32 %v751
        %v768 = vcvt.s32.f32 %v752
        %v769 = vcvt.s32.f32 %v753
        %v770 = vcvt.s32.f32 %v754
        %v771 = vcvt.s32.f32 %v755
        %v772 = vcvt.s32.f32 %v756
        %v773 = vcvt.s32.f32 %v757
        %v774 = vcvt.s32.f32 %v758
        %v775 = vcvt.s32.f32 %v759
        %v776 = vcvt.s32.f32 %v760
        %v777 = vcvt.s32.f32 %v761
        %v778 = vcvt.s32.f32 %v762
        %v779 = vcvt.s32.f32 %v763
        %v780 = vcvt.s32.f32 %v764
        %v781 = vcvt.s32.f32 %v765
        %s782 = scalar_lea.vmem %s250, 1
        %v783 = vld [vmem:[%s782] ss:$2 sm:$0x3]
        %v784 = vlaneseq
        %v785 = vshrl.u32 %v784, 7
        %v786 = vsub.s32 0, %v785
        %v787 = vrot.slane %v783, %v786
        %v788 = vlaneseq
        %v789 = vshrl.u32 %v788, 7
        %v790 = vsub.s32 1, %v789
        %v791 = vrot.slane %v783, %v790
        %vm792 = vcmp.eq.s32.totalorder %v717, %v787
        %vm793 = vcmp.eq.s32.totalorder %v717, %v791
        %vm794 = vcmp.eq.s32.totalorder %v718, %v787
        %vm795 = vcmp.eq.s32.totalorder %v718, %v791
        %vm796 = vcmp.eq.s32.totalorder %v719, %v787
        %vm797 = vcmp.eq.s32.totalorder %v719, %v791
        %vm798 = vcmp.eq.s32.totalorder %v720, %v787
        %vm799 = vcmp.eq.s32.totalorder %v720, %v791
        %vm800 = vcmp.eq.s32.totalorder %v721, %v787
        %vm801 = vcmp.eq.s32.totalorder %v721, %v791
        %vm802 = vcmp.eq.s32.totalorder %v722, %v787
        %vm803 = vcmp.eq.s32.totalorder %v722, %v791
        %vm804 = vcmp.eq.s32.totalorder %v723, %v787
        %vm805 = vcmp.eq.s32.totalorder %v723, %v791
        %vm806 = vcmp.eq.s32.totalorder %v724, %v787
        %vm807 = vcmp.eq.s32.totalorder %v724, %v791
        %v808 = vsel %vm792, 1, 0
        %v809 = vsel %vm793, 1, 0
        %v810 = vsel %vm794, 1, 0
        %v811 = vsel %vm795, 1, 0
        %v812 = vsel %vm796, 1, 0
        %v813 = vsel %vm797, 1, 0
        %v814 = vsel %vm798, 1, 0
        %v815 = vsel %vm799, 1, 0
        %v816 = vsel %vm800, 1, 0
        %v817 = vsel %vm801, 1, 0
        %v818 = vsel %vm802, 1, 0
        %v819 = vsel %vm803, 1, 0
        %v820 = vsel %vm804, 1, 0
        %v821 = vsel %vm805, 1, 0
        %v822 = vsel %vm806, 1, 0
        %v823 = vsel %vm807, 1, 0
        %v824 = vcvt.s32.f32 %v808
        %v825 = vcvt.s32.f32 %v809
        %v826 = vcvt.s32.f32 %v810
        %v827 = vcvt.s32.f32 %v811
        %v828 = vcvt.s32.f32 %v812
        %v829 = vcvt.s32.f32 %v813
        %v830 = vcvt.s32.f32 %v814
        %v831 = vcvt.s32.f32 %v815
        %v832 = vcvt.s32.f32 %v816
        %v833 = vcvt.s32.f32 %v817
        %v834 = vcvt.s32.f32 %v818
        %v835 = vcvt.s32.f32 %v819
        %v836 = vcvt.s32.f32 %v820
        %v837 = vcvt.s32.f32 %v821
        %v838 = vcvt.s32.f32 %v822
        %v839 = vcvt.s32.f32 %v823
        %v840 = vld [vmem:[#allocation3] sm:$0xff]
        %v841 = vld [vmem:[#allocation3 + $0x8] sm:$0xff]
        %v842 = vld [vmem:[#allocation3 + $0x10] sm:$0xff]
        %v843 = vld [vmem:[#allocation3 + $0x18] sm:$0xff]
        %v844 = vld [vmem:[#allocation3 + $0x20] sm:$0xff]
        %v845 = vld [vmem:[#allocation3 + $0x28] sm:$0xff]
        %v846 = vld [vmem:[#allocation3 + $0x30] sm:$0xff]
        %v847 = vld [vmem:[#allocation3 + $0x38] sm:$0xff]
        %848 = vxpose.xlu0.b32.start [1/16] %v840, 128
        %849 = vxpose.xlu0.b32.cont [2/16] %v841, 128
        %850 = vxpose.xlu0.b32.cont [3/16] %v842, 128
        %851 = vxpose.xlu0.b32.cont [4/16] %v843, 128
        %852 = vxpose.xlu0.b32.cont [5/16] %v844, 128
        %853 = vxpose.xlu0.b32.cont [6/16] %v845, 128
        %854 = vxpose.xlu0.b32.cont [7/16] %v846, 128
        %855 = vxpose.xlu0.b32.cont [8/16] %v847, 128
        %856 = vxpose.xlu0.b32.cont [9/16] 0.0, 128
        %857 = vxpose.xlu0.b32.cont [10/16] 0.0, 128
        %858 = vxpose.xlu0.b32.cont [11/16] 0.0, 128
        %859 = vxpose.xlu0.b32.cont [12/16] 0.0, 128
        %860 = vxpose.xlu0.b32.cont [13/16] 0.0, 128
        %861 = vxpose.xlu0.b32.cont [14/16] 0.0, 128
        %862 = vxpose.xlu0.b32.cont [15/16] 0.0, 128
        %863 = vxpose.xlu0.b32.end [16/16] 0.0, 128
        %v864 = vpop.trf.xlu0
        %v865 = vpop.trf.xlu0
        %v866 = vpop.trf.xlu0
        %v867 = vpop.trf.xlu0
        %v868 = vpop.trf.xlu0
        %v869 = vpop.trf.xlu0
        %v870 = vpop.trf.xlu0
        %v871 = vpop.trf.xlu0
        %v872 = vpop.trf.xlu0
        %v873 = vpop.trf.xlu0
        %v874 = vpop.trf.xlu0
        %v875 = vpop.trf.xlu0
        %v876 = vpop.trf.xlu0
        %v877 = vpop.trf.xlu0
        %v878 = vpop.trf.xlu0
        %v879 = vpop.trf.xlu0
        %vm880 = vcmask 523264
        %v882 = vsel %vm880, %v864, 0
        %884 = vmatprep.subr.mxu0 %v767
        %885 = vmatpush1.msra.mxu0 %v766
        %886 = vmatprep.subr.mxu0 %v769
        %887 = vmatpush1.msra.mxu0 %v768
        %888 = vmatprep.subr.mxu0 %v771
        %889 = vmatpush1.msra.mxu0 %v770
        %890 = vmatprep.subr.mxu0 %v773
        %891 = vmatpush1.msra.mxu0 %v772
        %892 = vmatprep.subr.mxu0 %v775
        %893 = vmatpush1.msra.mxu0 %v774
        %894 = vmatprep.subr.mxu0 %v777
        %895 = vmatpush1.msra.mxu0 %v776
        %896 = vmatprep.subr.mxu0 %v779
        %897 = vmatpush1.msra.mxu0 %v778
        %898 = vmatprep.subr.mxu0 %v781
        %899 = vmatpush1.msra.mxu0 %v780
        %900 = vmatprep.subr.mxu0 0.0
        %901 = vmatpush1.msra.mxu0 0.0
        %902 = vmatprep.subr.mxu0 0.0
        %903 = vmatpush1.msra.mxu0 0.0
        %904 = vmatprep.subr.mxu0 0.0
        %905 = vmatpush1.msra.mxu0 0.0
        %906 = vmatprep.subr.mxu0 0.0
        %907 = vmatpush1.msra.mxu0 0.0
        %908 = vmatprep.subr.mxu0 0.0
        %909 = vmatpush1.msra.mxu0 0.0
        %910 = vmatprep.subr.mxu0 0.0
        %911 = vmatpush1.msra.mxu0 0.0
        %912 = vmatprep.subr.mxu0 0.0
        %913 = vmatpush1.msra.mxu0 0.0
        %914 = vmatprep.subr.mxu0 0.0
        %915 = vmatpush1.msra.mxu0 0.0
        %916 = vmatprep.subr.mxu0 0.0
        %917 = vmatpush1.msra.mxu0 0.0
        %918 = vmatprep.subr.mxu0 0.0
        %919 = vmatpush1.msra.mxu0 0.0
        %920 = vmatprep.subr.mxu0 0.0
        %921 = vmatpush1.msra.mxu0 0.0
        %922 = vmatprep.subr.mxu0 0.0
        %923 = vmatpush1.msra.mxu0 0.0
        %924 = vmatprep.subr.mxu0 0.0
        %925 = vmatpush1.msra.mxu0 0.0
        %926 = vmatprep.subr.mxu0 0.0
        %927 = vmatpush1.msra.mxu0 0.0
        %928 = vmatprep.subr.mxu0 0.0
        %929 = vmatpush1.msra.mxu0 0.0
        %930 = vmatprep.subr.mxu0 0.0
        %931 = vmatpush1.msra.mxu0 0.0
        %932 = vmatprep.subr.mxu0 0.0
        %933 = vmatpush1.msra.mxu0 0.0
        %934 = vmatprep.subr.mxu0 0.0
        %935 = vmatpush1.msra.mxu0 0.0
        %936 = vmatprep.subr.mxu0 0.0
        %937 = vmatpush1.msra.mxu0 0.0
        %938 = vmatprep.subr.mxu0 0.0
        %939 = vmatpush1.msra.mxu0 0.0
        %940 = vmatprep.subr.mxu0 0.0
        %941 = vmatpush1.msra.mxu0 0.0
        %942 = vmatprep.subr.mxu0 0.0
        %943 = vmatpush1.msra.mxu0 0.0
        %944 = vmatprep.subr.mxu0 0.0
        %945 = vmatpush1.msra.mxu0 0.0
        %946 = vmatprep.subr.mxu0 0.0
        %947 = vmatpush1.msra.mxu0 0.0
        %948 = vmatprep.mubr.f32.mxu0 0.0
        %949 = vmatmul.mubr.f32.gmra.mrb[0].mxu0 %v882
        %v950 = vpop.f32.mrb[0].mxu0
        %v951 = vadd.f32 0.0, %v950
        %v952 = vpop.f32.mrb[0].mxu0
        %v953 = vadd.f32 0.0, %v952
        %954 = vdwg.mxu0
        // Predicated region
        $region49: #{tpu_custom_call.1} parent=43 // pred_check
          %p955 = pneg %p252
        $region50: #{tpu_custom_call.1} parent=43 // pred_check_branch
          %957 = sbr.rel (%p955) target = $region52
        $region51: #{tpu_custom_call.1} parent=43 // pred_region
          %v958 = vld [vmem:[#allocation4] sm:$0xff]
          %v959 = vld [vmem:[#allocation4 + $0x8] sm:$0xff]
          %v960 = vld [vmem:[#allocation4 + $0x10] sm:$0xff]
          %v961 = vld [vmem:[#allocation4 + $0x18] sm:$0xff]
          %v962 = vld [vmem:[#allocation4 + $0x20] sm:$0xff]
          %v963 = vld [vmem:[#allocation4 + $0x28] sm:$0xff]
          %v964 = vld [vmem:[#allocation4 + $0x30] sm:$0xff]
          %v965 = vld [vmem:[#allocation4 + $0x38] sm:$0xff]
          %966 = vxpose.xlu0.b32.start [1/16] %v958, 128
          %967 = vxpose.xlu0.b32.cont [2/16] %v959, 128
          %968 = vxpose.xlu0.b32.cont [3/16] %v960, 128
          %969 = vxpose.xlu0.b32.cont [4/16] %v961, 128
          %970 = vxpose.xlu0.b32.cont [5/16] %v962, 128
          %971 = vxpose.xlu0.b32.cont [6/16] %v963, 128
          %972 = vxpose.xlu0.b32.cont [7/16] %v964, 128
          %973 = vxpose.xlu0.b32.cont [8/16] %v965, 128
          %974 = vxpose.xlu0.b32.cont [9/16] 0.0, 128
          %975 = vxpose.xlu0.b32.cont [10/16] 0.0, 128
          %976 = vxpose.xlu0.b32.cont [11/16] 0.0, 128
          %977 = vxpose.xlu0.b32.cont [12/16] 0.0, 128
          %978 = vxpose.xlu0.b32.cont [13/16] 0.0, 128
          %979 = vxpose.xlu0.b32.cont [14/16] 0.0, 128
          %980 = vxpose.xlu0.b32.cont [15/16] 0.0, 128
          %981 = vxpose.xlu0.b32.end [16/16] 0.0, 128
          %v982 = vpop.trf.xlu0
          %v983 = vpop.trf.xlu0
          %v984 = vpop.trf.xlu0
          %v985 = vpop.trf.xlu0
          %v986 = vpop.trf.xlu0
          %v987 = vpop.trf.xlu0
          %v988 = vpop.trf.xlu0
          %v989 = vpop.trf.xlu0
          %v990 = vpop.trf.xlu0
          %v991 = vpop.trf.xlu0
          %v992 = vpop.trf.xlu0
          %v993 = vpop.trf.xlu0
          %v994 = vpop.trf.xlu0
          %v995 = vpop.trf.xlu0
          %v996 = vpop.trf.xlu0
          %v997 = vpop.trf.xlu0
          %v999 = vsel %vm880, %v982, 0
          %1001 = vmatprep.subr.mxu0 %v825
          %1002 = vmatpush1.msra.mxu0 %v824
          %1003 = vmatprep.subr.mxu0 %v827
          %1004 = vmatpush1.msra.mxu0 %v826
          %1005 = vmatprep.subr.mxu0 %v829
          %1006 = vmatpush1.msra.mxu0 %v828
          %1007 = vmatprep.subr.mxu0 %v831
          %1008 = vmatpush1.msra.mxu0 %v830
          %1009 = vmatprep.subr.mxu0 %v833
          %1010 = vmatpush1.msra.mxu0 %v832
          %1011 = vmatprep.subr.mxu0 %v835
          %1012 = vmatpush1.msra.mxu0 %v834
          %1013 = vmatprep.subr.mxu0 %v837
          %1014 = vmatpush1.msra.mxu0 %v836
          %1015 = vmatprep.subr.mxu0 %v839
          %1016 = vmatpush1.msra.mxu0 %v838
          %1017 = vmatprep.subr.mxu0 0.0
          %1018 = vmatpush1.msra.mxu0 0.0
          %1019 = vmatprep.subr.mxu0 0.0
          %1020 = vmatpush1.msra.mxu0 0.0
          %1021 = vmatprep.subr.mxu0 0.0
          %1022 = vmatpush1.msra.mxu0 0.0
          %1023 = vmatprep.subr.mxu0 0.0
          %1024 = vmatpush1.msra.mxu0 0.0
          %1025 = vmatprep.subr.mxu0 0.0
          %1026 = vmatpush1.msra.mxu0 0.0
          %1027 = vmatprep.subr.mxu0 0.0
          %1028 = vmatpush1.msra.mxu0 0.0
          %1029 = vmatprep.subr.mxu0 0.0
          %1030 = vmatpush1.msra.mxu0 0.0
          %1031 = vmatprep.subr.mxu0 0.0
          %1032 = vmatpush1.msra.mxu0 0.0
          %1033 = vmatprep.subr.mxu0 0.0
          %1034 = vmatpush1.msra.mxu0 0.0
          %1035 = vmatprep.subr.mxu0 0.0
          %1036 = vmatpush1.msra.mxu0 0.0
          %1037 = vmatprep.subr.mxu0 0.0
          %1038 = vmatpush1.msra.mxu0 0.0
          %1039 = vmatprep.subr.mxu0 0.0
          %1040 = vmatpush1.msra.mxu0 0.0
          %1041 = vmatprep.subr.mxu0 0.0
          %1042 = vmatpush1.msra.mxu0 0.0
          %1043 = vmatprep.subr.mxu0 0.0
          %1044 = vmatpush1.msra.mxu0 0.0
          %1045 = vmatprep.subr.mxu0 0.0
          %1046 = vmatpush1.msra.mxu0 0.0
          %1047 = vmatprep.subr.mxu0 0.0
          %1048 = vmatpush1.msra.mxu0 0.0
          %1049 = vmatprep.subr.mxu0 0.0
          %1050 = vmatpush1.msra.mxu0 0.0
          %1051 = vmatprep.subr.mxu0 0.0
          %1052 = vmatpush1.msra.mxu0 0.0
          %1053 = vmatprep.subr.mxu0 0.0
          %1054 = vmatpush1.msra.mxu0 0.0
          %1055 = vmatprep.subr.mxu0 0.0
          %1056 = vmatpush1.msra.mxu0 0.0
          %1057 = vmatprep.subr.mxu0 0.0
          %1058 = vmatpush1.msra.mxu0 0.0
          %1059 = vmatprep.subr.mxu0 0.0
          %1060 = vmatpush1.msra.mxu0 0.0
          %1061 = vmatprep.subr.mxu0 0.0
          %1062 = vmatpush1.msra.mxu0 0.0
          %1063 = vmatprep.subr.mxu0 0.0
          %1064 = vmatpush1.msra.mxu0 0.0
          %1065 = vmatprep.mubr.f32.mxu0 0.0
          %1066 = vmatmul.mubr.f32.gmra.mrb[0].mxu0 %v999
          %v1067 = vpop.f32.mrb[0].mxu0
          %v1068 = vadd.f32 0.0, %v1067
          %v1069 = vpop.f32.mrb[0].mxu0
          %v1070 = vadd.f32 0.0, %v1069
          %1071 = vdwg.mxu0
          %v1072 = vadd.f32 %v951, %v1068
          %v1073 = vadd.f32 %v953, %v1070
          %vm1074 = vcmp.ge.f32.partialorder %v1072, 0.0
          %vm1075 = vcmp.ge.f32.partialorder %v1073, 0.0
          %v1076 = vmul.f32 %v1072, 0.01
          %v1077 = vmul.f32 %v1073, 0.01
          %v1078 = vsel %vm1074, %v1072, %v1076
          %v1079 = vsel %vm1075, %v1073, %v1077
          %v1080 = vsub.f32 %v824, 1.0
          %v1081 = vsub.f32 %v825, 1.0
          %v1082 = vsub.f32 %v826, 1.0
          %v1083 = vsub.f32 %v827, 1.0
          %v1084 = vsub.f32 %v828, 1.0
          %v1085 = vsub.f32 %v829, 1.0
          %v1086 = vsub.f32 %v830, 1.0
          %v1087 = vsub.f32 %v831, 1.0
          %v1088 = vsub.f32 %v832, 1.0
          %v1089 = vsub.f32 %v833, 1.0
          %v1090 = vsub.f32 %v834, 1.0
          %v1091 = vsub.f32 %v835, 1.0
          %v1092 = vsub.f32 %v836, 1.0
          %v1093 = vsub.f32 %v837, 1.0
          %v1094 = vsub.f32 %v838, 1.0
          %v1095 = vsub.f32 %v839, 1.0
          %v1096 = vmul.f32 %v1080, 1e+30
          %v1097 = vmul.f32 %v1081, 1e+30
          %v1098 = vmul.f32 %v1082, 1e+30
          %v1099 = vmul.f32 %v1083, 1e+30
          %v1100 = vmul.f32 %v1084, 1e+30
          %v1101 = vmul.f32 %v1085, 1e+30
          %v1102 = vmul.f32 %v1086, 1e+30
          %v1103 = vmul.f32 %v1087, 1e+30
          %v1104 = vmul.f32 %v1088, 1e+30
          %v1105 = vmul.f32 %v1089, 1e+30
          %v1106 = vmul.f32 %v1090, 1e+30
          %v1107 = vmul.f32 %v1091, 1e+30
          %v1108 = vmul.f32 %v1092, 1e+30
          %v1109 = vmul.f32 %v1093, 1e+30
          %v1110 = vmul.f32 %v1094, 1e+30
          %v1111 = vmul.f32 %v1095, 1e+30
          %v1112 = vlaneseq
          %v1113 = vshrl.u32 %v1112, 7
          %v1114 = vsub.s32 0, %v1113
          %v1115 = vrot.slane %v1078, %v1114
          %v1116 = vlaneseq
          %v1117 = vshrl.u32 %v1116, 7
          %v1118 = vsub.s32 0, %v1117
          %v1119 = vrot.slane %v1079, %v1118
          %v1120 = vmul.f32 %v1115, %v824
          %v1121 = vmul.f32 %v1119, %v825
          %v1122 = vmul.f32 %v1115, %v826
          %v1123 = vmul.f32 %v1119, %v827
          %v1124 = vmul.f32 %v1115, %v828
          %v1125 = vmul.f32 %v1119, %v829
          %v1126 = vmul.f32 %v1115, %v830
          %v1127 = vmul.f32 %v1119, %v831
          %v1128 = vmul.f32 %v1115, %v832
          %v1129 = vmul.f32 %v1119, %v833
          %v1130 = vmul.f32 %v1115, %v834
          %v1131 = vmul.f32 %v1119, %v835
          %v1132 = vmul.f32 %v1115, %v836
          %v1133 = vmul.f32 %v1119, %v837
          %v1134 = vmul.f32 %v1115, %v838
          %v1135 = vmul.f32 %v1119, %v839
          %v1136 = vadd.f32 %v1120, %v1096
          %v1137 = vadd.f32 %v1121, %v1097
          %v1138 = vadd.f32 %v1122, %v1098
          %v1139 = vadd.f32 %v1123, %v1099
          %v1140 = vadd.f32 %v1124, %v1100
          %v1141 = vadd.f32 %v1125, %v1101
          %v1142 = vadd.f32 %v1126, %v1102
          %v1143 = vadd.f32 %v1127, %v1103
          %v1144 = vadd.f32 %v1128, %v1104
          %v1145 = vadd.f32 %v1129, %v1105
          %v1146 = vadd.f32 %v1130, %v1106
          %v1147 = vadd.f32 %v1131, %v1107
          %v1148 = vadd.f32 %v1132, %v1108
          %v1149 = vadd.f32 %v1133, %v1109
          %v1150 = vadd.f32 %v1134, %v1110
          %v1151 = vadd.f32 %v1135, %v1111
          %v1152 = vmax.f32 %v1136, %v1137
          %1153 = vmax.xlane.f32.xlu0 %v1152
          %v1154 = vpop.xlane.xlu0 %1153
          %v1155 = vmax.f32 %v1138, %v1139
          %1156 = vmax.xlane.f32.xlu0 %v1155
          %v1157 = vpop.xlane.xlu0 %1156
          %v1158 = vmax.f32 %v1140, %v1141
          %1159 = vmax.xlane.f32.xlu0 %v1158
          %v1160 = vpop.xlane.xlu0 %1159
          %v1161 = vmax.f32 %v1142, %v1143
          %1162 = vmax.xlane.f32.xlu0 %v1161
          %v1163 = vpop.xlane.xlu0 %1162
          %v1164 = vmax.f32 %v1144, %v1145
          %1165 = vmax.xlane.f32.xlu0 %v1164
          %v1166 = vpop.xlane.xlu0 %1165
          %v1167 = vmax.f32 %v1146, %v1147
          %1168 = vmax.xlane.f32.xlu0 %v1167
          %v1169 = vpop.xlane.xlu0 %1168
          %v1170 = vmax.f32 %v1148, %v1149
          %1171 = vmax.xlane.f32.xlu0 %v1170
          %v1172 = vpop.xlane.xlu0 %1171
          %v1173 = vmax.f32 %v1150, %v1151
          %1174 = vmax.xlane.f32.xlu0 %v1173
          %v1175 = vpop.xlane.xlu0 %1174
          %v1176 = vlaneseq
          %v1177 = vshrl.u32 %v1176, 7
          %v1178 = vsub.s32 1, %v1177
          %v1179 = vrot.slane %v1078, %v1178
          %v1180 = vlaneseq
          %v1181 = vshrl.u32 %v1180, 7
          %v1182 = vsub.s32 1, %v1181
          %v1183 = vrot.slane %v1079, %v1182
          %v1184 = vmul.f32 %v1179, %v824
          %v1185 = vmul.f32 %v1183, %v825
          %v1186 = vmul.f32 %v1179, %v826
          %v1187 = vmul.f32 %v1183, %v827
          %v1188 = vmul.f32 %v1179, %v828
          %v1189 = vmul.f32 %v1183, %v829
          %v1190 = vmul.f32 %v1179, %v830
          %v1191 = vmul.f32 %v1183, %v831
          %v1192 = vmul.f32 %v1179, %v832
          %v1193 = vmul.f32 %v1183, %v833
          %v1194 = vmul.f32 %v1179, %v834
          %v1195 = vmul.f32 %v1183, %v835
          %v1196 = vmul.f32 %v1179, %v836
          %v1197 = vmul.f32 %v1183, %v837
          %v1198 = vmul.f32 %v1179, %v838
          %v1199 = vmul.f32 %v1183, %v839
          %v1200 = vadd.f32 %v1184, %v1096
          %v1201 = vadd.f32 %v1185, %v1097
          %v1202 = vadd.f32 %v1186, %v1098
          %v1203 = vadd.f32 %v1187, %v1099
          %v1204 = vadd.f32 %v1188, %v1100
          %v1205 = vadd.f32 %v1189, %v1101
          %v1206 = vadd.f32 %v1190, %v1102
          %v1207 = vadd.f32 %v1191, %v1103
          %v1208 = vadd.f32 %v1192, %v1104
          %v1209 = vadd.f32 %v1193, %v1105
          %v1210 = vadd.f32 %v1194, %v1106
          %v1211 = vadd.f32 %v1195, %v1107
          %v1212 = vadd.f32 %v1196, %v1108
          %v1213 = vadd.f32 %v1197, %v1109
          %v1214 = vadd.f32 %v1198, %v1110
          %v1215 = vadd.f32 %v1199, %v1111
          %v1216 = vmax.f32 %v1200, %v1201
          %1217 = vmax.xlane.f32.xlu0 %v1216
          %v1218 = vpop.xlane.xlu0 %1217
          %v1219 = vmax.f32 %v1202, %v1203
          %1220 = vmax.xlane.f32.xlu0 %v1219
          %v1221 = vpop.xlane.xlu0 %1220
          %v1222 = vmax.f32 %v1204, %v1205
          %1223 = vmax.xlane.f32.xlu0 %v1222
          %v1224 = vpop.xlane.xlu0 %1223
          %v1225 = vmax.f32 %v1206, %v1207
          %1226 = vmax.xlane.f32.xlu0 %v1225
          %v1227 = vpop.xlane.xlu0 %1226
          %v1228 = vmax.f32 %v1208, %v1209
          %1229 = vmax.xlane.f32.xlu0 %v1228
          %v1230 = vpop.xlane.xlu0 %1229
          %v1231 = vmax.f32 %v1210, %v1211
          %1232 = vmax.xlane.f32.xlu0 %v1231
          %v1233 = vpop.xlane.xlu0 %1232
          %v1234 = vmax.f32 %v1212, %v1213
          %1235 = vmax.xlane.f32.xlu0 %v1234
          %v1236 = vpop.xlane.xlu0 %1235
          %v1237 = vmax.f32 %v1214, %v1215
          %1238 = vmax.xlane.f32.xlu0 %v1237
          %v1239 = vpop.xlane.xlu0 %1238
          %v1240 = vlaneseq
          %v1241 = vshrl.u32 %v1240, 7
          %v1242 = vsub.s32 2, %v1241
          %v1243 = vrot.slane %v1078, %v1242
          %v1244 = vlaneseq
          %v1245 = vshrl.u32 %v1244, 7
          %v1246 = vsub.s32 2, %v1245
          %v1247 = vrot.slane %v1079, %v1246
          %v1248 = vmul.f32 %v1243, %v824
          %v1249 = vmul.f32 %v1247, %v825
          %v1250 = vmul.f32 %v1243, %v826
          %v1251 = vmul.f32 %v1247, %v827
          %v1252 = vmul.f32 %v1243, %v828
          %v1253 = vmul.f32 %v1247, %v829
          %v1254 = vmul.f32 %v1243, %v830
          %v1255 = vmul.f32 %v1247, %v831
          %v1256 = vmul.f32 %v1243, %v832
          %v1257 = vmul.f32 %v1247, %v833
          %v1258 = vmul.f32 %v1243, %v834
          %v1259 = vmul.f32 %v1247, %v835
          %v1260 = vmul.f32 %v1243, %v836
          %v1261 = vmul.f32 %v1247, %v837
          %v1262 = vmul.f32 %v1243, %v838
          %v1263 = vmul.f32 %v1247, %v839
          %v1264 = vadd.f32 %v1248, %v1096
          %v1265 = vadd.f32 %v1249, %v1097
          %v1266 = vadd.f32 %v1250, %v1098
          %v1267 = vadd.f32 %v1251, %v1099
          %v1268 = vadd.f32 %v1252, %v1100
          %v1269 = vadd.f32 %v1253, %v1101
          %v1270 = vadd.f32 %v1254, %v1102
          %v1271 = vadd.f32 %v1255, %v1103
          %v1272 = vadd.f32 %v1256, %v1104
          %v1273 = vadd.f32 %v1257, %v1105
          %v1274 = vadd.f32 %v1258, %v1106
          %v1275 = vadd.f32 %v1259, %v1107
          %v1276 = vadd.f32 %v1260, %v1108
          %v1277 = vadd.f32 %v1261, %v1109
          %v1278 = vadd.f32 %v1262, %v1110
          %v1279 = vadd.f32 %v1263, %v1111
          %v1280 = vmax.f32 %v1264, %v1265
          %1281 = vmax.xlane.f32.xlu0 %v1280
          %v1282 = vpop.xlane.xlu0 %1281
          %v1283 = vmax.f32 %v1266, %v1267
          %1284 = vmax.xlane.f32.xlu0 %v1283
          %v1285 = vpop.xlane.xlu0 %1284
          %v1286 = vmax.f32 %v1268, %v1269
          %1287 = vmax.xlane.f32.xlu0 %v1286
          %v1288 = vpop.xlane.xlu0 %1287
          %v1289 = vmax.f32 %v1270, %v1271
          %1290 = vmax.xlane.f32.xlu0 %v1289
          %v1291 = vpop.xlane.xlu0 %1290
          %v1292 = vmax.f32 %v1272, %v1273
          %1293 = vmax.xlane.f32.xlu0 %v1292
          %v1294 = vpop.xlane.xlu0 %1293
          %v1295 = vmax.f32 %v1274, %v1275
          %1296 = vmax.xlane.f32.xlu0 %v1295
          %v1297 = vpop.xlane.xlu0 %1296
          %v1298 = vmax.f32 %v1276, %v1277
          %1299 = vmax.xlane.f32.xlu0 %v1298
          %v1300 = vpop.xlane.xlu0 %1299
          %v1301 = vmax.f32 %v1278, %v1279
          %1302 = vmax.xlane.f32.xlu0 %v1301
          %v1303 = vpop.xlane.xlu0 %1302
          %v1304 = vlaneseq
          %v1305 = vshrl.u32 %v1304, 7
          %v1306 = vsub.s32 3, %v1305
          %v1307 = vrot.slane %v1078, %v1306
          %v1308 = vlaneseq
          %v1309 = vshrl.u32 %v1308, 7
          %v1310 = vsub.s32 3, %v1309
          %v1311 = vrot.slane %v1079, %v1310
          %v1312 = vmul.f32 %v1307, %v824
          %v1313 = vmul.f32 %v1311, %v825
          %v1314 = vmul.f32 %v1307, %v826
          %v1315 = vmul.f32 %v1311, %v827
          %v1316 = vmul.f32 %v1307, %v828
          %v1317 = vmul.f32 %v1311, %v829
          %v1318 = vmul.f32 %v1307, %v830
          %v1319 = vmul.f32 %v1311, %v831
          %v1320 = vmul.f32 %v1307, %v832
          %v1321 = vmul.f32 %v1311, %v833
          %v1322 = vmul.f32 %v1307, %v834
          %v1323 = vmul.f32 %v1311, %v835
          %v1324 = vmul.f32 %v1307, %v836
          %v1325 = vmul.f32 %v1311, %v837
          %v1326 = vmul.f32 %v1307, %v838
          %v1327 = vmul.f32 %v1311, %v839
          %v1328 = vadd.f32 %v1312, %v1096
          %v1329 = vadd.f32 %v1313, %v1097
          %v1330 = vadd.f32 %v1314, %v1098
          %v1331 = vadd.f32 %v1315, %v1099
          %v1332 = vadd.f32 %v1316, %v1100
          %v1333 = vadd.f32 %v1317, %v1101
          %v1334 = vadd.f32 %v1318, %v1102
          %v1335 = vadd.f32 %v1319, %v1103
          %v1336 = vadd.f32 %v1320, %v1104
          %v1337 = vadd.f32 %v1321, %v1105
          %v1338 = vadd.f32 %v1322, %v1106
          %v1339 = vadd.f32 %v1323, %v1107
          %v1340 = vadd.f32 %v1324, %v1108
          %v1341 = vadd.f32 %v1325, %v1109
          %v1342 = vadd.f32 %v1326, %v1110
          %v1343 = vadd.f32 %v1327, %v1111
          %v1344 = vmax.f32 %v1328, %v1329
          %1345 = vmax.xlane.f32.xlu0 %v1344
          %v1346 = vpop.xlane.xlu0 %1345
          %v1347 = vmax.f32 %v1330, %v1331
          %1348 = vmax.xlane.f32.xlu0 %v1347
          %v1349 = vpop.xlane.xlu0 %1348
          %v1350 = vmax.f32 %v1332, %v1333
          %1351 = vmax.xlane.f32.xlu0 %v1350
          %v1352 = vpop.xlane.xlu0 %1351
          %v1353 = vmax.f32 %v1334, %v1335
          %1354 = vmax.xlane.f32.xlu0 %v1353
          %v1355 = vpop.xlane.xlu0 %1354
          %v1356 = vmax.f32 %v1336, %v1337
          %1357 = vmax.xlane.f32.xlu0 %v1356
          %v1358 = vpop.xlane.xlu0 %1357
          %v1359 = vmax.f32 %v1338, %v1339
          %1360 = vmax.xlane.f32.xlu0 %v1359
          %v1361 = vpop.xlane.xlu0 %1360
          %v1362 = vmax.f32 %v1340, %v1341
          %1363 = vmax.xlane.f32.xlu0 %v1362
          %v1364 = vpop.xlane.xlu0 %1363
          %v1365 = vmax.f32 %v1342, %v1343
          %1366 = vmax.xlane.f32.xlu0 %v1365
          %v1367 = vpop.xlane.xlu0 %1366
          %vm1368 = vcmask 7168
          %v1369 = vsel %vm1368, %v1154, %v1218
          %v1370 = vsel %vm1368, %v1157, %v1221
          %v1371 = vsel %vm1368, %v1160, %v1224
          %v1372 = vsel %vm1368, %v1163, %v1227
          %v1373 = vsel %vm1368, %v1166, %v1230
          %v1374 = vsel %vm1368, %v1169, %v1233
          %v1375 = vsel %vm1368, %v1172, %v1236
          %v1376 = vsel %vm1368, %v1175, %v1239
          %vm1377 = vcmask 15360
          %v1378 = vsel %vm1377, %v1369, %v1282
          %v1379 = vsel %vm1377, %v1370, %v1285
          %v1380 = vsel %vm1377, %v1371, %v1288
          %v1381 = vsel %vm1377, %v1372, %v1291
          %v1382 = vsel %vm1377, %v1373, %v1294
          %v1383 = vsel %vm1377, %v1374, %v1297
          %v1384 = vsel %vm1377, %v1375, %v1300
          %v1385 = vsel %vm1377, %v1376, %v1303
          %vm1386 = vcmask 23552
          %v1387 = vsel %vm1386, %v1378, %v1346
          %v1388 = vsel %vm1386, %v1379, %v1349
          %v1389 = vsel %vm1386, %v1380, %v1352
          %v1390 = vsel %vm1386, %v1381, %v1355
          %v1391 = vsel %vm1386, %v1382, %v1358
          %v1392 = vsel %vm1386, %v1383, %v1361
          %v1393 = vsel %vm1386, %v1384, %v1364
          %v1394 = vsel %vm1386, %v1385, %v1367
          %1403 = vrot.lane.b32.xlu0 %v1387, 8
          %v1404 = vpop.permute.xlu0 %1403
          %1405 = vrot.lane.b32.xlu0 %v1388, 8
          %v1406 = vpop.permute.xlu0 %1405
          %1407 = vrot.lane.b32.xlu0 %v1389, 8
          %v1408 = vpop.permute.xlu0 %1407
          %1409 = vrot.lane.b32.xlu0 %v1390, 8
          %v1410 = vpop.permute.xlu0 %1409
          %1411 = vrot.lane.b32.xlu0 %v1391, 8
          %v1412 = vpop.permute.xlu0 %1411
          %1413 = vrot.lane.b32.xlu0 %v1392, 8
          %v1414 = vpop.permute.xlu0 %1413
          %1415 = vrot.lane.b32.xlu0 %v1393, 8
          %v1416 = vpop.permute.xlu0 %1415
          %1417 = vrot.lane.b32.xlu0 %v1394, 8
          %v1418 = vpop.permute.xlu0 %1417
          %v1427 = vmax.f32 %v958, %v1404
          %v1428 = vmax.f32 %v959, %v1406
          %v1429 = vmax.f32 %v960, %v1408
          %v1430 = vmax.f32 %v961, %v1410
          %v1431 = vmax.f32 %v962, %v1412
          %v1432 = vmax.f32 %v963, %v1414
          %v1433 = vmax.f32 %v964, %v1416
          %v1434 = vmax.f32 %v965, %v1418
          %1443 = vrot.lane.b32.xlu0 %v1427, 120
          %v1444 = vpop.permute.xlu0 %1443
          %1445 = vrot.lane.b32.xlu0 %v1428, 120
          %v1446 = vpop.permute.xlu0 %1445
          %1447 = vrot.lane.b32.xlu0 %v1429, 120
          %v1448 = vpop.permute.xlu0 %1447
          %1449 = vrot.lane.b32.xlu0 %v1430, 120
          %v1450 = vpop.permute.xlu0 %1449
          %1451 = vrot.lane.b32.xlu0 %v1431, 120
          %v1452 = vpop.permute.xlu0 %1451
          %1453 = vrot.lane.b32.xlu0 %v1432, 120
          %v1454 = vpop.permute.xlu0 %1453
          %1455 = vrot.lane.b32.xlu0 %v1433, 120
          %v1456 = vpop.permute.xlu0 %1455
          %1457 = vrot.lane.b32.xlu0 %v1434, 120
          %v1458 = vpop.permute.xlu0 %1457
          %1467 = vxpose.xlu0.b32.start [1/16] %v1444, 128
          %1468 = vxpose.xlu0.b32.cont [2/16] %v1446, 128
          %1469 = vxpose.xlu0.b32.cont [3/16] %v1448, 128
          %1470 = vxpose.xlu0.b32.cont [4/16] %v1450, 128
          %1471 = vxpose.xlu0.b32.cont [5/16] %v1452, 128
          %1472 = vxpose.xlu0.b32.cont [6/16] %v1454, 128
          %1473 = vxpose.xlu0.b32.cont [7/16] %v1456, 128
          %1474 = vxpose.xlu0.b32.cont [8/16] %v1458, 128
          %1475 = vxpose.xlu0.b32.cont [9/16] 0.0, 128
          %1476 = vxpose.xlu0.b32.cont [10/16] 0.0, 128
          %1477 = vxpose.xlu0.b32.cont [11/16] 0.0, 128
          %1478 = vxpose.xlu0.b32.cont [12/16] 0.0, 128
          %1479 = vxpose.xlu0.b32.cont [13/16] 0.0, 128
          %1480 = vxpose.xlu0.b32.cont [14/16] 0.0, 128
          %1481 = vxpose.xlu0.b32.cont [15/16] 0.0, 128
          %1482 = vxpose.xlu0.b32.end [16/16] 0.0, 128
          %v1483 = vpop.trf.xlu0
          %v1484 = vpop.trf.xlu0
          %v1485 = vpop.trf.xlu0
          %v1486 = vpop.trf.xlu0
          %v1487 = vpop.trf.xlu0
          %v1488 = vpop.trf.xlu0
          %v1489 = vpop.trf.xlu0
          %v1490 = vpop.trf.xlu0
          %v1491 = vpop.trf.xlu0
          %v1492 = vpop.trf.xlu0
          %v1493 = vpop.trf.xlu0
          %v1494 = vpop.trf.xlu0
          %v1495 = vpop.trf.xlu0
          %v1496 = vpop.trf.xlu0
          %v1497 = vpop.trf.xlu0
          %v1498 = vpop.trf.xlu0
          %v1500 = vsel %vm880, %v1483, 0
          %1502 = vmatprep.subr.mxu0 %v825
          %1503 = vmatpush1.msra.mxu0 %v824
          %1504 = vmatprep.subr.mxu0 %v827
          %1505 = vmatpush1.msra.mxu0 %v826
          %1506 = vmatprep.subr.mxu0 %v829
          %1507 = vmatpush1.msra.mxu0 %v828
          %1508 = vmatprep.subr.mxu0 %v831
          %1509 = vmatpush1.msra.mxu0 %v830
          %1510 = vmatprep.subr.mxu0 %v833
          %1511 = vmatpush1.msra.mxu0 %v832
          %1512 = vmatprep.subr.mxu0 %v835
          %1513 = vmatpush1.msra.mxu0 %v834
          %1514 = vmatprep.subr.mxu0 %v837
          %1515 = vmatpush1.msra.mxu0 %v836
          %1516 = vmatprep.subr.mxu0 %v839
          %1517 = vmatpush1.msra.mxu0 %v838
          %1518 = vmatprep.subr.mxu0 0.0
          %1519 = vmatpush1.msra.mxu0 0.0
          %1520 = vmatprep.subr.mxu0 0.0
          %1521 = vmatpush1.msra.mxu0 0.0
          %1522 = vmatprep.subr.mxu0 0.0
          %1523 = vmatpush1.msra.mxu0 0.0
          %1524 = vmatprep.subr.mxu0 0.0
          %1525 = vmatpush1.msra.mxu0 0.0
          %1526 = vmatprep.subr.mxu0 0.0
          %1527 = vmatpush1.msra.mxu0 0.0
          %1528 = vmatprep.subr.mxu0 0.0
          %1529 = vmatpush1.msra.mxu0 0.0
          %1530 = vmatprep.subr.mxu0 0.0
          %1531 = vmatpush1.msra.mxu0 0.0
          %1532 = vmatprep.subr.mxu0 0.0
          %1533 = vmatpush1.msra.mxu0 0.0
          %1534 = vmatprep.subr.mxu0 0.0
          %1535 = vmatpush1.msra.mxu0 0.0
          %1536 = vmatprep.subr.mxu0 0.0
          %1537 = vmatpush1.msra.mxu0 0.0
          %1538 = vmatprep.subr.mxu0 0.0
          %1539 = vmatpush1.msra.mxu0 0.0
          %1540 = vmatprep.subr.mxu0 0.0
          %1541 = vmatpush1.msra.mxu0 0.0
          %1542 = vmatprep.subr.mxu0 0.0
          %1543 = vmatpush1.msra.mxu0 0.0
          %1544 = vmatprep.subr.mxu0 0.0
          %1545 = vmatpush1.msra.mxu0 0.0
          %1546 = vmatprep.subr.mxu0 0.0
          %1547 = vmatpush1.msra.mxu0 0.0
          %1548 = vmatprep.subr.mxu0 0.0
          %1549 = vmatpush1.msra.mxu0 0.0
          %1550 = vmatprep.subr.mxu0 0.0
          %1551 = vmatpush1.msra.mxu0 0.0
          %1552 = vmatprep.subr.mxu0 0.0
          %1553 = vmatpush1.msra.mxu0 0.0
          %1554 = vmatprep.subr.mxu0 0.0
          %1555 = vmatpush1.msra.mxu0 0.0
          %1556 = vmatprep.subr.mxu0 0.0
          %1557 = vmatpush1.msra.mxu0 0.0
          %1558 = vmatprep.subr.mxu0 0.0
          %1559 = vmatpush1.msra.mxu0 0.0
          %1560 = vmatprep.subr.mxu0 0.0
          %1561 = vmatpush1.msra.mxu0 0.0
          %1562 = vmatprep.subr.mxu0 0.0
          %1563 = vmatpush1.msra.mxu0 0.0
          %1564 = vmatprep.subr.mxu0 0.0
          %1565 = vmatpush1.msra.mxu0 0.0
          %1566 = vmatprep.mubr.f32.mxu0 0.0
          %1567 = vmatmul.mubr.f32.gmra.mrb[0].mxu0 %v1500
          %v1568 = vpop.f32.mrb[0].mxu0
          %v1569 = vadd.f32 0.0, %v1568
          %v1570 = vpop.f32.mrb[0].mxu0
          %v1571 = vadd.f32 0.0, %v1570
          %1572 = vdwg.mxu0
          %v1573 = vsub.f32 %v1078, %v1569
          %v1574 = vsub.f32 %v1079, %v1571
          %v1575 = vmul.f32 %v1573, 1.442695
          %v1576 = vpow.pop %v1575
          %v1577 = vmul.f32 %v1574, 1.442695
          %v1578 = vpow.pop %v1577
          %1579 = vmatprep.subr.mxu0 %v1578
          %1580 = vmatpush1.xpose.msra.mxu0 %v1576
          %1581 = vmatprep.subr.mxu0 0.0
          %1582 = vmatpush1.xpose.msra.mxu0 0.0
          %1583 = vmatprep.subr.mxu0 0.0
          %1584 = vmatpush1.xpose.msra.mxu0 0.0
          %1585 = vmatprep.subr.mxu0 0.0
          %1586 = vmatpush1.xpose.msra.mxu0 0.0
          %1587 = vmatprep.subr.mxu0 0.0
          %1588 = vmatpush1.xpose.msra.mxu0 0.0
          %1589 = vmatprep.subr.mxu0 0.0
          %1590 = vmatpush1.xpose.msra.mxu0 0.0
          %1591 = vmatprep.subr.mxu0 0.0
          %1592 = vmatpush1.xpose.msra.mxu0 0.0
          %1593 = vmatprep.subr.mxu0 0.0
          %1594 = vmatpush1.xpose.msra.mxu0 0.0
          %1595 = vmatprep.subr.mxu0 0.0
          %1596 = vmatpush1.xpose.msra.mxu0 0.0
          %1597 = vmatprep.subr.mxu0 0.0
          %1598 = vmatpush1.xpose.msra.mxu0 0.0
          %1599 = vmatprep.subr.mxu0 0.0
          %1600 = vmatpush1.xpose.msra.mxu0 0.0
          %1601 = vmatprep.subr.mxu0 0.0
          %1602 = vmatpush1.xpose.msra.mxu0 0.0
          %1603 = vmatprep.subr.mxu0 0.0
          %1604 = vmatpush1.xpose.msra.mxu0 0.0
          %1605 = vmatprep.subr.mxu0 0.0
          %1606 = vmatpush1.xpose.msra.mxu0 0.0
          %1607 = vmatprep.subr.mxu0 0.0
          %1608 = vmatpush1.xpose.msra.mxu0 0.0
          %1609 = vmatprep.subr.mxu0 0.0
          %1610 = vmatpush1.xpose.msra.mxu0 0.0
          %1611 = vmatprep.subr.mxu0 0.0
          %1612 = vmatpush1.xpose.msra.mxu0 0.0
          %1613 = vmatprep.subr.mxu0 0.0
          %1614 = vmatpush1.xpose.msra.mxu0 0.0
          %1615 = vmatprep.subr.mxu0 0.0
          %1616 = vmatpush1.xpose.msra.mxu0 0.0
          %1617 = vmatprep.subr.mxu0 0.0
          %1618 = vmatpush1.xpose.msra.mxu0 0.0
          %1619 = vmatprep.subr.mxu0 0.0
          %1620 = vmatpush1.xpose.msra.mxu0 0.0
          %1621 = vmatprep.subr.mxu0 0.0
          %1622 = vmatpush1.xpose.msra.mxu0 0.0
          %1623 = vmatprep.subr.mxu0 0.0
          %1624 = vmatpush1.xpose.msra.mxu0 0.0
          %1625 = vmatprep.subr.mxu0 0.0
          %1626 = vmatpush1.xpose.msra.mxu0 0.0
          %1627 = vmatprep.subr.mxu0 0.0
          %1628 = vmatpush1.xpose.msra.mxu0 0.0
          %1629 = vmatprep.subr.mxu0 0.0
          %1630 = vmatpush1.xpose.msra.mxu0 0.0
          %1631 = vmatprep.subr.mxu0 0.0
          %1632 = vmatpush1.xpose.msra.mxu0 0.0
          %1633 = vmatprep.subr.mxu0 0.0
          %1634 = vmatpush1.xpose.msra.mxu0 0.0
          %1635 = vmatprep.subr.mxu0 0.0
          %1636 = vmatpush1.xpose.msra.mxu0 0.0
          %1637 = vmatprep.subr.mxu0 0.0
          %1638 = vmatpush1.xpose.msra.mxu0 0.0
          %1639 = vmatprep.subr.mxu0 0.0
          %1640 = vmatpush1.xpose.msra.mxu0 0.0
          %1641 = vmatprep.subr.mxu0 0.0
          %1642 = vmatpush1.xpose.msra.mxu0 0.0
          %1643 = vmatprep.mubr.f32.mxu0 %v825
          %1644 = vmatmul.mubr.f32.gmra.mrb[0].mxu0 %v824
          %v1645 = vpop.f32.mrb[0].mxu0
          %v1646 = vadd.f32 0.0, %v1645
          %v1647 = vpop.f32.mrb[0].mxu0
          %1648 = vmatprep.mubr.f32.mxu0 %v827
          %1649 = vmatmul.mubr.f32.gmra.mrb[0].mxu0 %v826
          %v1650 = vpop.f32.mrb[0].mxu0
          %v1651 = vadd.f32 0.0, %v1650
          %v1652 = vpop.f32.mrb[0].mxu0
          %1653 = vmatprep.mubr.f32.mxu0 %v829
          %1654 = vmatmul.mubr.f32.gmra.mrb[0].mxu0 %v828
          %v1655 = vpop.f32.mrb[0].mxu0
          %v1656 = vadd.f32 0.0, %v1655
          %v1657 = vpop.f32.mrb[0].mxu0
          %1658 = vmatprep.mubr.f32.mxu0 %v831
          %1659 = vmatmul.mubr.f32.gmra.mrb[0].mxu0 %v830
          %v1660 = vpop.f32.mrb[0].mxu0
          %v1661 = vadd.f32 0.0, %v1660
          %v1662 = vpop.f32.mrb[0].mxu0
          %1663 = vmatprep.mubr.f32.mxu0 %v833
          %1664 = vmatmul.mubr.f32.gmra.mrb[0].mxu0 %v832
          %v1665 = vpop.f32.mrb[0].mxu0
          %v1666 = vadd.f32 0.0, %v1665
          %v1667 = vpop.f32.mrb[0].mxu0
          %1668 = vmatprep.mubr.f32.mxu0 %v835
          %1669 = vmatmul.mubr.f32.gmra.mrb[0].mxu0 %v834
          %v1670 = vpop.f32.mrb[0].mxu0
          %v1671 = vadd.f32 0.0, %v1670
          %v1672 = vpop.f32.mrb[0].mxu0
          %1673 = vmatprep.mubr.f32.mxu0 %v837
          %1674 = vmatmul.mubr.f32.gmra.mrb[0].mxu0 %v836
          %v1675 = vpop.f32.mrb[0].mxu0
          %v1676 = vadd.f32 0.0, %v1675
          %v1677 = vpop.f32.mrb[0].mxu0
          %1678 = vmatprep.mubr.f32.mxu0 %v839
          %1679 = vmatmul.mubr.f32.gmra.mrb[0].mxu0 %v838
          %v1680 = vpop.f32.mrb[0].mxu0
          %v1681 = vadd.f32 0.0, %v1680
          %v1682 = vpop.f32.mrb[0].mxu0
          %1683 = vdwg.mxu0
          %v1684 = vsub.f32 %v958, %v1427
          %v1685 = vsub.f32 %v959, %v1428
          %v1686 = vsub.f32 %v960, %v1429
          %v1687 = vsub.f32 %v961, %v1430
          %v1688 = vsub.f32 %v962, %v1431
          %v1689 = vsub.f32 %v963, %v1432
          %v1690 = vsub.f32 %v964, %v1433
          %v1691 = vsub.f32 %v965, %v1434
          %v1692 = vmul.f32 %v1684, 1.442695
          %v1693 = vpow.pop %v1692
          %v1694 = vmul.f32 %v1685, 1.442695
          %v1695 = vpow.pop %v1694
          %v1696 = vmul.f32 %v1686, 1.442695
          %v1697 = vpow.pop %v1696
          %v1698 = vmul.f32 %v1687, 1.442695
          %v1699 = vpow.pop %v1698
          %v1700 = vmul.f32 %v1688, 1.442695
          %v1701 = vpow.pop %v1700
          %v1702 = vmul.f32 %v1689, 1.442695
          %v1703 = vpow.pop %v1702
          %v1704 = vmul.f32 %v1690, 1.442695
          %v1705 = vpow.pop %v1704
          %v1706 = vmul.f32 %v1691, 1.442695
          %v1707 = vpow.pop %v1706
          %1716 = vrot.lane.b32.xlu0 %v958, 120
          %v1717 = vpop.permute.xlu0 %1716
          %1718 = vrot.lane.b32.xlu0 %v959, 120
          %v1719 = vpop.permute.xlu0 %1718
          %1720 = vrot.lane.b32.xlu0 %v960, 120
          %v1721 = vpop.permute.xlu0 %1720
          %1722 = vrot.lane.b32.xlu0 %v961, 120
          %v1723 = vpop.permute.xlu0 %1722
          %1724 = vrot.lane.b32.xlu0 %v962, 120
          %v1725 = vpop.permute.xlu0 %1724
          %1726 = vrot.lane.b32.xlu0 %v963, 120
          %v1727 = vpop.permute.xlu0 %1726
          %1728 = vrot.lane.b32.xlu0 %v964, 120
          %v1729 = vpop.permute.xlu0 %1728
          %1730 = vrot.lane.b32.xlu0 %v965, 120
          %v1731 = vpop.permute.xlu0 %1730
          %v1740 = vmul.f32 %v1693, %v1717
          %v1741 = vmul.f32 %v1695, %v1719
          %v1742 = vmul.f32 %v1697, %v1721
          %v1743 = vmul.f32 %v1699, %v1723
          %v1744 = vmul.f32 %v1701, %v1725
          %v1745 = vmul.f32 %v1703, %v1727
          %v1746 = vmul.f32 %v1705, %v1729
          %v1747 = vmul.f32 %v1707, %v1731
          %1756 = vrot.lane.b32.xlu0 %v1646, 8
          %v1757 = vpop.permute.xlu0 %1756
          %1758 = vrot.lane.b32.xlu0 %v1651, 8
          %v1759 = vpop.permute.xlu0 %1758
          %1760 = vrot.lane.b32.xlu0 %v1656, 8
          %v1761 = vpop.permute.xlu0 %1760
          %1762 = vrot.lane.b32.xlu0 %v1661, 8
          %v1763 = vpop.permute.xlu0 %1762
          %1764 = vrot.lane.b32.xlu0 %v1666, 8
          %v1765 = vpop.permute.xlu0 %1764
          %1766 = vrot.lane.b32.xlu0 %v1671, 8
          %v1767 = vpop.permute.xlu0 %1766
          %1768 = vrot.lane.b32.xlu0 %v1676, 8
          %v1769 = vpop.permute.xlu0 %1768
          %1770 = vrot.lane.b32.xlu0 %v1681, 8
          %v1771 = vpop.permute.xlu0 %1770
          %v1780 = vadd.f32 %v1740, %v1757
          %v1781 = vadd.f32 %v1741, %v1759
          %v1782 = vadd.f32 %v1742, %v1761
          %v1783 = vadd.f32 %v1743, %v1763
          %v1784 = vadd.f32 %v1744, %v1765
          %v1785 = vadd.f32 %v1745, %v1767
          %v1786 = vadd.f32 %v1746, %v1769
          %v1787 = vadd.f32 %v1747, %v1771
          %vm1788 = vcmask 97344
          %1789 = vst.msk [vmem:[#allocation4] sm:$0xff] %vm1788, %v1427
          %1790 = vst.msk [vmem:[#allocation4 + $0x8] sm:$0xff] %vm1788, %v1428
          %1791 = vst.msk [vmem:[#allocation4 + $0x10] sm:$0xff] %vm1788, %v1429
          %1792 = vst.msk [vmem:[#allocation4 + $0x18] sm:$0xff] %vm1788, %v1430
          %1793 = vst.msk [vmem:[#allocation4 + $0x20] sm:$0xff] %vm1788, %v1431
          %1794 = vst.msk [vmem:[#allocation4 + $0x28] sm:$0xff] %vm1788, %v1432
          %1795 = vst.msk [vmem:[#allocation4 + $0x30] sm:$0xff] %vm1788, %v1433
          %1796 = vst.msk [vmem:[#allocation4 + $0x38] sm:$0xff] %vm1788, %v1434
          %1805 = vrot.lane.b32.xlu0 %v1780, 8
          %v1806 = vpop.permute.xlu0 %1805
          %1807 = vrot.lane.b32.xlu0 %v1781, 8
          %v1808 = vpop.permute.xlu0 %1807
          %1809 = vrot.lane.b32.xlu0 %v1782, 8
          %v1810 = vpop.permute.xlu0 %1809
          %1811 = vrot.lane.b32.xlu0 %v1783, 8
          %v1812 = vpop.permute.xlu0 %1811
          %1813 = vrot.lane.b32.xlu0 %v1784, 8
          %v1814 = vpop.permute.xlu0 %1813
          %1815 = vrot.lane.b32.xlu0 %v1785, 8
          %v1816 = vpop.permute.xlu0 %1815
          %1817 = vrot.lane.b32.xlu0 %v1786, 8
          %v1818 = vpop.permute.xlu0 %1817
          %1819 = vrot.lane.b32.xlu0 %v1787, 8
          %v1820 = vpop.permute.xlu0 %1819
          %vm1829 = vcmask 162944
          %1830 = vst.msk [vmem:[#allocation4] sm:$0xff] %vm1829, %v1806
          %1831 = vst.msk [vmem:[#allocation4 + $0x8] sm:$0xff] %vm1829, %v1808
          %1832 = vst.msk [vmem:[#allocation4 + $0x10] sm:$0xff] %vm1829, %v1810
          %1833 = vst.msk [vmem:[#allocation4 + $0x18] sm:$0xff] %vm1829, %v1812
          %1834 = vst.msk [vmem:[#allocation4 + $0x20] sm:$0xff] %vm1829, %v1814
          %1835 = vst.msk [vmem:[#allocation4 + $0x28] sm:$0xff] %vm1829, %v1816
          %1836 = vst.msk [vmem:[#allocation4 + $0x30] sm:$0xff] %vm1829, %v1818
          %1837 = vst.msk [vmem:[#allocation4 + $0x38] sm:$0xff] %vm1829, %v1820
          %p1838 = scmp.eq.s32.totalorder %s23, 1
          // Predicated region
          $region53: #{tpu_custom_call.1} parent=51 // pred_check
            %p1839 = pneg %p1838
          $region54: #{tpu_custom_call.1} parent=51 // pred_check_branch
            %1841 = sbr.rel (%p1839) target = $region56
          $region55: #{tpu_custom_call.1} parent=51 // pred_region
            %v1842 = vld [vmem:[#allocation4] sm:$0xff]
            %v1843 = vld [vmem:[#allocation4 + $0x8] sm:$0xff]
            %v1844 = vld [vmem:[#allocation4 + $0x10] sm:$0xff]
            %v1845 = vld [vmem:[#allocation4 + $0x18] sm:$0xff]
            %v1846 = vld [vmem:[#allocation4 + $0x20] sm:$0xff]
            %v1847 = vld [vmem:[#allocation4 + $0x28] sm:$0xff]
            %v1848 = vld [vmem:[#allocation4 + $0x30] sm:$0xff]
            %v1849 = vld [vmem:[#allocation4 + $0x38] sm:$0xff]
            %v1850 = vadd.f32 %v1842, 1e-16
            %v1851 = vadd.f32 %v1843, 1e-16
            %v1852 = vadd.f32 %v1844, 1e-16
            %v1853 = vadd.f32 %v1845, 1e-16
            %v1854 = vadd.f32 %v1846, 1e-16
            %v1855 = vadd.f32 %v1847, 1e-16
            %v1856 = vadd.f32 %v1848, 1e-16
            %v1857 = vadd.f32 %v1849, 1e-16
            %v1858 = vrcp.pop %v1850
            %v1859 = vrcp.pop %v1851
            %v1860 = vrcp.pop %v1852
            %v1861 = vrcp.pop %v1853
            %v1862 = vrcp.pop %v1854
            %v1863 = vrcp.pop %v1855
            %v1864 = vrcp.pop %v1856
            %v1865 = vrcp.pop %v1857
            %1866 = vst.msk [vmem:[#allocation4] sm:$0xff] %vm1829, %v1858
            %1867 = vst.msk [vmem:[#allocation4 + $0x8] sm:$0xff] %vm1829, %v1859
            %1868 = vst.msk [vmem:[#allocation4 + $0x10] sm:$0xff] %vm1829, %v1860
            %1869 = vst.msk [vmem:[#allocation4 + $0x18] sm:$0xff] %vm1829, %v1861
            %1870 = vst.msk [vmem:[#allocation4 + $0x20] sm:$0xff] %vm1829, %v1862
            %1871 = vst.msk [vmem:[#allocation4 + $0x28] sm:$0xff] %vm1829, %v1863
            %1872 = vst.msk [vmem:[#allocation4 + $0x30] sm:$0xff] %vm1829, %v1864
            %1873 = vst.msk [vmem:[#allocation4 + $0x38] sm:$0xff] %vm1829, %v1865
          $region56: #{tpu_custom_call.1} parent=51 // pred_fallthru
            _
        $region52: #{tpu_custom_call.1} parent=43 // pred_fallthru
          _
        %p1874 = scmp.eq.s32.totalorder %s22, 1
        // Predicated region
        $region57: #{tpu_custom_call.1} parent=43 // pred_check
          %p1875 = pneg %p1874
        $region58: #{tpu_custom_call.1} parent=43 // pred_check_branch
          %1877 = sbr.rel (%p1875) target = $region60
        $region59: #{tpu_custom_call.1} parent=43 // pred_region
          %v1878 = vld [vmem:[#allocation4] sm:$0xff]
          %v1879 = vld [vmem:[#allocation4 + $0x8] sm:$0xff]
          %v1880 = vld [vmem:[#allocation4 + $0x10] sm:$0xff]
          %v1881 = vld [vmem:[#allocation4 + $0x18] sm:$0xff]
          %v1882 = vld [vmem:[#allocation4 + $0x20] sm:$0xff]
          %v1883 = vld [vmem:[#allocation4 + $0x28] sm:$0xff]
          %v1884 = vld [vmem:[#allocation4 + $0x30] sm:$0xff]
          %v1885 = vld [vmem:[#allocation4 + $0x38] sm:$0xff]
          %1886 = vxpose.xlu0.b32.start [1/16] %v1878, 128
          %1887 = vxpose.xlu0.b32.cont [2/16] %v1879, 128
          %1888 = vxpose.xlu0.b32.cont [3/16] %v1880, 128
          %1889 = vxpose.xlu0.b32.cont [4/16] %v1881, 128
          %1890 = vxpose.xlu0.b32.cont [5/16] %v1882, 128
          %1891 = vxpose.xlu0.b32.cont [6/16] %v1883, 128
          %1892 = vxpose.xlu0.b32.cont [7/16] %v1884, 128
          %1893 = vxpose.xlu0.b32.cont [8/16] %v1885, 128
          %1894 = vxpose.xlu0.b32.cont [9/16] 0.0, 128
          %1895 = vxpose.xlu0.b32.cont [10/16] 0.0, 128
          %1896 = vxpose.xlu0.b32.cont [11/16] 0.0, 128
          %1897 = vxpose.xlu0.b32.cont [12/16] 0.0, 128
          %1898 = vxpose.xlu0.b32.cont [13/16] 0.0, 128
          %1899 = vxpose.xlu0.b32.cont [14/16] 0.0, 128
          %1900 = vxpose.xlu0.b32.cont [15/16] 0.0, 128
          %1901 = vxpose.xlu0.b32.end [16/16] 0.0, 128
          %v1902 = vpop.trf.xlu0
          %v1903 = vpop.trf.xlu0
          %v1904 = vpop.trf.xlu0
          %v1905 = vpop.trf.xlu0
          %v1906 = vpop.trf.xlu0
          %v1907 = vpop.trf.xlu0
          %v1908 = vpop.trf.xlu0
          %v1909 = vpop.trf.xlu0
          %v1910 = vpop.trf.xlu0
          %v1911 = vpop.trf.xlu0
          %v1912 = vpop.trf.xlu0
          %v1913 = vpop.trf.xlu0
          %v1914 = vpop.trf.xlu0
          %v1915 = vpop.trf.xlu0
          %v1916 = vpop.trf.xlu0
          %v1917 = vpop.trf.xlu0
          %v1919 = vsel %vm880, %v1902, 0
          %v1922 = vsel %vm880, %v1903, 0
          %v1925 = vsel %vm880, %v1904, 0
          %v1928 = vsel %vm880, %v1905, 0
          %v1931 = vsel %vm880, %v1906, 0
          %v1934 = vsel %vm880, %v1907, 0
          %v1937 = vsel %vm880, %v1908, 0
          %v1940 = vsel %vm880, %v1909, 0
          %v1943 = vsel %vm880, %v1910, 0
          %v1946 = vsel %vm880, %v1911, 0
          %v1949 = vsel %vm880, %v1912, 0
          %v1952 = vsel %vm880, %v1913, 0
          %v1955 = vsel %vm880, %v1914, 0
          %v1958 = vsel %vm880, %v1915, 0
          %v1961 = vsel %vm880, %v1916, 0
          %v1964 = vsel %vm880, %v1917, 0
          %1966 = vmatprep.subr.mxu0 %v825
          %1967 = vmatpush1.msra.mxu0 %v824
          %1968 = vmatprep.subr.mxu0 %v827
          %1969 = vmatpush1.msra.mxu0 %v826
          %1970 = vmatprep.subr.mxu0 %v829
          %1971 = vmatpush1.msra.mxu0 %v828
          %1972 = vmatprep.subr.mxu0 %v831
          %1973 = vmatpush1.msra.mxu0 %v830
          %1974 = vmatprep.subr.mxu0 %v833
          %1975 = vmatpush1.msra.mxu0 %v832
          %1976 = vmatprep.subr.mxu0 %v835
          %1977 = vmatpush1.msra.mxu0 %v834
          %1978 = vmatprep.subr.mxu0 %v837
          %1979 = vmatpush1.msra.mxu0 %v836
          %1980 = vmatprep.subr.mxu0 %v839
          %1981 = vmatpush1.msra.mxu0 %v838
          %1982 = vmatprep.subr.mxu0 0.0
          %1983 = vmatpush1.msra.mxu0 0.0
          %1984 = vmatprep.subr.mxu0 0.0
          %1985 = vmatpush1.msra.mxu0 0.0
          %1986 = vmatprep.subr.mxu0 0.0
          %1987 = vmatpush1.msra.mxu0 0.0
          %1988 = vmatprep.subr.mxu0 0.0
          %1989 = vmatpush1.msra.mxu0 0.0
          %1990 = vmatprep.subr.mxu0 0.0
          %1991 = vmatpush1.msra.mxu0 0.0
          %1992 = vmatprep.subr.mxu0 0.0
          %1993 = vmatpush1.msra.mxu0 0.0
          %1994 = vmatprep.subr.mxu0 0.0
          %1995 = vmatpush1.msra.mxu0 0.0
          %1996 = vmatprep.subr.mxu0 0.0
          %1997 = vmatpush1.msra.mxu0 0.0
          %1998 = vmatprep.subr.mxu0 0.0
          %1999 = vmatpush1.msra.mxu0 0.0
          %2000 = vmatprep.subr.mxu0 0.0
          %2001 = vmatpush1.msra.mxu0 0.0
          %2002 = vmatprep.subr.mxu0 0.0
          %2003 = vmatpush1.msra.mxu0 0.0
          %2004 = vmatprep.subr.mxu0 0.0
          %2005 = vmatpush1.msra.mxu0 0.0
          %2006 = vmatprep.subr.mxu0 0.0
          %2007 = vmatpush1.msra.mxu0 0.0
          %2008 = vmatprep.subr.mxu0 0.0
          %2009 = vmatpush1.msra.mxu0 0.0
          %2010 = vmatprep.subr.mxu0 0.0
          %2011 = vmatpush1.msra.mxu0 0.0
          %2012 = vmatprep.subr.mxu0 0.0
          %2013 = vmatpush1.msra.mxu0 0.0
          %2014 = vmatprep.subr.mxu0 0.0
          %2015 = vmatpush1.msra.mxu0 0.0
          %2016 = vmatprep.subr.mxu0 0.0
          %2017 = vmatpush1.msra.mxu0 0.0
          %2018 = vmatprep.subr.mxu0 0.0
          %2019 = vmatpush1.msra.mxu0 0.0
          %2020 = vmatprep.subr.mxu0 0.0
          %2021 = vmatpush1.msra.mxu0 0.0
          %2022 = vmatprep.subr.mxu0 0.0
          %2023 = vmatpush1.msra.mxu0 0.0
          %2024 = vmatprep.subr.mxu0 0.0
          %2025 = vmatpush1.msra.mxu0 0.0
          %2026 = vmatprep.subr.mxu0 0.0
          %2027 = vmatpush1.msra.mxu0 0.0
          %2028 = vmatprep.subr.mxu0 0.0
          %2029 = vmatpush1.msra.mxu0 0.0
          %2030 = vmatprep.mubr.f32.mxu0 0.0
          %2031 = vmatmul.mubr.f32.gmra.mrb[0].mxu0 %v1919
          %v2032 = vpop.f32.mrb[0].mxu0
          %v2033 = vadd.f32 0.0, %v2032
          %v2034 = vpop.f32.mrb[0].mxu0
          %v2035 = vadd.f32 0.0, %v2034
          %2036 = vmatprep.mubr.f32.mxu0 0.0
          %2037 = vmatmul.mubr.f32.gmra.mrb[0].mxu0 %v1922
          %v2038 = vpop.f32.mrb[0].mxu0
          %v2039 = vadd.f32 0.0, %v2038
          %v2040 = vpop.f32.mrb[0].mxu0
          %v2041 = vadd.f32 0.0, %v2040
          %2042 = vmatprep.mubr.f32.mxu0 0.0
          %2043 = vmatmul.mubr.f32.gmra.mrb[0].mxu0 %v1925
          %v2044 = vpop.f32.mrb[0].mxu0
          %v2045 = vadd.f32 0.0, %v2044
          %v2046 = vpop.f32.mrb[0].mxu0
          %v2047 = vadd.f32 0.0, %v2046
          %2048 = vmatprep.mubr.f32.mxu0 0.0
          %2049 = vmatmul.mubr.f32.gmra.mrb[0].mxu0 %v1928
          %v2050 = vpop.f32.mrb[0].mxu0
          %v2051 = vpop.f32.mrb[0].mxu0
          %2052 = vmatprep.mubr.f32.mxu0 0.0
          %2053 = vmatmul.mubr.f32.gmra.mrb[0].mxu0 %v1931
          %v2054 = vpop.f32.mrb[0].mxu0
          %v2055 = vpop.f32.mrb[0].mxu0
          %2056 = vmatprep.mubr.f32.mxu0 0.0
          %2057 = vmatmul.mubr.f32.gmra.mrb[0].mxu0 %v1934
          %v2058 = vpop.f32.mrb[0].mxu0
          %v2059 = vpop.f32.mrb[0].mxu0
          %2060 = vmatprep.mubr.f32.mxu0 0.0
          %2061 = vmatmul.mubr.f32.gmra.mrb[0].mxu0 %v1937
          %v2062 = vpop.f32.mrb[0].mxu0
          %v2063 = vpop.f32.mrb[0].mxu0
          %2064 = vmatprep.mubr.f32.mxu0 0.0
          %2065 = vmatmul.mubr.f32.gmra.mrb[0].mxu0 %v1940
          %v2066 = vpop.f32.mrb[0].mxu0
          %v2067 = vpop.f32.mrb[0].mxu0
          %2068 = vmatprep.mubr.f32.mxu0 0.0
          %2069 = vmatmul.mubr.f32.gmra.mrb[0].mxu0 %v1943
          %v2070 = vpop.f32.mrb[0].mxu0
          %v2071 = vpop.f32.mrb[0].mxu0
          %2072 = vmatprep.mubr.f32.mxu0 0.0
          %2073 = vmatmul.mubr.f32.gmra.mrb[0].mxu0 %v1946
          %v2074 = vpop.f32.mrb[0].mxu0
          %v2075 = vpop.f32.mrb[0].mxu0
          %2076 = vmatprep.mubr.f32.mxu0 0.0
          %2077 = vmatmul.mubr.f32.gmra.mrb[0].mxu0 %v1949
          %v2078 = vpop.f32.mrb[0].mxu0
          %v2079 = vpop.f32.mrb[0].mxu0
          %2080 = vmatprep.mubr.f32.mxu0 0.0
          %2081 = vmatmul.mubr.f32.gmra.mrb[0].mxu0 %v1952
          %v2082 = vpop.f32.mrb[0].mxu0
          %v2083 = vpop.f32.mrb[0].mxu0
          %2084 = vmatprep.mubr.f32.mxu0 0.0
          %2085 = vmatmul.mubr.f32.gmra.mrb[0].mxu0 %v1955
          %v2086 = vpop.f32.mrb[0].mxu0
          %v2087 = vpop.f32.mrb[0].mxu0
          %2088 = vmatprep.mubr.f32.mxu0 0.0
          %2089 = vmatmul.mubr.f32.gmra.mrb[0].mxu0 %v1958
          %v2090 = vpop.f32.mrb[0].mxu0
          %v2091 = vpop.f32.mrb[0].mxu0
          %2092 = vmatprep.mubr.f32.mxu0 0.0
          %2093 = vmatmul.mubr.f32.gmra.mrb[0].mxu0 %v1961
          %v2094 = vpop.f32.mrb[0].mxu0
          %v2095 = vpop.f32.mrb[0].mxu0
          %2096 = vmatprep.mubr.f32.mxu0 0.0
          %2097 = vmatmul.mubr.f32.gmra.mrb[0].mxu0 %v1964
          %v2098 = vpop.f32.mrb[0].mxu0
          %v2099 = vpop.f32.mrb[0].mxu0
          %2100 = vdwg.mxu0
          %v2101 = vadd.f32 %v951, %v2033
          %v2102 = vadd.f32 %v953, %v2035
          %vm2103 = vcmp.ge.f32.partialorder %v2101, 0.0
          %vm2104 = vcmp.ge.f32.partialorder %v2102, 0.0
          %v2105 = vmul.f32 %v2101, 0.01
          %v2106 = vmul.f32 %v2102, 0.01
          %v2107 = vsel %vm2103, %v2101, %v2105
          %v2108 = vsel %vm2104, %v2102, %v2106
          %v2109 = vsub.f32 %v2107, %v2039
          %v2110 = vsub.f32 %v2108, %v2041
          %v2111 = vmul.f32 %v2109, 1.442695
          %v2112 = vpow.pop %v2111
          %v2113 = vmul.f32 %v2110, 1.442695
          %v2114 = vpow.pop %v2113
          %v2115 = vmul.f32 %v2112, %v2045
          %v2116 = vmul.f32 %v2114, %v2047
          %v2117 = vld [vmem:[#allocation5] sm:$0xf]
          %2118 = vxpose.xlu0.b32.start [1/16] %v2115, 128
          %2119 = vxpose.xlu0.b32.cont [2/16] 0.0, 128
          %2120 = vxpose.xlu0.b32.cont [3/16] 0.0, 128
          %2121 = vxpose.xlu0.b32.cont [4/16] 0.0, 128
          %2122 = vxpose.xlu0.b32.cont [5/16] 0.0, 128
          %2123 = vxpose.xlu0.b32.cont [6/16] 0.0, 128
          %2124 = vxpose.xlu0.b32.cont [7/16] 0.0, 128
          %2125 = vxpose.xlu0.b32.cont [8/16] 0.0, 128
          %2126 = vxpose.xlu0.b32.cont [9/16] 0.0, 128
          %2127 = vxpose.xlu0.b32.cont [10/16] 0.0, 128
          %2128 = vxpose.xlu0.b32.cont [11/16] 0.0, 128
          %2129 = vxpose.xlu0.b32.cont [12/16] 0.0, 128
          %2130 = vxpose.xlu0.b32.cont [13/16] 0.0, 128
          %2131 = vxpose.xlu0.b32.cont [14/16] 0.0, 128
          %2132 = vxpose.xlu0.b32.cont [15/16] 0.0, 128
          %2133 = vxpose.xlu0.b32.end [16/16] 0.0, 128
          %v2134 = vpop.trf.xlu0
          %v2135 = vpop.trf.xlu0
          %v2136 = vpop.trf.xlu0
          %v2137 = vpop.trf.xlu0
          %v2138 = vpop.trf.xlu0
          %v2139 = vpop.trf.xlu0
          %v2140 = vpop.trf.xlu0
          %v2141 = vpop.trf.xlu0
          %v2142 = vpop.trf.xlu0
          %v2143 = vpop.trf.xlu0
          %v2144 = vpop.trf.xlu0
          %v2145 = vpop.trf.xlu0
          %v2146 = vpop.trf.xlu0
          %v2147 = vpop.trf.xlu0
          %v2148 = vpop.trf.xlu0
          %v2149 = vpop.trf.xlu0
          %2150 = vxpose.xlu0.b32.start [1/16] %v2116, 128
          %2151 = vxpose.xlu0.b32.cont [2/16] 0.0, 128
          %2152 = vxpose.xlu0.b32.cont [3/16] 0.0, 128
          %2153 = vxpose.xlu0.b32.cont [4/16] 0.0, 128
          %2154 = vxpose.xlu0.b32.cont [5/16] 0.0, 128
          %2155 = vxpose.xlu0.b32.cont [6/16] 0.0, 128
          %2156 = vxpose.xlu0.b32.cont [7/16] 0.0, 128
          %2157 = vxpose.xlu0.b32.cont [8/16] 0.0, 128
          %2158 = vxpose.xlu0.b32.cont [9/16] 0.0, 128
          %2159 = vxpose.xlu0.b32.cont [10/16] 0.0, 128
          %2160 = vxpose.xlu0.b32.cont [11/16] 0.0, 128
          %2161 = vxpose.xlu0.b32.cont [12/16] 0.0, 128
          %2162 = vxpose.xlu0.b32.cont [13/16] 0.0, 128
          %2163 = vxpose.xlu0.b32.cont [14/16] 0.0, 128
          %2164 = vxpose.xlu0.b32.cont [15/16] 0.0, 128
          %2165 = vxpose.xlu0.b32.end [16/16] 0.0, 128
          %v2166 = vpop.trf.xlu0
          %v2167 = vpop.trf.xlu0
          %v2168 = vpop.trf.xlu0
          %v2169 = vpop.trf.xlu0
          %v2170 = vpop.trf.xlu0
          %v2171 = vpop.trf.xlu0
          %v2172 = vpop.trf.xlu0
          %v2173 = vpop.trf.xlu0
          %v2174 = vpop.trf.xlu0
          %v2175 = vpop.trf.xlu0
          %v2176 = vpop.trf.xlu0
          %v2177 = vpop.trf.xlu0
          %v2178 = vpop.trf.xlu0
          %v2179 = vpop.trf.xlu0
          %v2180 = vpop.trf.xlu0
          %v2181 = vpop.trf.xlu0
          %vm2182 = vcmask 31744
          %v2184 = vsel %vm2182, %v2134, 0
          %v2187 = vsel %vm2182, %v2135, 0
          %v2190 = vsel %vm2182, %v2136, 0
          %v2193 = vsel %vm2182, %v2137, 0
          %v2196 = vsel %vm2182, %v2138, 0
          %v2199 = vsel %vm2182, %v2139, 0
          %v2202 = vsel %vm2182, %v2140, 0
          %v2205 = vsel %vm2182, %v2141, 0
          %v2208 = vsel %vm2182, %v2142, 0
          %v2211 = vsel %vm2182, %v2143, 0
          %v2214 = vsel %vm2182, %v2144, 0
          %v2217 = vsel %vm2182, %v2145, 0
          %v2220 = vsel %vm2182, %v2146, 0
          %v2223 = vsel %vm2182, %v2147, 0
          %v2226 = vsel %vm2182, %v2148, 0
          %v2229 = vsel %vm2182, %v2149, 0
          %v2232 = vsel %vm2182, %v2166, 0
          %v2235 = vsel %vm2182, %v2167, 0
          %v2238 = vsel %vm2182, %v2168, 0
          %v2241 = vsel %vm2182, %v2169, 0
          %v2244 = vsel %vm2182, %v2170, 0
          %v2247 = vsel %vm2182, %v2171, 0
          %v2250 = vsel %vm2182, %v2172, 0
          %v2253 = vsel %vm2182, %v2173, 0
          %v2256 = vsel %vm2182, %v2174, 0
          %v2259 = vsel %vm2182, %v2175, 0
          %v2262 = vsel %vm2182, %v2176, 0
          %v2265 = vsel %vm2182, %v2177, 0
          %v2268 = vsel %vm2182, %v2178, 0
          %v2271 = vsel %vm2182, %v2179, 0
          %v2274 = vsel %vm2182, %v2180, 0
          %v2277 = vsel %vm2182, %v2181, 0
          %vm2279 = vcmask 1043456
          %v2281 = vsel %vm2279, %v2117, 0
          %2283 = vmatprep.subr.mxu0 0.0
          %2284 = vmatpush1.msra.mxu0 %v2281
          %2285 = vmatprep.subr.mxu0 0.0
          %2286 = vmatpush1.msra.mxu0 0.0
          %2287 = vmatprep.subr.mxu0 0.0
          %2288 = vmatpush1.msra.mxu0 0.0
          %2289 = vmatprep.subr.mxu0 0.0
          %2290 = vmatpush1.msra.mxu0 0.0
          %2291 = vmatprep.subr.mxu0 0.0
          %2292 = vmatpush1.msra.mxu0 0.0
          %2293 = vmatprep.subr.mxu0 0.0
          %2294 = vmatpush1.msra.mxu0 0.0
          %2295 = vmatprep.subr.mxu0 0.0
          %2296 = vmatpush1.msra.mxu0 0.0
          %2297 = vmatprep.subr.mxu0 0.0
          %2298 = vmatpush1.msra.mxu0 0.0
          %2299 = vmatprep.subr.mxu0 0.0
          %2300 = vmatpush1.msra.mxu0 0.0
          %2301 = vmatprep.subr.mxu0 0.0
          %2302 = vmatpush1.msra.mxu0 0.0
          %2303 = vmatprep.subr.mxu0 0.0
          %2304 = vmatpush1.msra.mxu0 0.0
          %2305 = vmatprep.subr.mxu0 0.0
          %2306 = vmatpush1.msra.mxu0 0.0
          %2307 = vmatprep.subr.mxu0 0.0
          %2308 = vmatpush1.msra.mxu0 0.0
          %2309 = vmatprep.subr.mxu0 0.0
          %2310 = vmatpush1.msra.mxu0 0.0
          %2311 = vmatprep.subr.mxu0 0.0
          %2312 = vmatpush1.msra.mxu0 0.0
          %2313 = vmatprep.subr.mxu0 0.0
          %2314 = vmatpush1.msra.mxu0 0.0
          %2315 = vmatprep.subr.mxu0 0.0
          %2316 = vmatpush1.msra.mxu0 0.0
          %2317 = vmatprep.subr.mxu0 0.0
          %2318 = vmatpush1.msra.mxu0 0.0
          %2319 = vmatprep.subr.mxu0 0.0
          %2320 = vmatpush1.msra.mxu0 0.0
          %2321 = vmatprep.subr.mxu0 0.0
          %2322 = vmatpush1.msra.mxu0 0.0
          %2323 = vmatprep.subr.mxu0 0.0
          %2324 = vmatpush1.msra.mxu0 0.0
          %2325 = vmatprep.subr.mxu0 0.0
          %2326 = vmatpush1.msra.mxu0 0.0
          %2327 = vmatprep.subr.mxu0 0.0
          %2328 = vmatpush1.msra.mxu0 0.0
          %2329 = vmatprep.subr.mxu0 0.0
          %2330 = vmatpush1.msra.mxu0 0.0
          %2331 = vmatprep.subr.mxu0 0.0
          %2332 = vmatpush1.msra.mxu0 0.0
          %2333 = vmatprep.subr.mxu0 0.0
          %2334 = vmatpush1.msra.mxu0 0.0
          %2335 = vmatprep.subr.mxu0 0.0
          %2336 = vmatpush1.msra.mxu0 0.0
          %2337 = vmatprep.subr.mxu0 0.0
          %2338 = vmatpush1.msra.mxu0 0.0
          %2339 = vmatprep.subr.mxu0 0.0
          %2340 = vmatpush1.msra.mxu0 0.0
          %2341 = vmatprep.subr.mxu0 0.0
          %2342 = vmatpush1.msra.mxu0 0.0
          %2343 = vmatprep.subr.mxu0 0.0
          %2344 = vmatpush1.msra.mxu0 0.0
          %2345 = vmatprep.subr.mxu0 0.0
          %2346 = vmatpush1.msra.mxu0 0.0
          %2347 = vmatprep.mubr.f32.mxu0 0.0
          %2348 = vmatmul.mubr.f32.gmra.mrb[0].mxu0 %v2184
          %v2349 = vpop.f32.mrb[0].mxu0
          %v2350 = vadd.f32 0.0, %v2349
          %v2351 = vpop.f32.mrb[0].mxu0
          %2352 = vmatprep.mubr.f32.mxu0 0.0
          %2353 = vmatmul.mubr.f32.gmra.mrb[0].mxu0 %v2187
          %v2354 = vpop.f32.mrb[0].mxu0
          %v2355 = vadd.f32 0.0, %v2354
          %v2356 = vpop.f32.mrb[0].mxu0
          %2357 = vmatprep.mubr.f32.mxu0 0.0
          %2358 = vmatmul.mubr.f32.gmra.mrb[0].mxu0 %v2190
          %v2359 = vpop.f32.mrb[0].mxu0
          %v2360 = vadd.f32 0.0, %v2359
          %v2361 = vpop.f32.mrb[0].mxu0
          %2362 = vmatprep.mubr.f32.mxu0 0.0
          %2363 = vmatmul.mubr.f32.gmra.mrb[0].mxu0 %v2193
          %v2364 = vpop.f32.mrb[0].mxu0
          %v2365 = vadd.f32 0.0, %v2364
          %v2366 = vpop.f32.mrb[0].mxu0
          %2367 = vmatprep.mubr.f32.mxu0 0.0
          %2368 = vmatmul.mubr.f32.gmra.mrb[0].mxu0 %v2196
          %v2369 = vpop.f32.mrb[0].mxu0
          %v2370 = vadd.f32 0.0, %v2369
          %v2371 = vpop.f32.mrb[0].mxu0
          %2372 = vmatprep.mubr.f32.mxu0 0.0
          %2373 = vmatmul.mubr.f32.gmra.mrb[0].mxu0 %v2199
          %v2374 = vpop.f32.mrb[0].mxu0
          %v2375 = vadd.f32 0.0, %v2374
          %v2376 = vpop.f32.mrb[0].mxu0
          %2377 = vmatprep.mubr.f32.mxu0 0.0
          %2378 = vmatmul.mubr.f32.gmra.mrb[0].mxu0 %v2202
          %v2379 = vpop.f32.mrb[0].mxu0
          %v2380 = vadd.f32 0.0, %v2379
          %v2381 = vpop.f32.mrb[0].mxu0
          %2382 = vmatprep.mubr.f32.mxu0 0.0
          %2383 = vmatmul.mubr.f32.gmra.mrb[0].mxu0 %v2205
          %v2384 = vpop.f32.mrb[0].mxu0
          %v2385 = vadd.f32 0.0, %v2384
          %v2386 = vpop.f32.mrb[0].mxu0
          %2387 = vmatprep.mubr.f32.mxu0 0.0
          %2388 = vmatmul.mubr.f32.gmra.mrb[0].mxu0 %v2208
          %v2389 = vpop.f32.mrb[0].mxu0
          %v2390 = vadd.f32 0.0, %v2389
          %v2391 = vpop.f32.mrb[0].mxu0
          %2392 = vmatprep.mubr.f32.mxu0 0.0
          %2393 = vmatmul.mubr.f32.gmra.mrb[0].mxu0 %v2211
          %v2394 = vpop.f32.mrb[0].mxu0
          %v2395 = vadd.f32 0.0, %v2394
          %v2396 = vpop.f32.mrb[0].mxu0
          %2397 = vmatprep.mubr.f32.mxu0 0.0
          %2398 = vmatmul.mubr.f32.gmra.mrb[0].mxu0 %v2214
          %v2399 = vpop.f32.mrb[0].mxu0
          %v2400 = vadd.f32 0.0, %v2399
          %v2401 = vpop.f32.mrb[0].mxu0
          %2402 = vmatprep.mubr.f32.mxu0 0.0
          %2403 = vmatmul.mubr.f32.gmra.mrb[0].mxu0 %v2217
          %v2404 = vpop.f32.mrb[0].mxu0
          %v2405 = vadd.f32 0.0, %v2404
          %v2406 = vpop.f32.mrb[0].mxu0
          %2407 = vmatprep.mubr.f32.mxu0 0.0
          %2408 = vmatmul.mubr.f32.gmra.mrb[0].mxu0 %v2220
          %v2409 = vpop.f32.mrb[0].mxu0
          %v2410 = vadd.f32 0.0, %v2409
          %v2411 = vpop.f32.mrb[0].mxu0
          %2412 = vmatprep.mubr.f32.mxu0 0.0
          %2413 = vmatmul.mubr.f32.gmra.mrb[0].mxu0 %v2223
          %v2414 = vpop.f32.mrb[0].mxu0
          %v2415 = vadd.f32 0.0, %v2414
          %v2416 = vpop.f32.mrb[0].mxu0
          %2417 = vmatprep.mubr.f32.mxu0 0.0
          %2418 = vmatmul.mubr.f32.gmra.mrb[0].mxu0 %v2226
          %v2419 = vpop.f32.mrb[0].mxu0
          %v2420 = vadd.f32 0.0, %v2419
          %v2421 = vpop.f32.mrb[0].mxu0
          %2422 = vmatprep.mubr.f32.mxu0 0.0
          %2423 = vmatmul.mubr.f32.gmra.mrb[0].mxu0 %v2229
          %v2424 = vpop.f32.mrb[0].mxu0
          %v2425 = vadd.f32 0.0, %v2424
          %v2426 = vpop.f32.mrb[0].mxu0
          %2427 = vmatprep.mubr.f32.mxu0 0.0
          %2428 = vmatmul.mubr.f32.gmra.mrb[0].mxu0 %v2232
          %v2429 = vpop.f32.mrb[0].mxu0
          %v2430 = vadd.f32 0.0, %v2429
          %v2431 = vpop.f32.mrb[0].mxu0
          %2432 = vmatprep.mubr.f32.mxu0 0.0
          %2433 = vmatmul.mubr.f32.gmra.mrb[0].mxu0 %v2235
          %v2434 = vpop.f32.mrb[0].mxu0
          %v2435 = vadd.f32 0.0, %v2434
          %v2436 = vpop.f32.mrb[0].mxu0
          %2437 = vmatprep.mubr.f32.mxu0 0.0
          %2438 = vmatmul.mubr.f32.gmra.mrb[0].mxu0 %v2238
          %v2439 = vpop.f32.mrb[0].mxu0
          %v2440 = vadd.f32 0.0, %v2439
          %v2441 = vpop.f32.mrb[0].mxu0
          %2442 = vmatprep.mubr.f32.mxu0 0.0
          %2443 = vmatmul.mubr.f32.gmra.mrb[0].mxu0 %v2241
          %v2444 = vpop.f32.mrb[0].mxu0
          %v2445 = vadd.f32 0.0, %v2444
          %v2446 = vpop.f32.mrb[0].mxu0
          %2447 = vmatprep.mubr.f32.mxu0 0.0
          %2448 = vmatmul.mubr.f32.gmra.mrb[0].mxu0 %v2244
          %v2449 = vpop.f32.mrb[0].mxu0
          %v2450 = vadd.f32 0.0, %v2449
          %v2451 = vpop.f32.mrb[0].mxu0
          %2452 = vmatprep.mubr.f32.mxu0 0.0
          %2453 = vmatmul.mubr.f32.gmra.mrb[0].mxu0 %v2247
          %v2454 = vpop.f32.mrb[0].mxu0
          %v2455 = vadd.f32 0.0, %v2454
          %v2456 = vpop.f32.mrb[0].mxu0
          %2457 = vmatprep.mubr.f32.mxu0 0.0
          %2458 = vmatmul.mubr.f32.gmra.mrb[0].mxu0 %v2250
          %v2459 = vpop.f32.mrb[0].mxu0
          %v2460 = vadd.f32 0.0, %v2459
          %v2461 = vpop.f32.mrb[0].mxu0
          %2462 = vmatprep.mubr.f32.mxu0 0.0
          %2463 = vmatmul.mubr.f32.gmra.mrb[0].mxu0 %v2253
          %v2464 = vpop.f32.mrb[0].mxu0
          %v2465 = vadd.f32 0.0, %v2464
          %v2466 = vpop.f32.mrb[0].mxu0
          %2467 = vmatprep.mubr.f32.mxu0 0.0
          %2468 = vmatmul.mubr.f32.gmra.mrb[0].mxu0 %v2256
          %v2469 = vpop.f32.mrb[0].mxu0
          %v2470 = vadd.f32 0.0, %v2469
          %v2471 = vpop.f32.mrb[0].mxu0
          %2472 = vmatprep.mubr.f32.mxu0 0.0
          %2473 = vmatmul.mubr.f32.gmra.mrb[0].mxu0 %v2259
          %v2474 = vpop.f32.mrb[0].mxu0
          %v2475 = vadd.f32 0.0, %v2474
          %v2476 = vpop.f32.mrb[0].mxu0
          %2477 = vmatprep.mubr.f32.mxu0 0.0
          %2478 = vmatmul.mubr.f32.gmra.mrb[0].mxu0 %v2262
          %v2479 = vpop.f32.mrb[0].mxu0
          %v2480 = vadd.f32 0.0, %v2479
          %v2481 = vpop.f32.mrb[0].mxu0
          %2482 = vmatprep.mubr.f32.mxu0 0.0
          %2483 = vmatmul.mubr.f32.gmra.mrb[0].mxu0 %v2265
          %v2484 = vpop.f32.mrb[0].mxu0
          %v2485 = vadd.f32 0.0, %v2484
          %v2486 = vpop.f32.mrb[0].mxu0
          %2487 = vmatprep.mubr.f32.mxu0 0.0
          %2488 = vmatmul.mubr.f32.gmra.mrb[0].mxu0 %v2268
          %v2489 = vpop.f32.mrb[0].mxu0
          %v2490 = vadd.f32 0.0, %v2489
          %v2491 = vpop.f32.mrb[0].mxu0
          %2492 = vmatprep.mubr.f32.mxu0 0.0
          %2493 = vmatmul.mubr.f32.gmra.mrb[0].mxu0 %v2271
          %v2494 = vpop.f32.mrb[0].mxu0
          %v2495 = vadd.f32 0.0, %v2494
          %v2496 = vpop.f32.mrb[0].mxu0
          %2497 = vmatprep.mubr.f32.mxu0 0.0
          %2498 = vmatmul.mubr.f32.gmra.mrb[0].mxu0 %v2274
          %v2499 = vpop.f32.mrb[0].mxu0
          %v2500 = vadd.f32 0.0, %v2499
          %v2501 = vpop.f32.mrb[0].mxu0
          %2502 = vmatprep.mubr.f32.mxu0 0.0
          %2503 = vmatmul.mubr.f32.gmra.mrb[0].mxu0 %v2277
          %v2504 = vpop.f32.mrb[0].mxu0
          %v2505 = vadd.f32 0.0, %v2504
          %v2506 = vpop.f32.mrb[0].mxu0
          %2507 = vdwg.mxu0
          %v2508 = vld [vmem:[#allocation2] sm:$0xff]
          %v2509 = vld [vmem:[#allocation2 + $0x8] sm:$0xff]
          %v2510 = vld [vmem:[#allocation2 + $0x10] sm:$0xff]
          %v2511 = vld [vmem:[#allocation2 + $0x18] sm:$0xff]
          %v2512 = vld [vmem:[#allocation2 + $0x20] sm:$0xff]
          %v2513 = vld [vmem:[#allocation2 + $0x28] sm:$0xff]
          %v2514 = vld [vmem:[#allocation2 + $0x30] sm:$0xff]
          %v2515 = vld [vmem:[#allocation2 + $0x38] sm:$0xff]
          %2516 = vxpose.xlu0.b32.start [1/16] %v824, 128
          %2517 = vxpose.xlu0.b32.cont [2/16] %v826, 128
          %2518 = vxpose.xlu0.b32.cont [3/16] %v828, 128
          %2519 = vxpose.xlu0.b32.cont [4/16] %v830, 128
          %2520 = vxpose.xlu0.b32.cont [5/16] %v832, 128
          %2521 = vxpose.xlu0.b32.cont [6/16] %v834, 128
          %2522 = vxpose.xlu0.b32.cont [7/16] %v836, 128
          %2523 = vxpose.xlu0.b32.cont [8/16] %v838, 128
          %2524 = vxpose.xlu0.b32.cont [9/16] 0.0, 128
          %2525 = vxpose.xlu0.b32.cont [10/16] 0.0, 128
          %2526 = vxpose.xlu0.b32.cont [11/16] 0.0, 128
          %2527 = vxpose.xlu0.b32.cont [12/16] 0.0, 128
          %2528 = vxpose.xlu0.b32.cont [13/16] 0.0, 128
          %2529 = vxpose.xlu0.b32.cont [14/16] 0.0, 128
          %2530 = vxpose.xlu0.b32.cont [15/16] 0.0, 128
          %2531 = vxpose.xlu0.b32.end [16/16] 0.0, 128
          %v2532 = vpop.trf.xlu0
          %v2533 = vpop.trf.xlu0
          %v2534 = vpop.trf.xlu0
          %v2535 = vpop.trf.xlu0
          %v2536 = vpop.trf.xlu0
          %v2537 = vpop.trf.xlu0
          %v2538 = vpop.trf.xlu0
          %v2539 = vpop.trf.xlu0
          %v2540 = vpop.trf.xlu0
          %v2541 = vpop.trf.xlu0
          %v2542 = vpop.trf.xlu0
          %v2543 = vpop.trf.xlu0
          %v2544 = vpop.trf.xlu0
          %v2545 = vpop.trf.xlu0
          %v2546 = vpop.trf.xlu0
          %v2547 = vpop.trf.xlu0
          %2548 = vxpose.xlu0.b32.start [1/16] %v825, 128
          %2549 = vxpose.xlu0.b32.cont [2/16] %v827, 128
          %2550 = vxpose.xlu0.b32.cont [3/16] %v829, 128
          %2551 = vxpose.xlu0.b32.cont [4/16] %v831, 128
          %2552 = vxpose.xlu0.b32.cont [5/16] %v833, 128
          %2553 = vxpose.xlu0.b32.cont [6/16] %v835, 128
          %2554 = vxpose.xlu0.b32.cont [7/16] %v837, 128
          %2555 = vxpose.xlu0.b32.cont [8/16] %v839, 128
          %2556 = vxpose.xlu0.b32.cont [9/16] 0.0, 128
          %2557 = vxpose.xlu0.b32.cont [10/16] 0.0, 128
          %2558 = vxpose.xlu0.b32.cont [11/16] 0.0, 128
          %2559 = vxpose.xlu0.b32.cont [12/16] 0.0, 128
          %2560 = vxpose.xlu0.b32.cont [13/16] 0.0, 128
          %2561 = vxpose.xlu0.b32.cont [14/16] 0.0, 128
          %2562 = vxpose.xlu0.b32.cont [15/16] 0.0, 128
          %2563 = vxpose.xlu0.b32.end [16/16] 0.0, 128
          %v2564 = vpop.trf.xlu0
          %v2565 = vpop.trf.xlu0
          %v2566 = vpop.trf.xlu0
          %v2567 = vpop.trf.xlu0
          %v2568 = vpop.trf.xlu0
          %v2569 = vpop.trf.xlu0
          %v2570 = vpop.trf.xlu0
          %v2571 = vpop.trf.xlu0
          %v2572 = vpop.trf.xlu0
          %v2573 = vpop.trf.xlu0
          %v2574 = vpop.trf.xlu0
          %v2575 = vpop.trf.xlu0
          %v2576 = vpop.trf.xlu0
          %v2577 = vpop.trf.xlu0
          %v2578 = vpop.trf.xlu0
          %v2579 = vpop.trf.xlu0
          %v2581 = vsel %vm880, %v2532, 0
          %v2584 = vsel %vm880, %v2533, 0
          %v2587 = vsel %vm880, %v2534, 0
          %v2590 = vsel %vm880, %v2535, 0
          %v2593 = vsel %vm880, %v2536, 0
          %v2596 = vsel %vm880, %v2537, 0
          %v2599 = vsel %vm880, %v2538, 0
          %v2602 = vsel %vm880, %v2539, 0
          %v2605 = vsel %vm880, %v2540, 0
          %v2608 = vsel %vm880, %v2541, 0
          %v2611 = vsel %vm880, %v2542, 0
          %v2614 = vsel %vm880, %v2543, 0
          %v2617 = vsel %vm880, %v2544, 0
          %v2620 = vsel %vm880, %v2545, 0
          %v2623 = vsel %vm880, %v2546, 0
          %v2626 = vsel %vm880, %v2547, 0
          %v2629 = vsel %vm880, %v2564, 0
          %v2632 = vsel %vm880, %v2565, 0
          %v2635 = vsel %vm880, %v2566, 0
          %v2638 = vsel %vm880, %v2567, 0
          %v2641 = vsel %vm880, %v2568, 0
          %v2644 = vsel %vm880, %v2569, 0
          %v2647 = vsel %vm880, %v2570, 0
          %v2650 = vsel %vm880, %v2571, 0
          %v2653 = vsel %vm880, %v2572, 0
          %v2656 = vsel %vm880, %v2573, 0
          %v2659 = vsel %vm880, %v2574, 0
          %v2662 = vsel %vm880, %v2575, 0
          %v2665 = vsel %vm880, %v2576, 0
          %v2668 = vsel %vm880, %v2577, 0
          %v2671 = vsel %vm880, %v2578, 0
          %v2674 = vsel %vm880, %v2579, 0
          %2676 = vmatprep.subr.mxu0 0.0
          %2677 = vmatpush1.msra.mxu0 %v2508
          %2678 = vmatprep.subr.mxu0 0.0
          %2679 = vmatpush1.msra.mxu0 %v2509
          %2680 = vmatprep.subr.mxu0 0.0
          %2681 = vmatpush1.msra.mxu0 %v2510
          %2682 = vmatprep.subr.mxu0 0.0
          %2683 = vmatpush1.msra.mxu0 %v2511
          %2684 = vmatprep.subr.mxu0 0.0
          %2685 = vmatpush1.msra.mxu0 %v2512
          %2686 = vmatprep.subr.mxu0 0.0
          %2687 = vmatpush1.msra.mxu0 %v2513
          %2688 = vmatprep.subr.mxu0 0.0
          %2689 = vmatpush1.msra.mxu0 %v2514
          %2690 = vmatprep.subr.mxu0 0.0
          %2691 = vmatpush1.msra.mxu0 %v2515
          %2692 = vmatprep.subr.mxu0 0.0
          %2693 = vmatpush1.msra.mxu0 0.0
          %2694 = vmatprep.subr.mxu0 0.0
          %2695 = vmatpush1.msra.mxu0 0.0
          %2696 = vmatprep.subr.mxu0 0.0
          %2697 = vmatpush1.msra.mxu0 0.0
          %2698 = vmatprep.subr.mxu0 0.0
          %2699 = vmatpush1.msra.mxu0 0.0
          %2700 = vmatprep.subr.mxu0 0.0
          %2701 = vmatpush1.msra.mxu0 0.0
          %2702 = vmatprep.subr.mxu0 0.0
          %2703 = vmatpush1.msra.mxu0 0.0
          %2704 = vmatprep.subr.mxu0 0.0
          %2705 = vmatpush1.msra.mxu0 0.0
          %2706 = vmatprep.subr.mxu0 0.0
          %2707 = vmatpush1.msra.mxu0 0.0
          %2708 = vmatprep.subr.mxu0 0.0
          %2709 = vmatpush1.msra.mxu0 0.0
          %2710 = vmatprep.subr.mxu0 0.0
          %2711 = vmatpush1.msra.mxu0 0.0
          %2712 = vmatprep.subr.mxu0 0.0
          %2713 = vmatpush1.msra.mxu0 0.0
          %2714 = vmatprep.subr.mxu0 0.0
          %2715 = vmatpush1.msra.mxu0 0.0
          %2716 = vmatprep.subr.mxu0 0.0
          %2717 = vmatpush1.msra.mxu0 0.0
          %2718 = vmatprep.subr.mxu0 0.0
          %2719 = vmatpush1.msra.mxu0 0.0
          %2720 = vmatprep.subr.mxu0 0.0
          %2721 = vmatpush1.msra.mxu0 0.0
          %2722 = vmatprep.subr.mxu0 0.0
          %2723 = vmatpush1.msra.mxu0 0.0
          %2724 = vmatprep.subr.mxu0 0.0
          %2725 = vmatpush1.msra.mxu0 0.0
          %2726 = vmatprep.subr.mxu0 0.0
          %2727 = vmatpush1.msra.mxu0 0.0
          %2728 = vmatprep.subr.mxu0 0.0
          %2729 = vmatpush1.msra.mxu0 0.0
          %2730 = vmatprep.subr.mxu0 0.0
          %2731 = vmatpush1.msra.mxu0 0.0
          %2732 = vmatprep.subr.mxu0 0.0
          %2733 = vmatpush1.msra.mxu0 0.0
          %2734 = vmatprep.subr.mxu0 0.0
          %2735 = vmatpush1.msra.mxu0 0.0
          %2736 = vmatprep.subr.mxu0 0.0
          %2737 = vmatpush1.msra.mxu0 0.0
          %2738 = vmatprep.subr.mxu0 0.0
          %2739 = vmatpush1.msra.mxu0 0.0
          %2740 = vmatprep.mubr.f32.mxu0 0.0
          %2741 = vmatmul.mubr.f32.gmra.mrb[0].mxu0 %v2581
          %v2742 = vpop.f32.mrb[0].mxu0
          %v2743 = vadd.f32 0.0, %v2742
          %v2744 = vpop.f32.mrb[0].mxu0
          %2745 = vmatprep.mubr.f32.mxu0 0.0
          %2746 = vmatmul.mubr.f32.gmra.mrb[0].mxu0 %v2584
          %v2747 = vpop.f32.mrb[0].mxu0
          %v2748 = vadd.f32 0.0, %v2747
          %v2749 = vpop.f32.mrb[0].mxu0
          %2750 = vmatprep.mubr.f32.mxu0 0.0
          %2751 = vmatmul.mubr.f32.gmra.mrb[0].mxu0 %v2587
          %v2752 = vpop.f32.mrb[0].mxu0
          %v2753 = vadd.f32 0.0, %v2752
          %v2754 = vpop.f32.mrb[0].mxu0
          %2755 = vmatprep.mubr.f32.mxu0 0.0
          %2756 = vmatmul.mubr.f32.gmra.mrb[0].mxu0 %v2590
          %v2757 = vpop.f32.mrb[0].mxu0
          %v2758 = vadd.f32 0.0, %v2757
          %v2759 = vpop.f32.mrb[0].mxu0
          %2760 = vmatprep.mubr.f32.mxu0 0.0
          %2761 = vmatmul.mubr.f32.gmra.mrb[0].mxu0 %v2593
          %v2762 = vpop.f32.mrb[0].mxu0
          %v2763 = vadd.f32 0.0, %v2762
          %v2764 = vpop.f32.mrb[0].mxu0
          %2765 = vmatprep.mubr.f32.mxu0 0.0
          %2766 = vmatmul.mubr.f32.gmra.mrb[0].mxu0 %v2596
          %v2767 = vpop.f32.mrb[0].mxu0
          %v2768 = vadd.f32 0.0, %v2767
          %v2769 = vpop.f32.mrb[0].mxu0
          %2770 = vmatprep.mubr.f32.mxu0 0.0
          %2771 = vmatmul.mubr.f32.gmra.mrb[0].mxu0 %v2599
          %v2772 = vpop.f32.mrb[0].mxu0
          %v2773 = vadd.f32 0.0, %v2772
          %v2774 = vpop.f32.mrb[0].mxu0
          %2775 = vmatprep.mubr.f32.mxu0 0.0
          %2776 = vmatmul.mubr.f32.gmra.mrb[0].mxu0 %v2602
          %v2777 = vpop.f32.mrb[0].mxu0
          %v2778 = vadd.f32 0.0, %v2777
          %v2779 = vpop.f32.mrb[0].mxu0
          %2780 = vmatprep.mubr.f32.mxu0 0.0
          %2781 = vmatmul.mubr.f32.gmra.mrb[0].mxu0 %v2605
          %v2782 = vpop.f32.mrb[0].mxu0
          %v2783 = vadd.f32 0.0, %v2782
          %v2784 = vpop.f32.mrb[0].mxu0
          %2785 = vmatprep.mubr.f32.mxu0 0.0
          %2786 = vmatmul.mubr.f32.gmra.mrb[0].mxu0 %v2608
          %v2787 = vpop.f32.mrb[0].mxu0
          %v2788 = vadd.f32 0.0, %v2787
          %v2789 = vpop.f32.mrb[0].mxu0
          %2790 = vmatprep.mubr.f32.mxu0 0.0
          %2791 = vmatmul.mubr.f32.gmra.mrb[0].mxu0 %v2611
          %v2792 = vpop.f32.mrb[0].mxu0
          %v2793 = vadd.f32 0.0, %v2792
          %v2794 = vpop.f32.mrb[0].mxu0
          %2795 = vmatprep.mubr.f32.mxu0 0.0
          %2796 = vmatmul.mubr.f32.gmra.mrb[0].mxu0 %v2614
          %v2797 = vpop.f32.mrb[0].mxu0
          %v2798 = vadd.f32 0.0, %v2797
          %v2799 = vpop.f32.mrb[0].mxu0
          %2800 = vmatprep.mubr.f32.mxu0 0.0
          %2801 = vmatmul.mubr.f32.gmra.mrb[0].mxu0 %v2617
          %v2802 = vpop.f32.mrb[0].mxu0
          %v2803 = vadd.f32 0.0, %v2802
          %v2804 = vpop.f32.mrb[0].mxu0
          %2805 = vmatprep.mubr.f32.mxu0 0.0
          %2806 = vmatmul.mubr.f32.gmra.mrb[0].mxu0 %v2620
          %v2807 = vpop.f32.mrb[0].mxu0
          %v2808 = vadd.f32 0.0, %v2807
          %v2809 = vpop.f32.mrb[0].mxu0
          %2810 = vmatprep.mubr.f32.mxu0 0.0
          %2811 = vmatmul.mubr.f32.gmra.mrb[0].mxu0 %v2623
          %v2812 = vpop.f32.mrb[0].mxu0
          %v2813 = vadd.f32 0.0, %v2812
          %v2814 = vpop.f32.mrb[0].mxu0
          %2815 = vmatprep.mubr.f32.mxu0 0.0
          %2816 = vmatmul.mubr.f32.gmra.mrb[0].mxu0 %v2626
          %v2817 = vpop.f32.mrb[0].mxu0
          %v2818 = vadd.f32 0.0, %v2817
          %v2819 = vpop.f32.mrb[0].mxu0
          %2820 = vmatprep.mubr.f32.mxu0 0.0
          %2821 = vmatmul.mubr.f32.gmra.mrb[0].mxu0 %v2629
          %v2822 = vpop.f32.mrb[0].mxu0
          %v2823 = vadd.f32 0.0, %v2822
          %v2824 = vpop.f32.mrb[0].mxu0
          %2825 = vmatprep.mubr.f32.mxu0 0.0
          %2826 = vmatmul.mubr.f32.gmra.mrb[0].mxu0 %v2632
          %v2827 = vpop.f32.mrb[0].mxu0
          %v2828 = vadd.f32 0.0, %v2827
          %v2829 = vpop.f32.mrb[0].mxu0
          %2830 = vmatprep.mubr.f32.mxu0 0.0
          %2831 = vmatmul.mubr.f32.gmra.mrb[0].mxu0 %v2635
          %v2832 = vpop.f32.mrb[0].mxu0
          %v2833 = vadd.f32 0.0, %v2832
          %v2834 = vpop.f32.mrb[0].mxu0
          %2835 = vmatprep.mubr.f32.mxu0 0.0
          %2836 = vmatmul.mubr.f32.gmra.mrb[0].mxu0 %v2638
          %v2837 = vpop.f32.mrb[0].mxu0
          %v2838 = vadd.f32 0.0, %v2837
          %v2839 = vpop.f32.mrb[0].mxu0
          %2840 = vmatprep.mubr.f32.mxu0 0.0
          %2841 = vmatmul.mubr.f32.gmra.mrb[0].mxu0 %v2641
          %v2842 = vpop.f32.mrb[0].mxu0
          %v2843 = vadd.f32 0.0, %v2842
          %v2844 = vpop.f32.mrb[0].mxu0
          %2845 = vmatprep.mubr.f32.mxu0 0.0
          %2846 = vmatmul.mubr.f32.gmra.mrb[0].mxu0 %v2644
          %v2847 = vpop.f32.mrb[0].mxu0
          %v2848 = vadd.f32 0.0, %v2847
          %v2849 = vpop.f32.mrb[0].mxu0
          %2850 = vmatprep.mubr.f32.mxu0 0.0
          %2851 = vmatmul.mubr.f32.gmra.mrb[0].mxu0 %v2647
          %v2852 = vpop.f32.mrb[0].mxu0
          %v2853 = vadd.f32 0.0, %v2852
          %v2854 = vpop.f32.mrb[0].mxu0
          %2855 = vmatprep.mubr.f32.mxu0 0.0
          %2856 = vmatmul.mubr.f32.gmra.mrb[0].mxu0 %v2650
          %v2857 = vpop.f32.mrb[0].mxu0
          %v2858 = vadd.f32 0.0, %v2857
          %v2859 = vpop.f32.mrb[0].mxu0
          %2860 = vmatprep.mubr.f32.mxu0 0.0
          %2861 = vmatmul.mubr.f32.gmra.mrb[0].mxu0 %v2653
          %v2862 = vpop.f32.mrb[0].mxu0
          %v2863 = vadd.f32 0.0, %v2862
          %v2864 = vpop.f32.mrb[0].mxu0
          %2865 = vmatprep.mubr.f32.mxu0 0.0
          %2866 = vmatmul.mubr.f32.gmra.mrb[0].mxu0 %v2656
          %v2867 = vpop.f32.mrb[0].mxu0
          %v2868 = vadd.f32 0.0, %v2867
          %v2869 = vpop.f32.mrb[0].mxu0
          %2870 = vmatprep.mubr.f32.mxu0 0.0
          %2871 = vmatmul.mubr.f32.gmra.mrb[0].mxu0 %v2659
          %v2872 = vpop.f32.mrb[0].mxu0
          %v2873 = vadd.f32 0.0, %v2872
          %v2874 = vpop.f32.mrb[0].mxu0
          %2875 = vmatprep.mubr.f32.mxu0 0.0
          %2876 = vmatmul.mubr.f32.gmra.mrb[0].mxu0 %v2662
          %v2877 = vpop.f32.mrb[0].mxu0
          %v2878 = vadd.f32 0.0, %v2877
          %v2879 = vpop.f32.mrb[0].mxu0
          %2880 = vmatprep.mubr.f32.mxu0 0.0
          %2881 = vmatmul.mubr.f32.gmra.mrb[0].mxu0 %v2665
          %v2882 = vpop.f32.mrb[0].mxu0
          %v2883 = vadd.f32 0.0, %v2882
          %v2884 = vpop.f32.mrb[0].mxu0
          %2885 = vmatprep.mubr.f32.mxu0 0.0
          %2886 = vmatmul.mubr.f32.gmra.mrb[0].mxu0 %v2668
          %v2887 = vpop.f32.mrb[0].mxu0
          %v2888 = vadd.f32 0.0, %v2887
          %v2889 = vpop.f32.mrb[0].mxu0
          %2890 = vmatprep.mubr.f32.mxu0 0.0
          %2891 = vmatmul.mubr.f32.gmra.mrb[0].mxu0 %v2671
          %v2892 = vpop.f32.mrb[0].mxu0
          %v2893 = vadd.f32 0.0, %v2892
          %v2894 = vpop.f32.mrb[0].mxu0
          %2895 = vmatprep.mubr.f32.mxu0 0.0
          %2896 = vmatmul.mubr.f32.gmra.mrb[0].mxu0 %v2674
          %v2897 = vpop.f32.mrb[0].mxu0
          %v2898 = vadd.f32 0.0, %v2897
          %v2899 = vpop.f32.mrb[0].mxu0
          %2900 = vdwg.mxu0
          %v2901 = vld [vmem:[#allocation6] sm:$0xff]
          %v2902 = vld [vmem:[#allocation6 + $0x8] sm:$0xff]
          %v2903 = vld [vmem:[#allocation6 + $0x10] sm:$0xff]
          %v2904 = vld [vmem:[#allocation6 + $0x18] sm:$0xff]
          %v2905 = vld [vmem:[#allocation6 + $0x20] sm:$0xff]
          %v2906 = vld [vmem:[#allocation6 + $0x28] sm:$0xff]
          %v2907 = vld [vmem:[#allocation6 + $0x30] sm:$0xff]
          %v2908 = vld [vmem:[#allocation6 + $0x38] sm:$0xff]
          %v2909 = vmul.f32 %v2350, %v2743
          %v2910 = vmul.f32 %v2355, %v2748
          %v2911 = vmul.f32 %v2360, %v2753
          %v2912 = vmul.f32 %v2365, %v2758
          %v2913 = vmul.f32 %v2370, %v2763
          %v2914 = vmul.f32 %v2375, %v2768
          %v2915 = vmul.f32 %v2380, %v2773
          %v2916 = vmul.f32 %v2385, %v2778
          %v2917 = vmul.f32 %v2390, %v2783
          %v2918 = vmul.f32 %v2395, %v2788
          %v2919 = vmul.f32 %v2400, %v2793
          %v2920 = vmul.f32 %v2405, %v2798
          %v2921 = vmul.f32 %v2410, %v2803
          %v2922 = vmul.f32 %v2415, %v2808
          %v2923 = vmul.f32 %v2420, %v2813
          %v2924 = vmul.f32 %v2425, %v2818
          %v2925 = vmul.f32 %v2430, %v2823
          %v2926 = vmul.f32 %v2435, %v2828
          %v2927 = vmul.f32 %v2440, %v2833
          %v2928 = vmul.f32 %v2445, %v2838
          %v2929 = vmul.f32 %v2450, %v2843
          %v2930 = vmul.f32 %v2455, %v2848
          %v2931 = vmul.f32 %v2460, %v2853
          %v2932 = vmul.f32 %v2465, %v2858
          %v2933 = vmul.f32 %v2470, %v2863
          %v2934 = vmul.f32 %v2475, %v2868
          %v2935 = vmul.f32 %v2480, %v2873
          %v2936 = vmul.f32 %v2485, %v2878
          %v2937 = vmul.f32 %v2490, %v2883
          %v2938 = vmul.f32 %v2495, %v2888
          %v2939 = vmul.f32 %v2500, %v2893
          %v2940 = vmul.f32 %v2505, %v2898
          %2941 = vmatprep.subr.mxu0 0.0
          %2942 = vmatpush1.msra.mxu0 %v2909
          %2943 = vmatprep.subr.mxu0 0.0
          %2944 = vmatpush1.msra.mxu0 %v2910
          %2945 = vmatprep.subr.mxu0 0.0
          %2946 = vmatpush1.msra.mxu0 %v2911
          %2947 = vmatprep.subr.mxu0 0.0
          %2948 = vmatpush1.msra.mxu0 %v2912
          %2949 = vmatprep.subr.mxu0 0.0
          %2950 = vmatpush1.msra.mxu0 %v2913
          %2951 = vmatprep.subr.mxu0 0.0
          %2952 = vmatpush1.msra.mxu0 %v2914
          %2953 = vmatprep.subr.mxu0 0.0
          %2954 = vmatpush1.msra.mxu0 %v2915
          %2955 = vmatprep.subr.mxu0 0.0
          %2956 = vmatpush1.msra.mxu0 %v2916
          %2957 = vmatprep.subr.mxu0 0.0
          %2958 = vmatpush1.msra.mxu0 %v2917
          %2959 = vmatprep.subr.mxu0 0.0
          %2960 = vmatpush1.msra.mxu0 %v2918
          %2961 = vmatprep.subr.mxu0 0.0
          %2962 = vmatpush1.msra.mxu0 %v2919
          %2963 = vmatprep.subr.mxu0 0.0
          %2964 = vmatpush1.msra.mxu0 %v2920
          %2965 = vmatprep.subr.mxu0 0.0
          %2966 = vmatpush1.msra.mxu0 %v2921
          %2967 = vmatprep.subr.mxu0 0.0
          %2968 = vmatpush1.msra.mxu0 %v2922
          %2969 = vmatprep.subr.mxu0 0.0
          %2970 = vmatpush1.msra.mxu0 %v2923
          %2971 = vmatprep.subr.mxu0 0.0
          %2972 = vmatpush1.msra.mxu0 %v2924
          %2973 = vmatprep.subr.mxu0 0.0
          %2974 = vmatpush1.msra.mxu0 %v2925
          %2975 = vmatprep.subr.mxu0 0.0
          %2976 = vmatpush1.msra.mxu0 %v2926
          %2977 = vmatprep.subr.mxu0 0.0
          %2978 = vmatpush1.msra.mxu0 %v2927
          %2979 = vmatprep.subr.mxu0 0.0
          %2980 = vmatpush1.msra.mxu0 %v2928
          %2981 = vmatprep.subr.mxu0 0.0
          %2982 = vmatpush1.msra.mxu0 %v2929
          %2983 = vmatprep.subr.mxu0 0.0
          %2984 = vmatpush1.msra.mxu0 %v2930
          %2985 = vmatprep.subr.mxu0 0.0
          %2986 = vmatpush1.msra.mxu0 %v2931
          %2987 = vmatprep.subr.mxu0 0.0
          %2988 = vmatpush1.msra.mxu0 %v2932
          %2989 = vmatprep.subr.mxu0 0.0
          %2990 = vmatpush1.msra.mxu0 %v2933
          %2991 = vmatprep.subr.mxu0 0.0
          %2992 = vmatpush1.msra.mxu0 %v2934
          %2993 = vmatprep.subr.mxu0 0.0
          %2994 = vmatpush1.msra.mxu0 %v2935
          %2995 = vmatprep.subr.mxu0 0.0
          %2996 = vmatpush1.msra.mxu0 %v2936
          %2997 = vmatprep.subr.mxu0 0.0
          %2998 = vmatpush1.msra.mxu0 %v2937
          %2999 = vmatprep.subr.mxu0 0.0
          %3000 = vmatpush1.msra.mxu0 %v2938
          %3001 = vmatprep.subr.mxu0 0.0
          %3002 = vmatpush1.msra.mxu0 %v2939
          %3003 = vmatprep.subr.mxu0 0.0
          %3004 = vmatpush1.msra.mxu0 %v2940
          %3005 = vmatprep.mubr.f32.mxu0 %v767
          %3006 = vmatmul.mubr.f32.gmra.mrb[0].mxu0 %v766
          %v3007 = vpop.f32.mrb[0].mxu0
          %v3008 = vadd.f32 0.0, %v3007
          %v3009 = vpop.f32.mrb[0].mxu0
          %3010 = vmatprep.mubr.f32.mxu0 %v769
          %3011 = vmatmul.mubr.f32.gmra.mrb[0].mxu0 %v768
          %v3012 = vpop.f32.mrb[0].mxu0
          %v3013 = vadd.f32 0.0, %v3012
          %v3014 = vpop.f32.mrb[0].mxu0
          %3015 = vmatprep.mubr.f32.mxu0 %v771
          %3016 = vmatmul.mubr.f32.gmra.mrb[0].mxu0 %v770
          %v3017 = vpop.f32.mrb[0].mxu0
          %v3018 = vadd.f32 0.0, %v3017
          %v3019 = vpop.f32.mrb[0].mxu0
          %3020 = vmatprep.mubr.f32.mxu0 %v773
          %3021 = vmatmul.mubr.f32.gmra.mrb[0].mxu0 %v772
          %v3022 = vpop.f32.mrb[0].mxu0
          %v3023 = vadd.f32 0.0, %v3022
          %v3024 = vpop.f32.mrb[0].mxu0
          %3025 = vmatprep.mubr.f32.mxu0 %v775
          %3026 = vmatmul.mubr.f32.gmra.mrb[0].mxu0 %v774
          %v3027 = vpop.f32.mrb[0].mxu0
          %v3028 = vadd.f32 0.0, %v3027
          %v3029 = vpop.f32.mrb[0].mxu0
          %3030 = vmatprep.mubr.f32.mxu0 %v777
          %3031 = vmatmul.mubr.f32.gmra.mrb[0].mxu0 %v776
          %v3032 = vpop.f32.mrb[0].mxu0
          %v3033 = vadd.f32 0.0, %v3032
          %v3034 = vpop.f32.mrb[0].mxu0
          %3035 = vmatprep.mubr.f32.mxu0 %v779
          %3036 = vmatmul.mubr.f32.gmra.mrb[0].mxu0 %v778
          %v3037 = vpop.f32.mrb[0].mxu0
          %v3038 = vadd.f32 0.0, %v3037
          %v3039 = vpop.f32.mrb[0].mxu0
          %3040 = vmatprep.mubr.f32.mxu0 %v781
          %3041 = vmatmul.mubr.f32.gmra.mrb[0].mxu0 %v780
          %v3042 = vpop.f32.mrb[0].mxu0
          %v3043 = vadd.f32 0.0, %v3042
          %v3044 = vpop.f32.mrb[0].mxu0
          %3045 = vdwg.mxu0
          %v3046 = vadd.f32 %v2901, %v3008
          %v3047 = vadd.f32 %v2902, %v3013
          %v3048 = vadd.f32 %v2903, %v3018
          %v3049 = vadd.f32 %v2904, %v3023
          %v3050 = vadd.f32 %v2905, %v3028
          %v3051 = vadd.f32 %v2906, %v3033
          %v3052 = vadd.f32 %v2907, %v3038
          %v3053 = vadd.f32 %v2908, %v3043
          %3054 = vst [vmem:[#allocation6] sm:$0xff] %v3046
          %3055 = vst [vmem:[#allocation6 + $0x8] sm:$0xff] %v3047
          %3056 = vst [vmem:[#allocation6 + $0x10] sm:$0xff] %v3048
          %3057 = vst [vmem:[#allocation6 + $0x18] sm:$0xff] %v3049
          %3058 = vst [vmem:[#allocation6 + $0x20] sm:$0xff] %v3050
          %3059 = vst [vmem:[#allocation6 + $0x28] sm:$0xff] %v3051
          %3060 = vst [vmem:[#allocation6 + $0x30] sm:$0xff] %v3052
          %3061 = vst [vmem:[#allocation6 + $0x38] sm:$0xff] %v3053
        $region60: #{tpu_custom_call.1} parent=43 // pred_fallthru
          _
        // Predicated region
        $region61: #{tpu_custom_call.1} parent=43 // pred_check
          %p3062 = pneg %p174
        $region62: #{tpu_custom_call.1} parent=43 // pred_check_branch
          %3064 = sbr.rel (%p3062) target = $region64
        $region63: #{tpu_custom_call.1} parent=43 // pred_region
          %s3066 = ssub.s32 1024, 1024
          %3067 = vsyncadd [#allocation7], %s3066
          %s3068 = sshll.u32 [#allocation6], 4
          %s3069 = int_to_ptr.vmem [resolvable:$true] %s3068
          %3074 = dma.vmem_to_hbm [thread:$0]  %s3069, 1024, %s6, [#allocation7], 128, 128, 8
        $region64: #{tpu_custom_call.1} parent=43 // pred_fallthru
          _
        // Predicated region
        $region65: #{tpu_custom_call.1} parent=43 // pred_check
          %p3075 = pneg %p174
        $region66: #{tpu_custom_call.1} parent=43 // pred_check_branch
          %3077 = sbr.rel (%p3075) target = $region68
        $region67: #{tpu_custom_call.1} parent=43 // pred_region
          %3078 = dma.done [#allocation7], 1024
        $region68: #{tpu_custom_call.1} parent=43 // pred_fallthru
          _
      $region44: #{tpu_custom_call.1} parent=5 // pred_fallthru
        _
      %p3079 = scmp.le.s32.totalorder 2, %s13
      // Predicated region
      $region69: #{tpu_custom_call.1} parent=5 // pred_check
        %p3080 = pneg %p3079
      $region70: #{tpu_custom_call.1} parent=5 // pred_check_branch
        %3082 = sbr.rel (%p3080) target = $region72
      $region71: #{tpu_custom_call.1} parent=5 // pred_region
        %s3083 = ssub.s32 %s13, 2
      $region72: #{tpu_custom_call.1} parent=5 // pred_fallthru
        _
    $region6: #{tpu_custom_call.1} parent=1 // loop_footer
      %s17 = sadd.s32 1, %s13
    $region7: #{tpu_custom_call.1} parent=1 // loop_footer_branch
      %12 = sbr.rel target = $region3
    $region8: #{tpu_custom_call.1} parent=1 // loop_exit
      _
    %3084 = vsyncpa [#allocation7], 1
    %s3085 = scalar_lea.sflag [#allocation7], 1
    %3086 = vsyncpa %s3085, 1

</llo_original>
